<compile_context>
chip_gen: v5e
topology: v5e:2x2
jax: 0.10.0
libtpu: 0.0.40
codegen_flags: <defaults>
</compile_context>

<pallas_src>
import functools
import math

import jax
import jax.numpy as jnp
from jax import lax
from jax.experimental import pallas as pl
from jax.experimental.pallas import tpu as pltpu

_F32 = jnp.float32
_BF16 = jnp.bfloat16

_VMEM_LIMIT = 48 * 1024 * 1024
_PAR1 = pltpu.CompilerParams(dimension_semantics=("parallel",),
                             vmem_limit_bytes=_VMEM_LIMIT)


def _row_tile(n):
    for t in (512, 256, 128, 64, 32, 16):
        if n % t == 0:
            return t
    return n


# ----------------------------------------------------------------------------
# Pallas kernels
# ----------------------------------------------------------------------------

def _attn_block_kernel(x_ref, wqkv_ref, bqkv_ref, wo_ref, bo_ref, sc_ref, sh_ref,
                       o_ref, *, n_heads, scale):
    """Fused per-batch: QKV proj + per-head SDPA + full-depth out proj + residual + BN."""
    x = x_ref[...]                                                   # [L, D] f32
    L, D = x.shape
    dk = D // n_heads
    qkv = jnp.dot(x.astype(_BF16), wqkv_ref[...],
                  preferred_element_type=_F32) + bqkv_ref[...]       # [L, 3D]
    heads = []
    for h in range(n_heads):                                         # static unroll (small H)
        q = (qkv[:, h * dk:(h + 1) * dk] * scale).astype(_BF16)      # fold 1/sqrt(dk) into q
        k = qkv[:, D + h * dk:D + (h + 1) * dk].astype(_BF16)
        v = qkv[:, 2 * D + h * dk:2 * D + (h + 1) * dk].astype(_BF16)
        s = lax.dot_general(q, k, (((1,), (1,)), ((), ())),
                            preferred_element_type=_F32)             # [L, L]
        s = s - jnp.max(s, axis=-1, keepdims=True)
        p = jnp.exp(s)
        p = p / jnp.sum(p, axis=-1, keepdims=True)
        heads.append(jnp.dot(p.astype(_BF16), v, preferred_element_type=_F32))
    ao = jnp.concatenate(heads, axis=1).astype(_BF16)                # [L, D]
    # single full-contraction-depth out projection (instead of H shallow K=dk matmuls)
    src2 = jnp.dot(ao, wo_ref[...], preferred_element_type=_F32) + bo_ref[...]
    o_ref[...] = ((x + src2) * sc_ref[...] + sh_ref[...]).astype(o_ref.dtype)


def _double_ffn_bn_kernel(x_ref, w1_ref, b1_ref, w2_ref, b2_ref, scA_ref, shA_ref,
                          w3_ref, b3_ref, w4_ref, b4_ref, scB_ref, shB_ref, o_ref):
    """Row-tiled fusion of two consecutive (Linear->GELU->Linear)+residual+BN blocks
       (TST-layer FFN + norm_ffn, then block-level FeedForward + norm1)."""
    x = x_ref[...].astype(_F32)
    h = jnp.dot(x_ref[...], w1_ref[...], preferred_element_type=_F32) + b1_ref[...]
    h = jax.nn.gelu(h, approximate=True)      # TODO(synk): exact erf GELU in PyTorch
    y = jnp.dot(h.astype(_BF16), w2_ref[...], preferred_element_type=_F32) + b2_ref[...]
    s = (x + y) * scA_ref[...] + shA_ref[...]                         # norm_ffn(src + ff)
    h2 = jnp.dot(s.astype(_BF16), w3_ref[...], preferred_element_type=_F32) + b3_ref[...]
    h2 = jax.nn.gelu(h2, approximate=True)
    y2 = jnp.dot(h2.astype(_BF16), w4_ref[...], preferred_element_type=_F32) + b4_ref[...]
    o_ref[...] = ((s + y2) * scB_ref[...] + shB_ref[...]).astype(o_ref.dtype)  # norm1


def _conv_block_kernel(x_ref, wcat_ref, b_ref, sc1_ref, sh1_ref, sc2_ref, sh2_ref,
                       o_ref, xpad_sc):
    """Per-batch: Conv1d(k=3,'same') as one 3D-deep matmul + BN(x+conv) + BN2(x + that).
       'same' padding is built inside the kernel (no wrapper-side jnp.pad)."""
    L, D = o_ref.shape
    x = x_ref[...]                                                   # [L, D] bf16
    xpad_sc[0:1, :] = jnp.zeros((1, D), _F32)
    xpad_sc[pl.ds(1, L), :] = x.astype(_F32)
    xpad_sc[L + 1:L + 2, :] = jnp.zeros((1, D), _F32)
    slab = jnp.concatenate([xpad_sc[pl.ds(0, L), :],                 # x_{l-1}
                            xpad_sc[pl.ds(1, L), :],                 # x_l
                            xpad_sc[pl.ds(2, L), :]], axis=1)        # x_{l+1}  -> [L, 3D]
    y = jnp.dot(slab.astype(_BF16), wcat_ref[...],
                preferred_element_type=_F32) + b_ref[...]
    res = x.astype(_F32)
    t = (res + y) * sc1_ref[...] + sh1_ref[...]                      # Encoder_conv norm
    o_ref[...] = ((res + t) * sc2_ref[...] + sh2_ref[...]).astype(o_ref.dtype)  # block norm2


def _mamba_block_kernel(x_ref, inpw_ref, cw_ref, cb_ref, xpw_ref, dtw_ref, dtb_ref,
                        at_ref, dvec_ref, wout_ref, sc_ref, sh_ref, o_ref,
                        xpad_sc, z_sc, u_sc, dt_sc, b_sc, c_sc, yrow_sc, yg_sc,
                        *, dt_rank, d_state, chunk, d_conv):
    """Fused per-batch Encoder_mamba:
         in_proj -> causal depthwise conv(k=4)+SiLU -> x_proj -> dt_proj+softplus ->
         chunked selective scan -> SiLU(z) gating -> out_proj -> residual -> BN(eval).
       The wide [L, d_inner] intermediates never leave VMEM."""
    L, D = o_ref.shape
    d_inner = z_sc.shape[1]

    # --- in_proj (fused): xz = x @ W_in^T ---
    xz = jnp.dot(x_ref[...], inpw_ref[...], preferred_element_type=_F32)  # [L, 2*d_inner]
    z_sc[...] = xz[:, d_inner:]

    # --- causal depthwise conv + SiLU (causal pad built in VMEM) ---
    xpad_sc[0:d_conv - 1, :] = jnp.zeros((d_conv - 1, d_inner), _F32)
    xpad_sc[pl.ds(d_conv - 1, L), :] = xz[:, :d_inner]
    acc = cb_ref[...]
    for k in range(d_conv):
        acc = acc + xpad_sc[pl.ds(k, L), :] * cw_ref[k:k + 1, :]
    u = acc * jax.nn.sigmoid(acc)
    u_sc[...] = u

    # --- x_proj and dt_proj fused: narrow dt_rank/d_state intermediates stay in VMEM ---
    xdbl = jnp.dot(u.astype(_BF16), xpw_ref[...],
                   preferred_element_type=_F32)                      # [L, R + 2S]
    b_sc[...] = xdbl[:, dt_rank:dt_rank + d_state]
    c_sc[...] = xdbl[:, dt_rank + d_state:dt_rank + 2 * d_state]
    dt_raw = jnp.dot(xdbl[:, :dt_rank].astype(_BF16), dtw_ref[...],
                     preferred_element_type=_F32) + dtb_ref[...]     # [L, d_inner]
    # numerically-stable softplus (delta_softplus=True), hoisted out of the scan
    dt_sc[...] = jnp.maximum(dt_raw, 0.0) + jnp.log(1.0 + jnp.exp(-jnp.abs(dt_raw)))

    # --- chunked selective scan (f32 state on VPU; no tiny MXU matmuls) ---
    a_t = at_ref[...]                                                # [S, d_inner]
    d_vec = dvec_ref[...]                                            # [1, d_inner]
    n_chunks = L // chunk

    def chunk_body(c, h):
        off = pl.multiple_of(c * chunk, chunk)
        dt_c = dt_sc[pl.ds(off, chunk), :]                           # [chunk, d_inner]
        u_c = u_sc[pl.ds(off, chunk), :]
        z_c = z_sc[pl.ds(off, chunk), :]
        b_ct = b_sc[pl.ds(off, chunk), :].T                          # [S, chunk]
        c_ct = c_sc[pl.ds(off, chunk), :].T
        # one large EUP push per chunk instead of `chunk` small ones
        dA_c = jnp.exp(dt_c[:, None, :] * a_t[None, :, :])           # [chunk, S, d_inner]
        dtu = dt_c * u_c
        for i in range(chunk):                                       # bounded unroll (<=8)
            h = dA_c[i] * h + b_ct[:, i:i + 1] * dtu[i:i + 1, :]
            # per-row readout written straight into scratch (no where-scatter)
            yrow_sc[i:i + 1, :] = jnp.sum(c_ct[:, i:i + 1] * h, axis=0, keepdims=True)
        y_c = yrow_sc[...] + d_vec * u_c
        yg_sc[pl.ds(off, chunk), :] = (y_c * (z_c * jax.nn.sigmoid(z_c))).astype(yg_sc.dtype)
        return h

    lax.fori_loop(0, n_chunks, chunk_body, jnp.zeros((d_state, d_inner), _F32))

    # --- out_proj + residual + BN(eval) epilogue (gated y never leaves VMEM) ---
    yo = jnp.dot(yg_sc[...], wout_ref[...], preferred_element_type=_F32)   # [L, D]
    o_ref[...] = ((x_ref[...].astype(_F32) + yo) * sc_ref[...] + sh_ref[...]).astype(o_ref.dtype)


# ----------------------------------------------------------------------------
# pallas_call wrappers
# ----------------------------------------------------------------------------

def attn_block(x, pp, *, n_heads, scale):
    B, L, D = x.shape
    kern = functools.partial(_attn_block_kernel, n_heads=n_heads, scale=scale)
    return pl.pallas_call(
        kern,
        out_shape=jax.ShapeDtypeStruct((B, L, D), _BF16),
        grid=(B,),
        in_specs=[
            pl.BlockSpec((None, L, D), lambda b: (b, 0, 0)),
            pl.BlockSpec((D, 3 * D), lambda b: (0, 0)),
            pl.BlockSpec((1, 3 * D), lambda b: (0, 0)),
            pl.BlockSpec((D, D), lambda b: (0, 0)),
            pl.BlockSpec((1, D), lambda b: (0, 0)),
            pl.BlockSpec((1, D), lambda b: (0, 0)),
            pl.BlockSpec((1, D), lambda b: (0, 0)),
        ],
        out_specs=pl.BlockSpec((None, L, D), lambda b: (b, 0, 0)),
        compiler_params=_PAR1,
    )(x, pp['wqkv_t'], pp['bqkv'], pp['wo_t'], pp['bo'],
      pp['bn_attn_sc'], pp['bn_attn_sh'])


def double_ffn(x, pp):
    n, d = x.shape
    dh1 = pp['ff_w1t'].shape[1]
    dh2 = pp['ffn_w1t'].shape[1]
    tn = _row_tile(n)
    return pl.pallas_call(
        _double_ffn_bn_kernel,
        out_shape=jax.ShapeDtypeStruct((n, d), _BF16),
        grid=(n // tn,),
        in_specs=[
            pl.BlockSpec((tn, d), lambda i: (i, 0)),
            pl.BlockSpec((d, dh1), lambda i: (0, 0)),
            pl.BlockSpec((1, dh1), lambda i: (0, 0)),
            pl.BlockSpec((dh1, d), lambda i: (0, 0)),
            pl.BlockSpec((1, d), lambda i: (0, 0)),
            pl.BlockSpec((1, d), lambda i: (0, 0)),
            pl.BlockSpec((1, d), lambda i: (0, 0)),
            pl.BlockSpec((d, dh2), lambda i: (0, 0)),
            pl.BlockSpec((1, dh2), lambda i: (0, 0)),
            pl.BlockSpec((dh2, d), lambda i: (0, 0)),
            pl.BlockSpec((1, d), lambda i: (0, 0)),
            pl.BlockSpec((1, d), lambda i: (0, 0)),
            pl.BlockSpec((1, d), lambda i: (0, 0)),
        ],
        out_specs=pl.BlockSpec((tn, d), lambda i: (i, 0)),
        compiler_params=_PAR1,
    )(x, pp['ff_w1t'], pp['ff_b1'], pp['ff_w2t'], pp['ff_b2'],
      pp['bn_ffn_sc'], pp['bn_ffn_sh'],
      pp['ffn_w1t'], pp['ffn_b1'], pp['ffn_w2t'], pp['ffn_b2'],
      pp['bn1_sc'], pp['bn1_sh'])


def conv_block(x, pp):
    B, L, D = x.shape
    return pl.pallas_call(
        _conv_block_kernel,
        out_shape=jax.ShapeDtypeStruct((B, L, D), _BF16),
        grid=(B,),
        in_specs=[
            pl.BlockSpec((None, L, D), lambda b: (b, 0, 0)),
            pl.BlockSpec((3 * D, D), lambda b: (0, 0)),
            pl.BlockSpec((1, D), lambda b: (0, 0)),
            pl.BlockSpec((1, D), lambda b: (0, 0)),
            pl.BlockSpec((1, D), lambda b: (0, 0)),
            pl.BlockSpec((1, D), lambda b: (0, 0)),
            pl.BlockSpec((1, D), lambda b: (0, 0)),
        ],
        out_specs=pl.BlockSpec((None, L, D), lambda b: (b, 0, 0)),
        scratch_shapes=[pltpu.VMEM((L + 2, D), _F32)],
        compiler_params=_PAR1,
    )(x, pp['conv_wcat'], pp['conv_b'],
      pp['bn_conv_sc'], pp['bn_conv_sh'], pp['bn2_sc'], pp['bn2_sh'])


def mamba_block(x, pp, *, dt_rank, d_state, d_inner, d_conv, chunk):
    B, L, D = x.shape
    kern = functools.partial(_mamba_block_kernel, dt_rank=dt_rank, d_state=d_state,
                             chunk=chunk, d_conv=d_conv)
    return pl.pallas_call(
        kern,
        out_shape=jax.ShapeDtypeStruct((B, L, D), _F32),
        grid=(B,),
        in_specs=[
            pl.BlockSpec((None, L, D), lambda b: (b, 0, 0)),                  # conv-block output
            pl.BlockSpec((D, 2 * d_inner), lambda b: (0, 0)),                 # in_proj^T
            pl.BlockSpec((d_conv, d_inner), lambda b: (0, 0)),                # dw conv taps
            pl.BlockSpec((1, d_inner), lambda b: (0, 0)),                     # dw conv bias
            pl.BlockSpec((d_inner, dt_rank + 2 * d_state), lambda b: (0, 0)), # x_proj^T
            pl.BlockSpec((dt_rank, d_inner), lambda b: (0, 0)),               # dt_proj^T
            pl.BlockSpec((1, d_inner), lambda b: (0, 0)),                     # dt bias
            pl.BlockSpec((d_state, d_inner), lambda b: (0, 0)),               # A^T
            pl.BlockSpec((1, d_inner), lambda b: (0, 0)),                     # D
            pl.BlockSpec((d_inner, D), lambda b: (0, 0)),                     # out_proj^T
            pl.BlockSpec((1, D), lambda b: (0, 0)),                           # BN scale
            pl.BlockSpec((1, D), lambda b: (0, 0)),                           # BN shift
        ],
        out_specs=pl.BlockSpec((None, L, D), lambda b: (b, 0, 0)),
        scratch_shapes=[
            pltpu.VMEM((L + d_conv - 1, d_inner), _F32),   # causally-padded conv input
            pltpu.VMEM((L, d_inner), _F32),                # z
            pltpu.VMEM((L, d_inner), _F32),                # u (post conv+SiLU)
            pltpu.VMEM((L, d_inner), _F32),                # softplus(dt)
            pltpu.VMEM((L, d_state), _F32),                # B
            pltpu.VMEM((L, d_state), _F32),                # C
            pltpu.VMEM((chunk, d_inner), _F32),            # per-chunk readout rows
            pltpu.VMEM((L, d_inner), _BF16),               # gated scan output -> out_proj
        ],
        compiler_params=_PAR1,
    )(x, pp['in_proj_wt'], pp['mconv_w'], pp['mconv_b'], pp['x_proj_wt'],
      pp['dt_proj_wt'], pp['dt_proj_b'], pp['A_t'], pp['Dp'], pp['out_proj_wt'],
      pp['bn_mamba_sc'], pp['bn_mamba_sh'])


# ----------------------------------------------------------------------------
# Parameters (deterministic synthetic init; shapes follow the module __init__)
# ----------------------------------------------------------------------------

def init_params(key, d_model, n_heads, d_ff, d_state, d_conv=4, expand=2):
    keys = iter(jax.random.split(key, 64))

    def w(shape, scale=None):
        s = (1.0 / math.sqrt(shape[-1])) if scale is None else scale
        return jax.random.normal(next(keys), shape, _F32) * s

    def bn(d):
        return dict(
            gamma=1.0 + 0.1 * jax.random.normal(next(keys), (d,), _F32),
            beta=0.1 * jax.random.normal(next(keys), (d,), _F32),
            mean=0.1 * jax.random.normal(next(keys), (d,), _F32),
            var=1.0 + 0.1 * jax.random.uniform(next(keys), (d,), _F32),
        )

    d_inner = expand * d_model
    dt_rank = math.ceil(d_model / 16)

    return dict(
        # --- TSTEncoderLayer (n_layers=1) ---
        wq=w((d_model, d_model)), bq=w((d_model,), 0.02),
        wk=w((d_model, d_model)), bk=w((d_model,), 0.02),
        wv=w((d_model, d_model)), bv=w((d_model,), 0.02),
        wo=w((d_model, d_model)), bo=w((d_model,), 0.02),
        bn_attn=bn(d_model),
        ff_w1=w((d_ff, d_model)), ff_b1=w((d_ff,), 0.02),
        ff_w2=w((d_model, d_ff)), ff_b2=w((d_model,), 0.02),
        bn_ffn=bn(d_model),
        # --- block-level FeedForward (hidden = 2*d_model) ---
        ffn_w1=w((2 * d_model, d_model)), ffn_b1=w((2 * d_model,), 0.02),
        ffn_w2=w((d_model, 2 * d_model)), ffn_b2=w((d_model,), 0.02),
        bn1=bn(d_model),
        # --- Encoder_conv ---
        conv_w=w((d_model, d_model, 3), (3 * d_model) ** -0.5), conv_b=w((d_model,), 0.02),
        bn_conv=bn(d_model),
        bn2=bn(d_model),
        # --- Encoder_mamba / Mamba ---
        in_proj_w=w((2 * d_inner, d_model)),
        mconv_w=w((d_inner, d_conv), 0.3), mconv_b=w((d_inner,), 0.02),
        x_proj_w=w((dt_rank + 2 * d_state, d_inner)),
        dt_proj_w=w((d_inner, dt_rank), dt_rank ** -0.5),
        dt_proj_b=jax.random.uniform(next(keys), (d_inner,), _F32, -3.0, -1.0),
        A_log=jnp.broadcast_to(
            jnp.log(jnp.arange(1, d_state + 1, dtype=_F32)),
            (d_inner, d_state)),
        Dp=jnp.ones((d_inner,), _F32),
        out_proj_w=w((d_model, d_inner)),
        bn_mamba=bn(d_model),
    )


def _bn_scale_shift(bnp, eps=1e-5):
    inv = bnp['gamma'] / jnp.sqrt(bnp['var'] + eps)
    sc = inv.reshape(1, -1).astype(_F32)
    sh = (bnp['beta'] - bnp['mean'] * inv).reshape(1, -1).astype(_F32)
    return sc, sh


def prepare_params(p, *, d_model, n_heads, d_state, expand=2):
    """One-time weight prep: transposes, fusions, bf16 casts, BN folding."""
    pp = {}
    # attention (QKV fused, full out-projection)
    wqkv = jnp.concatenate([p['wq'], p['wk'], p['wv']], axis=0)           # [3D, D]
    pp['wqkv_t'] = wqkv.T.astype(_BF16)                                   # [D, 3D]
    pp['bqkv'] = jnp.concatenate([p['bq'], p['bk'], p['bv']]).reshape(1, -1).astype(_F32)
    pp['wo_t'] = p['wo'].T.astype(_BF16)                                  # [D, D]
    pp['bo'] = p['bo'].reshape(1, -1).astype(_F32)
    pp['bn_attn_sc'], pp['bn_attn_sh'] = _bn_scale_shift(p['bn_attn'])
    # TST layer FFN
    pp['ff_w1t'] = p['ff_w1'].T.astype(_BF16)
    pp['ff_b1'] = p['ff_b1'].reshape(1, -1).astype(_F32)
    pp['ff_w2t'] = p['ff_w2'].T.astype(_BF16)
    pp['ff_b2'] = p['ff_b2'].reshape(1, -1).astype(_F32)
    pp['bn_ffn_sc'], pp['bn_ffn_sh'] = _bn_scale_shift(p['bn_ffn'])
    # block-level FeedForward + norm1
    pp['ffn_w1t'] = p['ffn_w1'].T.astype(_BF16)
    pp['ffn_b1'] = p['ffn_b1'].reshape(1, -1).astype(_F32)
    pp['ffn_w2t'] = p['ffn_w2'].T.astype(_BF16)
    pp['ffn_b2'] = p['ffn_b2'].reshape(1, -1).astype(_F32)
    pp['bn1_sc'], pp['bn1_sh'] = _bn_scale_shift(p['bn1'])
    # Encoder_conv + norm2: taps pre-concatenated into a single [3D, D] weight
    pp['conv_wcat'] = jnp.concatenate(
        [p['conv_w'][:, :, k].T for k in range(3)], axis=0).astype(_BF16)
    pp['conv_b'] = p['conv_b'].reshape(1, -1).astype(_F32)
    pp['bn_conv_sc'], pp['bn_conv_sh'] = _bn_scale_shift(p['bn_conv'])
    pp['bn2_sc'], pp['bn2_sh'] = _bn_scale_shift(p['bn2'])
    # Mamba (in_proj / out_proj have bias=False in mamba_ssm defaults)
    pp['in_proj_wt'] = p['in_proj_w'].T.astype(_BF16)                     # [D, 2*d_inner]
    pp['mconv_w'] = p['mconv_w'].T.astype(_F32)                           # [d_conv, d_inner]
    pp['mconv_b'] = p['mconv_b'].reshape(1, -1).astype(_F32)
    pp['x_proj_wt'] = p['x_proj_w'].T.astype(_BF16)                       # [d_inner, R+2S]
    pp['dt_proj_wt'] = p['dt_proj_w'].T.astype(_BF16)                     # [R, d_inner]
    pp['dt_proj_b'] = p['dt_proj_b'].reshape(1, -1).astype(_F32)
    pp['A_t'] = (-jnp.exp(p['A_log'])).T.astype(_F32)                     # [S, d_inner]
    pp['Dp'] = p['Dp'].reshape(1, -1).astype(_F32)
    pp['out_proj_wt'] = p['out_proj_w'].T.astype(_BF16)                   # [d_inner, D]
    pp['bn_mamba_sc'], pp['bn_mamba_sh'] = _bn_scale_shift(p['bn_mamba'])
    return pp


# ----------------------------------------------------------------------------
# Forward pass of Encoder_AFCM_block (inference)
# ----------------------------------------------------------------------------

def encoder_afcm_block(x, pp, *, n_heads, d_state, expand=2, d_conv=4):
    B, L, D = x.shape
    assert D % n_heads == 0
    d_inner = expand * D
    dt_rank = math.ceil(D / 16)
    scale = float(D // n_heads) ** -0.5

    # ---- 1. TSTEncoder attention sub-layer: norm_attn(src + MHA(src)) ----
    s = attn_block(x.astype(_F32), pp, n_heads=n_heads, scale=scale)      # bf16 [B,L,D]

    # ---- 2. fused: norm_ffn(src + ff(src)) then norm1(x + FeedForward(x)) ----
    s = double_ffn(s.reshape(B * L, D), pp)                               # bf16 [B*L,D]

    # ---- 3. x = norm2(x + Encoder_conv(x)),  Encoder_conv = BN(x + Conv1d(x)) ----
    s = conv_block(s.reshape(B, L, D), pp)                                # bf16 [B,L,D]

    # ---- 4. Encoder_mamba: BN(x + Mamba(x)) — fully fused per batch ----
    chunk = max(c for c in (8, 4, 2, 1) if L % c == 0)   # odd L degrades to chunk=1 (serial)
    out = mamba_block(s, pp, dt_rank=dt_rank, d_state=d_state,
                      d_inner=d_inner, d_conv=d_conv, chunk=chunk)        # f32 [B,L,D]
    return out


# ----------------------------------------------------------------------------

if __name__ == "__main__":
    # d_model=128 keeps every HBM store lane-dense (128-lane multiple); shapes stay small.
    B, L, D = 2, 16, 128          # batch, q_len, d_model
    n_heads, d_ff, d_state = 4, 256, 8

    key = jax.random.PRNGKey(0)
    kx, kp = jax.random.split(key)
    x = jax.random.normal(kx, (B, L, D), jnp.float32)
    raw = init_params(kp, D, n_heads, d_ff, d_state)
    pp = prepare_params(raw, d_model=D, n_heads=n_heads, d_state=d_state)

    fwd = jax.jit(functools.partial(encoder_afcm_block, n_heads=n_heads, d_state=d_state))
    out = fwd(x, pp)
    out = jax.block_until_ready(out)

    assert out.shape == (B, L, D), out.shape
    assert bool(jnp.all(jnp.isfinite(out)))
    print("KERNEL_OK")
</pallas_src>

<mosaic_0001>
module attributes {stable_mosaic.version = 11 : i64} {
  func.func @_attn_block_kernel(%arg0: i32, %arg1: memref<1x16x128xf32, #tpu.memory_space<vmem>>, %arg2: memref<128x384xbf16, #tpu.memory_space<vmem>>, %arg3: memref<1x384xf32, #tpu.memory_space<vmem>>, %arg4: memref<128x128xbf16, #tpu.memory_space<vmem>>, %arg5: memref<1x128xf32, #tpu.memory_space<vmem>>, %arg6: memref<1x128xf32, #tpu.memory_space<vmem>>, %arg7: memref<1x128xf32, #tpu.memory_space<vmem>>, %arg8: memref<1x16x128xbf16, #tpu.memory_space<vmem>>) attributes {dimension_semantics = [#tpu.dimension_semantics<parallel>], iteration_bounds = array<i64: 2>, scalar_prefetch = 0 : i64, scratch_operands = 0 : i64, tpu.core_type = #tpu.core_type<tc>, window_params = [{transform_indices = @transform_0, window_bounds = array<i64: 1, 16, 128>}, {pipeline_mode = #tpu.pipeline_mode<synchronous>, transform_indices = @transform_1, window_bounds = array<i64: 128, 384>}, {pipeline_mode = #tpu.pipeline_mode<synchronous>, transform_indices = @transform_2, window_bounds = array<i64: 1, 384>}, {pipeline_mode = #tpu.pipeline_mode<synchronous>, transform_indices = @transform_3, window_bounds = array<i64: 128, 128>}, {pipeline_mode = #tpu.pipeline_mode<synchronous>, transform_indices = @transform_4, window_bounds = array<i64: 1, 128>}, {pipeline_mode = #tpu.pipeline_mode<synchronous>, transform_indices = @transform_5, window_bounds = array<i64: 1, 128>}, {pipeline_mode = #tpu.pipeline_mode<synchronous>, transform_indices = @transform_6, window_bounds = array<i64: 1, 128>}, {transform_indices = @transform_7, window_bounds = array<i64: 1, 16, 128>}]} {
    %c0 = arith.constant 0 : index
    %c0_0 = arith.constant 0 : index
    %c0_1 = arith.constant 0 : index
    %0 = vector.load %arg1[%c0, %c0_0, %c0_1] : memref<1x16x128xf32, #tpu.memory_space<vmem>>, vector<1x16x128xf32>
    %1 = vector.shape_cast %0 : vector<1x16x128xf32> to vector<16x128xf32>
    %2 = arith.truncf %1 : vector<16x128xf32> to vector<16x128xbf16>
    %c0_2 = arith.constant 0 : index
    %c0_3 = arith.constant 0 : index
    %3 = vector.load %arg2[%c0_2, %c0_3] : memref<128x384xbf16, #tpu.memory_space<vmem>>, vector<128x384xbf16>
    %cst = arith.constant dense<0.000000e+00> : vector<16x384xf32>
    %4 = tpu.matmul %2, %3, %cst {dimension_numbers = #tpu.dot_dimension_numbers<[1], [0], [0], [1], [0, 0, 1, 1], [], []>} : vector<16x128xbf16>, vector<128x384xbf16>, vector<16x384xf32> -> vector<16x384xf32>
    %c0_4 = arith.constant 0 : index
    %c0_5 = arith.constant 0 : index
    %5 = vector.load %arg3[%c0_4, %c0_5] : memref<1x384xf32, #tpu.memory_space<vmem>>, vector<1x384xf32>
    %6 = vector.broadcast %5 : vector<1x384xf32> to vector<16x384xf32>
    %7 = arith.addf %4, %6 : vector<16x384xf32>
    %8 = vector.extract_strided_slice %7 {offsets = [0, 0], sizes = [16, 32], strides = [1, 1]} : vector<16x384xf32> to vector<16x32xf32>
    %cst_6 = arith.constant 0.176776692 : f32
    %9 = vector.broadcast %cst_6 : f32 to vector<16x32xf32>
    %10 = arith.mulf %8, %9 : vector<16x32xf32>
    %11 = arith.truncf %10 : vector<16x32xf32> to vector<16x32xbf16>
    %12 = vector.extract_strided_slice %7 {offsets = [0, 128], sizes = [16, 32], strides = [1, 1]} : vector<16x384xf32> to vector<16x32xf32>
    %13 = arith.truncf %12 : vector<16x32xf32> to vector<16x32xbf16>
    %14 = vector.extract_strided_slice %7 {offsets = [0, 256], sizes = [16, 32], strides = [1, 1]} : vector<16x384xf32> to vector<16x32xf32>
    %15 = arith.truncf %14 : vector<16x32xf32> to vector<16x32xbf16>
    %cst_7 = arith.constant dense<0.000000e+00> : vector<16x16xf32>
    %16 = tpu.matmul %11, %13, %cst_7 {dimension_numbers = #tpu.dot_dimension_numbers<[1], [1], [0], [0], [0, 0, 1, 0], [], []>} : vector<16x32xbf16>, vector<16x32xbf16>, vector<16x16xf32> -> vector<16x16xf32>
    %cst_8 = arith.constant dense<0xFF800000> : vector<16xf32>
    %17 = vector.multi_reduction <maximumf>, %16, %cst_8 [1] : vector<16x16xf32> to vector<16xf32>
    %18 = vector.shape_cast %17 : vector<16xf32> to vector<16x1xf32>
    %19 = vector.broadcast %18 : vector<16x1xf32> to vector<16x16xf32>
    %20 = arith.subf %16, %19 : vector<16x16xf32>
    %21 = math.exp %20 : vector<16x16xf32>
    %cst_9 = arith.constant dense<0.000000e+00> : vector<16xf32>
    %22 = vector.multi_reduction <add>, %21, %cst_9 [1] : vector<16x16xf32> to vector<16xf32>
    %23 = vector.shape_cast %22 : vector<16xf32> to vector<16x1xf32>
    %24 = vector.broadcast %23 : vector<16x1xf32> to vector<16x16xf32>
    %25 = arith.divf %21, %24 : vector<16x16xf32>
    %26 = arith.truncf %25 : vector<16x16xf32> to vector<16x16xbf16>
    %cst_10 = arith.constant dense<0.000000e+00> : vector<16x32xf32>
    %27 = tpu.matmul %26, %15, %cst_10 {dimension_numbers = #tpu.dot_dimension_numbers<[1], [0], [0], [1], [0, 0, 1, 1], [], []>} : vector<16x16xbf16>, vector<16x32xbf16>, vector<16x32xf32> -> vector<16x32xf32>
    %28 = vector.extract_strided_slice %7 {offsets = [0, 32], sizes = [16, 32], strides = [1, 1]} : vector<16x384xf32> to vector<16x32xf32>
    %cst_11 = arith.constant 0.176776692 : f32
    %29 = vector.broadcast %cst_11 : f32 to vector<16x32xf32>
    %30 = arith.mulf %28, %29 : vector<16x32xf32>
    %31 = arith.truncf %30 : vector<16x32xf32> to vector<16x32xbf16>
    %32 = vector.extract_strided_slice %7 {offsets = [0, 160], sizes = [16, 32], strides = [1, 1]} : vector<16x384xf32> to vector<16x32xf32>
    %33 = arith.truncf %32 : vector<16x32xf32> to vector<16x32xbf16>
    %34 = vector.extract_strided_slice %7 {offsets = [0, 288], sizes = [16, 32], strides = [1, 1]} : vector<16x384xf32> to vector<16x32xf32>
    %35 = arith.truncf %34 : vector<16x32xf32> to vector<16x32xbf16>
    %cst_12 = arith.constant dense<0.000000e+00> : vector<16x16xf32>
    %36 = tpu.matmul %31, %33, %cst_12 {dimension_numbers = #tpu.dot_dimension_numbers<[1], [1], [0], [0], [0, 0, 1, 0], [], []>} : vector<16x32xbf16>, vector<16x32xbf16>, vector<16x16xf32> -> vector<16x16xf32>
    %cst_13 = arith.constant dense<0xFF800000> : vector<16xf32>
    %37 = vector.multi_reduction <maximumf>, %36, %cst_13 [1] : vector<16x16xf32> to vector<16xf32>
    %38 = vector.shape_cast %37 : vector<16xf32> to vector<16x1xf32>
    %39 = vector.broadcast %38 : vector<16x1xf32> to vector<16x16xf32>
    %40 = arith.subf %36, %39 : vector<16x16xf32>
    %41 = math.exp %40 : vector<16x16xf32>
    %cst_14 = arith.constant dense<0.000000e+00> : vector<16xf32>
    %42 = vector.multi_reduction <add>, %41, %cst_14 [1] : vector<16x16xf32> to vector<16xf32>
    %43 = vector.shape_cast %42 : vector<16xf32> to vector<16x1xf32>
    %44 = vector.broadcast %43 : vector<16x1xf32> to vector<16x16xf32>
    %45 = arith.divf %41, %44 : vector<16x16xf32>
    %46 = arith.truncf %45 : vector<16x16xf32> to vector<16x16xbf16>
    %cst_15 = arith.constant dense<0.000000e+00> : vector<16x32xf32>
    %47 = tpu.matmul %46, %35, %cst_15 {dimension_numbers = #tpu.dot_dimension_numbers<[1], [0], [0], [1], [0, 0, 1, 1], [], []>} : vector<16x16xbf16>, vector<16x32xbf16>, vector<16x32xf32> -> vector<16x32xf32>
    %48 = vector.extract_strided_slice %7 {offsets = [0, 64], sizes = [16, 32], strides = [1, 1]} : vector<16x384xf32> to vector<16x32xf32>
    %cst_16 = arith.constant 0.176776692 : f32
    %49 = vector.broadcast %cst_16 : f32 to vector<16x32xf32>
    %50 = arith.mulf %48, %49 : vector<16x32xf32>
    %51 = arith.truncf %50 : vector<16x32xf32> to vector<16x32xbf16>
    %52 = vector.extract_strided_slice %7 {offsets = [0, 192], sizes = [16, 32], strides = [1, 1]} : vector<16x384xf32> to vector<16x32xf32>
    %53 = arith.truncf %52 : vector<16x32xf32> to vector<16x32xbf16>
    %54 = vector.extract_strided_slice %7 {offsets = [0, 320], sizes = [16, 32], strides = [1, 1]} : vector<16x384xf32> to vector<16x32xf32>
    %55 = arith.truncf %54 : vector<16x32xf32> to vector<16x32xbf16>
    %cst_17 = arith.constant dense<0.000000e+00> : vector<16x16xf32>
    %56 = tpu.matmul %51, %53, %cst_17 {dimension_numbers = #tpu.dot_dimension_numbers<[1], [1], [0], [0], [0, 0, 1, 0], [], []>} : vector<16x32xbf16>, vector<16x32xbf16>, vector<16x16xf32> -> vector<16x16xf32>
    %cst_18 = arith.constant dense<0xFF800000> : vector<16xf32>
    %57 = vector.multi_reduction <maximumf>, %56, %cst_18 [1] : vector<16x16xf32> to vector<16xf32>
    %58 = vector.shape_cast %57 : vector<16xf32> to vector<16x1xf32>
    %59 = vector.broadcast %58 : vector<16x1xf32> to vector<16x16xf32>
    %60 = arith.subf %56, %59 : vector<16x16xf32>
    %61 = math.exp %60 : vector<16x16xf32>
    %cst_19 = arith.constant dense<0.000000e+00> : vector<16xf32>
    %62 = vector.multi_reduction <add>, %61, %cst_19 [1] : vector<16x16xf32> to vector<16xf32>
    %63 = vector.shape_cast %62 : vector<16xf32> to vector<16x1xf32>
    %64 = vector.broadcast %63 : vector<16x1xf32> to vector<16x16xf32>
    %65 = arith.divf %61, %64 : vector<16x16xf32>
    %66 = arith.truncf %65 : vector<16x16xf32> to vector<16x16xbf16>
    %cst_20 = arith.constant dense<0.000000e+00> : vector<16x32xf32>
    %67 = tpu.matmul %66, %55, %cst_20 {dimension_numbers = #tpu.dot_dimension_numbers<[1], [0], [0], [1], [0, 0, 1, 1], [], []>} : vector<16x16xbf16>, vector<16x32xbf16>, vector<16x32xf32> -> vector<16x32xf32>
    %68 = vector.extract_strided_slice %7 {offsets = [0, 96], sizes = [16, 32], strides = [1, 1]} : vector<16x384xf32> to vector<16x32xf32>
    %cst_21 = arith.constant 0.176776692 : f32
    %69 = vector.broadcast %cst_21 : f32 to vector<16x32xf32>
    %70 = arith.mulf %68, %69 : vector<16x32xf32>
    %71 = arith.truncf %70 : vector<16x32xf32> to vector<16x32xbf16>
    %72 = vector.extract_strided_slice %7 {offsets = [0, 224], sizes = [16, 32], strides = [1, 1]} : vector<16x384xf32> to vector<16x32xf32>
    %73 = arith.truncf %72 : vector<16x32xf32> to vector<16x32xbf16>
    %74 = vector.extract_strided_slice %7 {offsets = [0, 352], sizes = [16, 32], strides = [1, 1]} : vector<16x384xf32> to vector<16x32xf32>
    %75 = arith.truncf %74 : vector<16x32xf32> to vector<16x32xbf16>
    %cst_22 = arith.constant dense<0.000000e+00> : vector<16x16xf32>
    %76 = tpu.matmul %71, %73, %cst_22 {dimension_numbers = #tpu.dot_dimension_numbers<[1], [1], [0], [0], [0, 0, 1, 0], [], []>} : vector<16x32xbf16>, vector<16x32xbf16>, vector<16x16xf32> -> vector<16x16xf32>
    %cst_23 = arith.constant dense<0xFF800000> : vector<16xf32>
    %77 = vector.multi_reduction <maximumf>, %76, %cst_23 [1] : vector<16x16xf32> to vector<16xf32>
    %78 = vector.shape_cast %77 : vector<16xf32> to vector<16x1xf32>
    %79 = vector.broadcast %78 : vector<16x1xf32> to vector<16x16xf32>
    %80 = arith.subf %76, %79 : vector<16x16xf32>
    %81 = math.exp %80 : vector<16x16xf32>
    %cst_24 = arith.constant dense<0.000000e+00> : vector<16xf32>
    %82 = vector.multi_reduction <add>, %81, %cst_24 [1] : vector<16x16xf32> to vector<16xf32>
    %83 = vector.shape_cast %82 : vector<16xf32> to vector<16x1xf32>
    %84 = vector.broadcast %83 : vector<16x1xf32> to vector<16x16xf32>
    %85 = arith.divf %81, %84 : vector<16x16xf32>
    %86 = arith.truncf %85 : vector<16x16xf32> to vector<16x16xbf16>
    %cst_25 = arith.constant dense<0.000000e+00> : vector<16x32xf32>
    %87 = tpu.matmul %86, %75, %cst_25 {dimension_numbers = #tpu.dot_dimension_numbers<[1], [0], [0], [1], [0, 0, 1, 1], [], []>} : vector<16x16xbf16>, vector<16x32xbf16>, vector<16x32xf32> -> vector<16x32xf32>
    %88 = tpu.concatenate %27, %47, %67, %87 in 1 : vector<16x32xf32>, vector<16x32xf32>, vector<16x32xf32>, vector<16x32xf32> -> vector<16x128xf32>
    %89 = arith.truncf %88 : vector<16x128xf32> to vector<16x128xbf16>
    %c0_26 = arith.constant 0 : index
    %c0_27 = arith.constant 0 : index
    %90 = vector.load %arg4[%c0_26, %c0_27] : memref<128x128xbf16, #tpu.memory_space<vmem>>, vector<128x128xbf16>
    %cst_28 = arith.constant dense<0.000000e+00> : vector<16x128xf32>
    %91 = tpu.matmul %89, %90, %cst_28 {dimension_numbers = #tpu.dot_dimension_numbers<[1], [0], [0], [1], [0, 0, 1, 1], [], []>} : vector<16x128xbf16>, vector<128x128xbf16>, vector<16x128xf32> -> vector<16x128xf32>
    %c0_29 = arith.constant 0 : index
    %c0_30 = arith.constant 0 : index
    %92 = vector.load %arg5[%c0_29, %c0_30] : memref<1x128xf32, #tpu.memory_space<vmem>>, vector<1x128xf32>
    %93 = vector.broadcast %92 : vector<1x128xf32> to vector<16x128xf32>
    %94 = arith.addf %91, %93 : vector<16x128xf32>
    %95 = arith.addf %1, %94 : vector<16x128xf32>
    %c0_31 = arith.constant 0 : index
    %c0_32 = arith.constant 0 : index
    %96 = vector.load %arg6[%c0_31, %c0_32] : memref<1x128xf32, #tpu.memory_space<vmem>>, vector<1x128xf32>
    %97 = vector.broadcast %96 : vector<1x128xf32> to vector<16x128xf32>
    %98 = arith.mulf %95, %97 : vector<16x128xf32>
    %c0_33 = arith.constant 0 : index
    %c0_34 = arith.constant 0 : index
    %99 = vector.load %arg7[%c0_33, %c0_34] : memref<1x128xf32, #tpu.memory_space<vmem>>, vector<1x128xf32>
    %100 = vector.broadcast %99 : vector<1x128xf32> to vector<16x128xf32>
    %101 = arith.addf %98, %100 : vector<16x128xf32>
    %102 = arith.truncf %101 : vector<16x128xf32> to vector<16x128xbf16>
    %c0_35 = arith.constant 0 : index
    %c0_36 = arith.constant 0 : index
    %c0_37 = arith.constant 0 : index
    %103 = vector.load %arg8[%c0_35, %c0_36, %c0_37] : memref<1x16x128xbf16, #tpu.memory_space<vmem>>, vector<1x16x128xbf16>
    %104 = vector.shape_cast %103 : vector<1x16x128xbf16> to vector<16x128xbf16>
    %105 = vector.shape_cast %102 : vector<16x128xbf16> to vector<1x16x128xbf16>
    tpu.vector_store %arg8[%c0_35, %c0_36, %c0_37], %105 {strides = array<i32>} : memref<1x16x128xbf16, #tpu.memory_space<vmem>>, vector<1x16x128xbf16>,
    return
  }
  func.func @transform_0(%arg0: i32) -> (i32, i32, i32) {
    %c0_i32 = arith.constant 0 : i32
    %c0_i32_0 = arith.constant 0 : i32
    %c0_i32_1 = arith.constant 0 : i32
    return %arg0, %c0_i32, %c0_i32_0 : i32, i32, i32
  }
  func.func @transform_1(%arg0: i32) -> (i32, i32) {
    %c0_i32 = arith.constant 0 : i32
    %c0_i32_0 = arith.constant 0 : i32
    %c0_i32_1 = arith.constant 0 : i32
    return %c0_i32, %c0_i32_0 : i32, i32
  }
  func.func @transform_2(%arg0: i32) -> (i32, i32) {
    %c0_i32 = arith.constant 0 : i32
    %c0_i32_0 = arith.constant 0 : i32
    %c0_i32_1 = arith.constant 0 : i32
    return %c0_i32, %c0_i32_0 : i32, i32
  }
  func.func @transform_3(%arg0: i32) -> (i32, i32) {
    %c0_i32 = arith.constant 0 : i32
    %c0_i32_0 = arith.constant 0 : i32
    %c0_i32_1 = arith.constant 0 : i32
    return %c0_i32, %c0_i32_0 : i32, i32
  }
  func.func @transform_4(%arg0: i32) -> (i32, i32) {
    %c0_i32 = arith.constant 0 : i32
    %c0_i32_0 = arith.constant 0 : i32
    %c0_i32_1 = arith.constant 0 : i32
    return %c0_i32, %c0_i32_0 : i32, i32
  }
  func.func @transform_5(%arg0: i32) -> (i32, i32) {
    %c0_i32 = arith.constant 0 : i32
    %c0_i32_0 = arith.constant 0 : i32
    %c0_i32_1 = arith.constant 0 : i32
    return %c0_i32, %c0_i32_0 : i32, i32
  }
  func.func @transform_6(%arg0: i32) -> (i32, i32) {
    %c0_i32 = arith.constant 0 : i32
    %c0_i32_0 = arith.constant 0 : i32
    %c0_i32_1 = arith.constant 0 : i32
    return %c0_i32, %c0_i32_0 : i32, i32
  }
  func.func @transform_7(%arg0: i32) -> (i32, i32, i32) {
    %c0_i32 = arith.constant 0 : i32
    %c0_i32_0 = arith.constant 0 : i32
    %c0_i32_1 = arith.constant 0 : i32
    return %arg0, %c0_i32, %c0_i32_0 : i32, i32, i32
  }
}

module attributes {stable_mosaic.version = 11 : i64} {
  func.func @_double_ffn_bn_kernel(%arg0: i32, %arg1: memref<32x128xbf16, #tpu.memory_space<vmem>>, %arg2: memref<128x256xbf16, #tpu.memory_space<vmem>>, %arg3: memref<1x256xf32, #tpu.memory_space<vmem>>, %arg4: memref<256x128xbf16, #tpu.memory_space<vmem>>, %arg5: memref<1x128xf32, #tpu.memory_space<vmem>>, %arg6: memref<1x128xf32, #tpu.memory_space<vmem>>, %arg7: memref<1x128xf32, #tpu.memory_space<vmem>>, %arg8: memref<128x256xbf16, #tpu.memory_space<vmem>>, %arg9: memref<1x256xf32, #tpu.memory_space<vmem>>, %arg10: memref<256x128xbf16, #tpu.memory_space<vmem>>, %arg11: memref<1x128xf32, #tpu.memory_space<vmem>>, %arg12: memref<1x128xf32, #tpu.memory_space<vmem>>, %arg13: memref<1x128xf32, #tpu.memory_space<vmem>>, %arg14: memref<32x128xbf16, #tpu.memory_space<vmem>>) attributes {dimension_semantics = [#tpu.dimension_semantics<parallel>], iteration_bounds = array<i64: 1>, scalar_prefetch = 0 : i64, scratch_operands = 0 : i64, tpu.core_type = #tpu.core_type<tc>, window_params = [{transform_indices = @transform_0, window_bounds = array<i64: 32, 128>}, {pipeline_mode = #tpu.pipeline_mode<synchronous>, transform_indices = @transform_1, window_bounds = array<i64: 128, 256>}, {pipeline_mode = #tpu.pipeline_mode<synchronous>, transform_indices = @transform_2, window_bounds = array<i64: 1, 256>}, {pipeline_mode = #tpu.pipeline_mode<synchronous>, transform_indices = @transform_3, window_bounds = array<i64: 256, 128>}, {pipeline_mode = #tpu.pipeline_mode<synchronous>, transform_indices = @transform_4, window_bounds = array<i64: 1, 128>}, {pipeline_mode = #tpu.pipeline_mode<synchronous>, transform_indices = @transform_5, window_bounds = array<i64: 1, 128>}, {pipeline_mode = #tpu.pipeline_mode<synchronous>, transform_indices = @transform_6, window_bounds = array<i64: 1, 128>}, {pipeline_mode = #tpu.pipeline_mode<synchronous>, transform_indices = @transform_7, window_bounds = array<i64: 128, 256>}, {pipeline_mode = #tpu.pipeline_mode<synchronous>, transform_indices = @transform_8, window_bounds = array<i64: 1, 256>}, {pipeline_mode = #tpu.pipeline_mode<synchronous>, transform_indices = @transform_9, window_bounds = array<i64: 256, 128>}, {pipeline_mode = #tpu.pipeline_mode<synchronous>, transform_indices = @transform_10, window_bounds = array<i64: 1, 128>}, {pipeline_mode = #tpu.pipeline_mode<synchronous>, transform_indices = @transform_11, window_bounds = array<i64: 1, 128>}, {pipeline_mode = #tpu.pipeline_mode<synchronous>, transform_indices = @transform_12, window_bounds = array<i64: 1, 128>}, {transform_indices = @transform_13, window_bounds = array<i64: 32, 128>}]} {
    %c0 = arith.constant 0 : index
    %c0_0 = arith.constant 0 : index
    %0 = vector.load %arg1[%c0, %c0_0] : memref<32x128xbf16, #tpu.memory_space<vmem>>, vector<32x128xbf16>
    %1 = arith.extf %0 : vector<32x128xbf16> to vector<32x128xf32>
    %c0_1 = arith.constant 0 : index
    %c0_2 = arith.constant 0 : index
    %2 = vector.load %arg1[%c0_1, %c0_2] : memref<32x128xbf16, #tpu.memory_space<vmem>>, vector<32x128xbf16>
    %c0_3 = arith.constant 0 : index
    %c0_4 = arith.constant 0 : index
    %3 = vector.load %arg2[%c0_3, %c0_4] : memref<128x256xbf16, #tpu.memory_space<vmem>>, vector<128x256xbf16>
    %cst = arith.constant dense<0.000000e+00> : vector<32x256xf32>
    %4 = tpu.matmul %2, %3, %cst {dimension_numbers = #tpu.dot_dimension_numbers<[1], [0], [0], [1], [0, 0, 1, 1], [], []>} : vector<32x128xbf16>, vector<128x256xbf16>, vector<32x256xf32> -> vector<32x256xf32>
    %c0_5 = arith.constant 0 : index
    %c0_6 = arith.constant 0 : index
    %5 = vector.load %arg3[%c0_5, %c0_6] : memref<1x256xf32, #tpu.memory_space<vmem>>, vector<1x256xf32>
    %6 = vector.broadcast %5 : vector<1x256xf32> to vector<32x256xf32>
    %7 = arith.addf %4, %6 : vector<32x256xf32>
    %8 = arith.mulf %7, %7 : vector<32x256xf32>
    %9 = arith.mulf %7, %8 : vector<32x256xf32>
    %cst_7 = arith.constant 4.471500e-02 : f32
    %10 = vector.broadcast %cst_7 : f32 to vector<32x256xf32>
    %11 = arith.mulf %10, %9 : vector<32x256xf32>
    %12 = arith.addf %7, %11 : vector<32x256xf32>
    %cst_8 = arith.constant 0.797884583 : f32
    %13 = vector.broadcast %cst_8 : f32 to vector<32x256xf32>
    %14 = arith.mulf %13, %12 : vector<32x256xf32>
    %15 = math.tanh %14 : vector<32x256xf32>
    %cst_9 = arith.constant 1.000000e+00 : f32
    %16 = vector.broadcast %cst_9 : f32 to vector<32x256xf32>
    %17 = arith.addf %16, %15 : vector<32x256xf32>
    %cst_10 = arith.constant 5.000000e-01 : f32
    %18 = vector.broadcast %cst_10 : f32 to vector<32x256xf32>
    %19 = arith.mulf %18, %17 : vector<32x256xf32>
    %20 = arith.mulf %7, %19 : vector<32x256xf32>
    %21 = arith.truncf %20 : vector<32x256xf32> to vector<32x256xbf16>
    %c0_11 = arith.constant 0 : index
    %c0_12 = arith.constant 0 : index
    %22 = vector.load %arg4[%c0_11, %c0_12] : memref<256x128xbf16, #tpu.memory_space<vmem>>, vector<256x128xbf16>
    %cst_13 = arith.constant dense<0.000000e+00> : vector<32x128xf32>
    %23 = tpu.matmul %21, %22, %cst_13 {dimension_numbers = #tpu.dot_dimension_numbers<[1], [0], [0], [1], [0, 0, 1, 1], [], []>} : vector<32x256xbf16>, vector<256x128xbf16>, vector<32x128xf32> -> vector<32x128xf32>
    %c0_14 = arith.constant 0 : index
    %c0_15 = arith.constant 0 : index
    %24 = vector.load %arg5[%c0_14, %c0_15] : memref<1x128xf32, #tpu.memory_space<vmem>>, vector<1x128xf32>
    %25 = vector.broadcast %24 : vector<1x128xf32> to vector<32x128xf32>
    %26 = arith.addf %23, %25 : vector<32x128xf32>
    %27 = arith.addf %1, %26 : vector<32x128xf32>
    %c0_16 = arith.constant 0 : index
    %c0_17 = arith.constant 0 : index
    %28 = vector.load %arg6[%c0_16, %c0_17] : memref<1x128xf32, #tpu.memory_space<vmem>>, vector<1x128xf32>
    %29 = vector.broadcast %28 : vector<1x128xf32> to vector<32x128xf32>
    %30 = arith.mulf %27, %29 : vector<32x128xf32>
    %c0_18 = arith.constant 0 : index
    %c0_19 = arith.constant 0 : index
    %31 = vector.load %arg7[%c0_18, %c0_19] : memref<1x128xf32, #tpu.memory_space<vmem>>, vector<1x128xf32>
    %32 = vector.broadcast %31 : vector<1x128xf32> to vector<32x128xf32>
    %33 = arith.addf %30, %32 : vector<32x128xf32>
    %34 = arith.truncf %33 : vector<32x128xf32> to vector<32x128xbf16>
    %c0_20 = arith.constant 0 : index
    %c0_21 = arith.constant 0 : index
    %35 = vector.load %arg8[%c0_20, %c0_21] : memref<128x256xbf16, #tpu.memory_space<vmem>>, vector<128x256xbf16>
    %cst_22 = arith.constant dense<0.000000e+00> : vector<32x256xf32>
    %36 = tpu.matmul %34, %35, %cst_22 {dimension_numbers = #tpu.dot_dimension_numbers<[1], [0], [0], [1], [0, 0, 1, 1], [], []>} : vector<32x128xbf16>, vector<128x256xbf16>, vector<32x256xf32> -> vector<32x256xf32>
    %c0_23 = arith.constant 0 : index
    %c0_24 = arith.constant 0 : index
    %37 = vector.load %arg9[%c0_23, %c0_24] : memref<1x256xf32, #tpu.memory_space<vmem>>, vector<1x256xf32>
    %38 = vector.broadcast %37 : vector<1x256xf32> to vector<32x256xf32>
    %39 = arith.addf %36, %38 : vector<32x256xf32>
    %40 = arith.mulf %39, %39 : vector<32x256xf32>
    %41 = arith.mulf %39, %40 : vector<32x256xf32>
    %cst_25 = arith.constant 4.471500e-02 : f32
    %42 = vector.broadcast %cst_25 : f32 to vector<32x256xf32>
    %43 = arith.mulf %42, %41 : vector<32x256xf32>
    %44 = arith.addf %39, %43 : vector<32x256xf32>
    %cst_26 = arith.constant 0.797884583 : f32
    %45 = vector.broadcast %cst_26 : f32 to vector<32x256xf32>
    %46 = arith.mulf %45, %44 : vector<32x256xf32>
    %47 = math.tanh %46 : vector<32x256xf32>
    %cst_27 = arith.constant 1.000000e+00 : f32
    %48 = vector.broadcast %cst_27 : f32 to vector<32x256xf32>
    %49 = arith.addf %48, %47 : vector<32x256xf32>
    %cst_28 = arith.constant 5.000000e-01 : f32
    %50 = vector.broadcast %cst_28 : f32 to vector<32x256xf32>
    %51 = arith.mulf %50, %49 : vector<32x256xf32>
    %52 = arith.mulf %39, %51 : vector<32x256xf32>
    %53 = arith.truncf %52 : vector<32x256xf32> to vector<32x256xbf16>
    %c0_29 = arith.constant 0 : index
    %c0_30 = arith.constant 0 : index
    %54 = vector.load %arg10[%c0_29, %c0_30] : memref<256x128xbf16, #tpu.memory_space<vmem>>, vector<256x128xbf16>
    %cst_31 = arith.constant dense<0.000000e+00> : vector<32x128xf32>
    %55 = tpu.matmul %53, %54, %cst_31 {dimension_numbers = #tpu.dot_dimension_numbers<[1], [0], [0], [1], [0, 0, 1, 1], [], []>} : vector<32x256xbf16>, vector<256x128xbf16>, vector<32x128xf32> -> vector<32x128xf32>
    %c0_32 = arith.constant 0 : index
    %c0_33 = arith.constant 0 : index
    %56 = vector.load %arg11[%c0_32, %c0_33] : memref<1x128xf32, #tpu.memory_space<vmem>>, vector<1x128xf32>
    %57 = vector.broadcast %56 : vector<1x128xf32> to vector<32x128xf32>
    %58 = arith.addf %55, %57 : vector<32x128xf32>
    %59 = arith.addf %33, %58 : vector<32x128xf32>
    %c0_34 = arith.constant 0 : index
    %c0_35 = arith.constant 0 : index
    %60 = vector.load %arg12[%c0_34, %c0_35] : memref<1x128xf32, #tpu.memory_space<vmem>>, vector<1x128xf32>
    %61 = vector.broadcast %60 : vector<1x128xf32> to vector<32x128xf32>
    %62 = arith.mulf %59, %61 : vector<32x128xf32>
    %c0_36 = arith.constant 0 : index
    %c0_37 = arith.constant 0 : index
    %63 = vector.load %arg13[%c0_36, %c0_37] : memref<1x128xf32, #tpu.memory_space<vmem>>, vector<1x128xf32>
    %64 = vector.broadcast %63 : vector<1x128xf32> to vector<32x128xf32>
    %65 = arith.addf %62, %64 : vector<32x128xf32>
    %66 = arith.truncf %65 : vector<32x128xf32> to vector<32x128xbf16>
    %c0_38 = arith.constant 0 : index
    %c0_39 = arith.constant 0 : index
    %67 = vector.load %arg14[%c0_38, %c0_39] : memref<32x128xbf16, #tpu.memory_space<vmem>>, vector<32x128xbf16>
    tpu.vector_store %arg14[%c0_38, %c0_39], %66 {strides = array<i32>} : memref<32x128xbf16, #tpu.memory_space<vmem>>, vector<32x128xbf16>,
    return
  }
  func.func @transform_0(%arg0: i32) -> (i32, i32) {
    %c0_i32 = arith.constant 0 : i32
    %c0_i32_0 = arith.constant 0 : i32
    return %arg0, %c0_i32 : i32, i32
  }
  func.func @transform_1(%arg0: i32) -> (i32, i32) {
    %c0_i32 = arith.constant 0 : i32
    %c0_i32_0 = arith.constant 0 : i32
    %c0_i32_1 = arith.constant 0 : i32
    return %c0_i32, %c0_i32_0 : i32, i32
  }
  func.func @transform_2(%arg0: i32) -> (i32, i32) {
    %c0_i32 = arith.constant 0 : i32
    %c0_i32_0 = arith.constant 0 : i32
    %c0_i32_1 = arith.constant 0 : i32
    return %c0_i32, %c0_i32_0 : i32, i32
  }
  func.func @transform_3(%arg0: i32) -> (i32, i32) {
    %c0_i32 = arith.constant 0 : i32
    %c0_i32_0 = arith.constant 0 : i32
    %c0_i32_1 = arith.constant 0 : i32
    return %c0_i32, %c0_i32_0 : i32, i32
  }
  func.func @transform_4(%arg0: i32) -> (i32, i32) {
    %c0_i32 = arith.constant 0 : i32
    %c0_i32_0 = arith.constant 0 : i32
    %c0_i32_1 = arith.constant 0 : i32
    return %c0_i32, %c0_i32_0 : i32, i32
  }
  func.func @transform_5(%arg0: i32) -> (i32, i32) {
    %c0_i32 = arith.constant 0 : i32
    %c0_i32_0 = arith.constant 0 : i32
    %c0_i32_1 = arith.constant 0 : i32
    return %c0_i32, %c0_i32_0 : i32, i32
  }
  func.func @transform_6(%arg0: i32) -> (i32, i32) {
    %c0_i32 = arith.constant 0 : i32
    %c0_i32_0 = arith.constant 0 : i32
    %c0_i32_1 = arith.constant 0 : i32
    return %c0_i32, %c0_i32_0 : i32, i32
  }
  func.func @transform_7(%arg0: i32) -> (i32, i32) {
    %c0_i32 = arith.constant 0 : i32
    %c0_i32_0 = arith.constant 0 : i32
    %c0_i32_1 = arith.constant 0 : i32
    return %c0_i32, %c0_i32_0 : i32, i32
  }
  func.func @transform_8(%arg0: i32) -> (i32, i32) {
    %c0_i32 = arith.constant 0 : i32
    %c0_i32_0 = arith.constant 0 : i32
    %c0_i32_1 = arith.constant 0 : i32
    return %c0_i32, %c0_i32_0 : i32, i32
  }
  func.func @transform_9(%arg0: i32) -> (i32, i32) {
    %c0_i32 = arith.constant 0 : i32
    %c0_i32_0 = arith.constant 0 : i32
    %c0_i32_1 = arith.constant 0 : i32
    return %c0_i32, %c0_i32_0 : i32, i32
  }
  func.func @transform_10(%arg0: i32) -> (i32, i32) {
    %c0_i32 = arith.constant 0 : i32
    %c0_i32_0 = arith.constant 0 : i32
    %c0_i32_1 = arith.constant 0 : i32
    return %c0_i32, %c0_i32_0 : i32, i32
  }
  func.func @transform_11(%arg0: i32) -> (i32, i32) {
    %c0_i32 = arith.constant 0 : i32
    %c0_i32_0 = arith.constant 0 : i32
    %c0_i32_1 = arith.constant 0 : i32
    return %c0_i32, %c0_i32_0 : i32, i32
  }
  func.func @transform_12(%arg0: i32) -> (i32, i32) {
    %c0_i32 = arith.constant 0 : i32
    %c0_i32_0 = arith.constant 0 : i32
    %c0_i32_1 = arith.constant 0 : i32
    return %c0_i32, %c0_i32_0 : i32, i32
  }
  func.func @transform_13(%arg0: i32) -> (i32, i32) {
    %c0_i32 = arith.constant 0 : i32
    %c0_i32_0 = arith.constant 0 : i32
    return %arg0, %c0_i32 : i32, i32
  }
}

module attributes {stable_mosaic.version = 11 : i64} {
  func.func @_conv_block_kernel(%arg0: i32, %arg1: memref<1x16x128xbf16, #tpu.memory_space<vmem>>, %arg2: memref<384x128xbf16, #tpu.memory_space<vmem>>, %arg3: memref<1x128xf32, #tpu.memory_space<vmem>>, %arg4: memref<1x128xf32, #tpu.memory_space<vmem>>, %arg5: memref<1x128xf32, #tpu.memory_space<vmem>>, %arg6: memref<1x128xf32, #tpu.memory_space<vmem>>, %arg7: memref<1x128xf32, #tpu.memory_space<vmem>>, %arg8: memref<1x16x128xbf16, #tpu.memory_space<vmem>>, %arg9: memref<18x128xf32, #tpu.memory_space<vmem>>) attributes {dimension_semantics = [#tpu.dimension_semantics<parallel>], iteration_bounds = array<i64: 2>, scalar_prefetch = 0 : i64, scratch_operands = 1 : i64, tpu.core_type = #tpu.core_type<tc>, window_params = [{transform_indices = @transform_0, window_bounds = array<i64: 1, 16, 128>}, {pipeline_mode = #tpu.pipeline_mode<synchronous>, transform_indices = @transform_1, window_bounds = array<i64: 384, 128>}, {pipeline_mode = #tpu.pipeline_mode<synchronous>, transform_indices = @transform_2, window_bounds = array<i64: 1, 128>}, {pipeline_mode = #tpu.pipeline_mode<synchronous>, transform_indices = @transform_3, window_bounds = array<i64: 1, 128>}, {pipeline_mode = #tpu.pipeline_mode<synchronous>, transform_indices = @transform_4, window_bounds = array<i64: 1, 128>}, {pipeline_mode = #tpu.pipeline_mode<synchronous>, transform_indices = @transform_5, window_bounds = array<i64: 1, 128>}, {pipeline_mode = #tpu.pipeline_mode<synchronous>, transform_indices = @transform_6, window_bounds = array<i64: 1, 128>}, {transform_indices = @transform_7, window_bounds = array<i64: 1, 16, 128>}]} {
    %c0 = arith.constant 0 : index
    %c0_0 = arith.constant 0 : index
    %c0_1 = arith.constant 0 : index
    %0 = vector.load %arg1[%c0, %c0_0, %c0_1] : memref<1x16x128xbf16, #tpu.memory_space<vmem>>, vector<1x16x128xbf16>
    %1 = vector.shape_cast %0 : vector<1x16x128xbf16> to vector<16x128xbf16>
    %cst = arith.constant 0.000000e+00 : f32
    %2 = vector.broadcast %cst : f32 to vector<1x128xf32>
    %c0_2 = arith.constant 0 : index
    %c0_3 = arith.constant 0 : index
    %3 = vector.load %arg9[%c0_2, %c0_3] : memref<18x128xf32, #tpu.memory_space<vmem>>, vector<1x128xf32>
    tpu.vector_store %arg9[%c0_2, %c0_3], %2 {strides = array<i32>} : memref<18x128xf32, #tpu.memory_space<vmem>>, vector<1x128xf32>,
    %4 = arith.extf %1 : vector<16x128xbf16> to vector<16x128xf32>
    %c1 = arith.constant 1 : index
    %c0_4 = arith.constant 0 : index
    %5 = vector.load %arg9[%c1, %c0_4] : memref<18x128xf32, #tpu.memory_space<vmem>>, vector<16x128xf32>
    tpu.vector_store %arg9[%c1, %c0_4], %4 {strides = array<i32>} : memref<18x128xf32, #tpu.memory_space<vmem>>, vector<16x128xf32>,
    %cst_5 = arith.constant 0.000000e+00 : f32
    %6 = vector.broadcast %cst_5 : f32 to vector<1x128xf32>
    %c17 = arith.constant 17 : index
    %c0_6 = arith.constant 0 : index
    %7 = vector.load %arg9[%c17, %c0_6] : memref<18x128xf32, #tpu.memory_space<vmem>>, vector<1x128xf32>
    tpu.vector_store %arg9[%c17, %c0_6], %6 {strides = array<i32>} : memref<18x128xf32, #tpu.memory_space<vmem>>, vector<1x128xf32>,
    %c0_7 = arith.constant 0 : index
    %c0_8 = arith.constant 0 : index
    %8 = vector.load %arg9[%c0_7, %c0_8] : memref<18x128xf32, #tpu.memory_space<vmem>>, vector<16x128xf32>
    %c1_9 = arith.constant 1 : index
    %c0_10 = arith.constant 0 : index
    %9 = vector.load %arg9[%c1_9, %c0_10] : memref<18x128xf32, #tpu.memory_space<vmem>>, vector<16x128xf32>
    %c2 = arith.constant 2 : index
    %c0_11 = arith.constant 0 : index
    %10 = vector.load %arg9[%c2, %c0_11] : memref<18x128xf32, #tpu.memory_space<vmem>>, vector<16x128xf32>
    %11 = tpu.concatenate %8, %9, %10 in 1 : vector<16x128xf32>, vector<16x128xf32>, vector<16x128xf32> -> vector<16x384xf32>
    %12 = arith.truncf %11 : vector<16x384xf32> to vector<16x384xbf16>
    %c0_12 = arith.constant 0 : index
    %c0_13 = arith.constant 0 : index
    %13 = vector.load %arg2[%c0_12, %c0_13] : memref<384x128xbf16, #tpu.memory_space<vmem>>, vector<384x128xbf16>
    %cst_14 = arith.constant dense<0.000000e+00> : vector<16x128xf32>
    %14 = tpu.matmul %12, %13, %cst_14 {dimension_numbers = #tpu.dot_dimension_numbers<[1], [0], [0], [1], [0, 0, 1, 1], [], []>} : vector<16x384xbf16>, vector<384x128xbf16>, vector<16x128xf32> -> vector<16x128xf32>
    %c0_15 = arith.constant 0 : index
    %c0_16 = arith.constant 0 : index
    %15 = vector.load %arg3[%c0_15, %c0_16] : memref<1x128xf32, #tpu.memory_space<vmem>>, vector<1x128xf32>
    %16 = vector.broadcast %15 : vector<1x128xf32> to vector<16x128xf32>
    %17 = arith.addf %14, %16 : vector<16x128xf32>
    %18 = arith.extf %1 : vector<16x128xbf16> to vector<16x128xf32>
    %19 = arith.addf %18, %17 : vector<16x128xf32>
    %c0_17 = arith.constant 0 : index
    %c0_18 = arith.constant 0 : index
    %20 = vector.load %arg4[%c0_17, %c0_18] : memref<1x128xf32, #tpu.memory_space<vmem>>, vector<1x128xf32>
    %21 = vector.broadcast %20 : vector<1x128xf32> to vector<16x128xf32>
    %22 = arith.mulf %19, %21 : vector<16x128xf32>
    %c0_19 = arith.constant 0 : index
    %c0_20 = arith.constant 0 : index
    %23 = vector.load %arg5[%c0_19, %c0_20] : memref<1x128xf32, #tpu.memory_space<vmem>>, vector<1x128xf32>
    %24 = vector.broadcast %23 : vector<1x128xf32> to vector<16x128xf32>
    %25 = arith.addf %22, %24 : vector<16x128xf32>
    %26 = arith.addf %18, %25 : vector<16x128xf32>
    %c0_21 = arith.constant 0 : index
    %c0_22 = arith.constant 0 : index
    %27 = vector.load %arg6[%c0_21, %c0_22] : memref<1x128xf32, #tpu.memory_space<vmem>>, vector<1x128xf32>
    %28 = vector.broadcast %27 : vector<1x128xf32> to vector<16x128xf32>
    %29 = arith.mulf %26, %28 : vector<16x128xf32>
    %c0_23 = arith.constant 0 : index
    %c0_24 = arith.constant 0 : index
    %30 = vector.load %arg7[%c0_23, %c0_24] : memref<1x128xf32, #tpu.memory_space<vmem>>, vector<1x128xf32>
    %31 = vector.broadcast %30 : vector<1x128xf32> to vector<16x128xf32>
    %32 = arith.addf %29, %31 : vector<16x128xf32>
    %33 = arith.truncf %32 : vector<16x128xf32> to vector<16x128xbf16>
    %c0_25 = arith.constant 0 : index
    %c0_26 = arith.constant 0 : index
    %c0_27 = arith.constant 0 : index
    %34 = vector.load %arg8[%c0_25, %c0_26, %c0_27] : memref<1x16x128xbf16, #tpu.memory_space<vmem>>, vector<1x16x128xbf16>
    %35 = vector.shape_cast %34 : vector<1x16x128xbf16> to vector<16x128xbf16>
    %36 = vector.shape_cast %33 : vector<16x128xbf16> to vector<1x16x128xbf16>
    tpu.vector_store %arg8[%c0_25, %c0_26, %c0_27], %36 {strides = array<i32>} : memref<1x16x128xbf16, #tpu.memory_space<vmem>>, vector<1x16x128xbf16>,
    return
  }
  func.func @transform_0(%arg0: i32) -> (i32, i32, i32) {
    %c0_i32 = arith.constant 0 : i32
    %c0_i32_0 = arith.constant 0 : i32
    %c0_i32_1 = arith.constant 0 : i32
    return %arg0, %c0_i32, %c0_i32_0 : i32, i32, i32
  }
  func.func @transform_1(%arg0: i32) -> (i32, i32) {
    %c0_i32 = arith.constant 0 : i32
    %c0_i32_0 = arith.constant 0 : i32
    %c0_i32_1 = arith.constant 0 : i32
    return %c0_i32, %c0_i32_0 : i32, i32
  }
  func.func @transform_2(%arg0: i32) -> (i32, i32) {
    %c0_i32 = arith.constant 0 : i32
    %c0_i32_0 = arith.constant 0 : i32
    %c0_i32_1 = arith.constant 0 : i32
    return %c0_i32, %c0_i32_0 : i32, i32
  }
  func.func @transform_3(%arg0: i32) -> (i32, i32) {
    %c0_i32 = arith.constant 0 : i32
    %c0_i32_0 = arith.constant 0 : i32
    %c0_i32_1 = arith.constant 0 : i32
    return %c0_i32, %c0_i32_0 : i32, i32
  }
  func.func @transform_4(%arg0: i32) -> (i32, i32) {
    %c0_i32 = arith.constant 0 : i32
    %c0_i32_0 = arith.constant 0 : i32
    %c0_i32_1 = arith.constant 0 : i32
    return %c0_i32, %c0_i32_0 : i32, i32
  }
  func.func @transform_5(%arg0: i32) -> (i32, i32) {
    %c0_i32 = arith.constant 0 : i32
    %c0_i32_0 = arith.constant 0 : i32
    %c0_i32_1 = arith.constant 0 : i32
    return %c0_i32, %c0_i32_0 : i32, i32
  }
  func.func @transform_6(%arg0: i32) -> (i32, i32) {
    %c0_i32 = arith.constant 0 : i32
    %c0_i32_0 = arith.constant 0 : i32
    %c0_i32_1 = arith.constant 0 : i32
    return %c0_i32, %c0_i32_0 : i32, i32
  }
  func.func @transform_7(%arg0: i32) -> (i32, i32, i32) {
    %c0_i32 = arith.constant 0 : i32
    %c0_i32_0 = arith.constant 0 : i32
    %c0_i32_1 = arith.constant 0 : i32
    return %arg0, %c0_i32, %c0_i32_0 : i32, i32, i32
  }
}

module attributes {stable_mosaic.version = 11 : i64} {
  func.func @_mamba_block_kernel(%arg0: i32, %arg1: memref<1x16x128xbf16, #tpu.memory_space<vmem>>, %arg2: memref<128x512xbf16, #tpu.memory_space<vmem>>, %arg3: memref<4x256xf32, #tpu.memory_space<vmem>>, %arg4: memref<1x256xf32, #tpu.memory_space<vmem>>, %arg5: memref<256x24xbf16, #tpu.memory_space<vmem>>, %arg6: memref<8x256xbf16, #tpu.memory_space<vmem>>, %arg7: memref<1x256xf32, #tpu.memory_space<vmem>>, %arg8: memref<8x256xf32, #tpu.memory_space<vmem>>, %arg9: memref<1x256xf32, #tpu.memory_space<vmem>>, %arg10: memref<256x128xbf16, #tpu.memory_space<vmem>>, %arg11: memref<1x128xf32, #tpu.memory_space<vmem>>, %arg12: memref<1x128xf32, #tpu.memory_space<vmem>>, %arg13: memref<1x16x128xf32, #tpu.memory_space<vmem>>, %arg14: memref<19x256xf32, #tpu.memory_space<vmem>>, %arg15: memref<16x256xf32, #tpu.memory_space<vmem>>, %arg16: memref<16x256xf32, #tpu.memory_space<vmem>>, %arg17: memref<16x256xf32, #tpu.memory_space<vmem>>, %arg18: memref<16x8xf32, #tpu.memory_space<vmem>>, %arg19: memref<16x8xf32, #tpu.memory_space<vmem>>, %arg20: memref<8x256xf32, #tpu.memory_space<vmem>>, %arg21: memref<16x256xbf16, #tpu.memory_space<vmem>>) attributes {dimension_semantics = [#tpu.dimension_semantics<parallel>], iteration_bounds = array<i64: 2>, scalar_prefetch = 0 : i64, scratch_operands = 8 : i64, tpu.core_type = #tpu.core_type<tc>, window_params = [{transform_indices = @transform_0, window_bounds = array<i64: 1, 16, 128>}, {pipeline_mode = #tpu.pipeline_mode<synchronous>, transform_indices = @transform_1, window_bounds = array<i64: 128, 512>}, {pipeline_mode = #tpu.pipeline_mode<synchronous>, transform_indices = @transform_2, window_bounds = array<i64: 4, 256>}, {pipeline_mode = #tpu.pipeline_mode<synchronous>, transform_indices = @transform_3, window_bounds = array<i64: 1, 256>}, {pipeline_mode = #tpu.pipeline_mode<synchronous>, transform_indices = @transform_4, window_bounds = array<i64: 256, 24>}, {pipeline_mode = #tpu.pipeline_mode<synchronous>, transform_indices = @transform_5, window_bounds = array<i64: 8, 256>}, {pipeline_mode = #tpu.pipeline_mode<synchronous>, transform_indices = @transform_6, window_bounds = array<i64: 1, 256>}, {pipeline_mode = #tpu.pipeline_mode<synchronous>, transform_indices = @transform_7, window_bounds = array<i64: 8, 256>}, {pipeline_mode = #tpu.pipeline_mode<synchronous>, transform_indices = @transform_8, window_bounds = array<i64: 1, 256>}, {pipeline_mode = #tpu.pipeline_mode<synchronous>, transform_indices = @transform_9, window_bounds = array<i64: 256, 128>}, {pipeline_mode = #tpu.pipeline_mode<synchronous>, transform_indices = @transform_10, window_bounds = array<i64: 1, 128>}, {pipeline_mode = #tpu.pipeline_mode<synchronous>, transform_indices = @transform_11, window_bounds = array<i64: 1, 128>}, {transform_indices = @transform_12, window_bounds = array<i64: 1, 16, 128>}]} {
    %c0 = arith.constant 0 : index
    %c0_0 = arith.constant 0 : index
    %c0_1 = arith.constant 0 : index
    %0 = vector.load %arg1[%c0, %c0_0, %c0_1] : memref<1x16x128xbf16, #tpu.memory_space<vmem>>, vector<1x16x128xbf16>
    %1 = vector.shape_cast %0 : vector<1x16x128xbf16> to vector<16x128xbf16>
    %c0_2 = arith.constant 0 : index
    %c0_3 = arith.constant 0 : index
    %2 = vector.load %arg2[%c0_2, %c0_3] : memref<128x512xbf16, #tpu.memory_space<vmem>>, vector<128x512xbf16>
    %cst = arith.constant dense<0.000000e+00> : vector<16x512xf32>
    %3 = tpu.matmul %1, %2, %cst {dimension_numbers = #tpu.dot_dimension_numbers<[1], [0], [0], [1], [0, 0, 1, 1], [], []>} : vector<16x128xbf16>, vector<128x512xbf16>, vector<16x512xf32> -> vector<16x512xf32>
    %4 = vector.extract_strided_slice %3 {offsets = [0, 256], sizes = [16, 256], strides = [1, 1]} : vector<16x512xf32> to vector<16x256xf32>
    %c0_4 = arith.constant 0 : index
    %c0_5 = arith.constant 0 : index
    %5 = vector.load %arg15[%c0_4, %c0_5] : memref<16x256xf32, #tpu.memory_space<vmem>>, vector<16x256xf32>
    tpu.vector_store %arg15[%c0_4, %c0_5], %4 {strides = array<i32>} : memref<16x256xf32, #tpu.memory_space<vmem>>, vector<16x256xf32>,
    %cst_6 = arith.constant 0.000000e+00 : f32
    %6 = vector.broadcast %cst_6 : f32 to vector<3x256xf32>
    %c0_7 = arith.constant 0 : index
    %c0_8 = arith.constant 0 : index
    %7 = vector.load %arg14[%c0_7, %c0_8] : memref<19x256xf32, #tpu.memory_space<vmem>>, vector<3x256xf32>
    tpu.vector_store %arg14[%c0_7, %c0_8], %6 {strides = array<i32>} : memref<19x256xf32, #tpu.memory_space<vmem>>, vector<3x256xf32>,
    %8 = vector.extract_strided_slice %3 {offsets = [0, 0], sizes = [16, 256], strides = [1, 1]} : vector<16x512xf32> to vector<16x256xf32>
    %c3 = arith.constant 3 : index
    %c0_9 = arith.constant 0 : index
    %9 = vector.load %arg14[%c3, %c0_9] : memref<19x256xf32, #tpu.memory_space<vmem>>, vector<16x256xf32>
    tpu.vector_store %arg14[%c3, %c0_9], %8 {strides = array<i32>} : memref<19x256xf32, #tpu.memory_space<vmem>>, vector<16x256xf32>,
    %c0_10 = arith.constant 0 : index
    %c0_11 = arith.constant 0 : index
    %10 = vector.load %arg4[%c0_10, %c0_11] : memref<1x256xf32, #tpu.memory_space<vmem>>, vector<1x256xf32>
    %c0_12 = arith.constant 0 : index
    %c0_13 = arith.constant 0 : index
    %11 = vector.load %arg14[%c0_12, %c0_13] : memref<19x256xf32, #tpu.memory_space<vmem>>, vector<16x256xf32>
    %c0_14 = arith.constant 0 : index
    %c0_15 = arith.constant 0 : index
    %12 = vector.load %arg3[%c0_14, %c0_15] : memref<4x256xf32, #tpu.memory_space<vmem>>, vector<1x256xf32>
    %13 = vector.broadcast %12 : vector<1x256xf32> to vector<16x256xf32>
    %14 = arith.mulf %11, %13 : vector<16x256xf32>
    %15 = vector.broadcast %10 : vector<1x256xf32> to vector<16x256xf32>
    %16 = arith.addf %15, %14 : vector<16x256xf32>
    %c1 = arith.constant 1 : index
    %c0_16 = arith.constant 0 : index
    %17 = vector.load %arg14[%c1, %c0_16] : memref<19x256xf32, #tpu.memory_space<vmem>>, vector<16x256xf32>
    %c1_17 = arith.constant 1 : index
    %c0_18 = arith.constant 0 : index
    %18 = vector.load %arg3[%c1_17, %c0_18] : memref<4x256xf32, #tpu.memory_space<vmem>>, vector<1x256xf32>
    %19 = vector.broadcast %18 : vector<1x256xf32> to vector<16x256xf32>
    %20 = arith.mulf %17, %19 : vector<16x256xf32>
    %21 = arith.addf %16, %20 : vector<16x256xf32>
    %c2 = arith.constant 2 : index
    %c0_19 = arith.constant 0 : index
    %22 = vector.load %arg14[%c2, %c0_19] : memref<19x256xf32, #tpu.memory_space<vmem>>, vector<16x256xf32>
    %c2_20 = arith.constant 2 : index
    %c0_21 = arith.constant 0 : index
    %23 = vector.load %arg3[%c2_20, %c0_21] : memref<4x256xf32, #tpu.memory_space<vmem>>, vector<1x256xf32>
    %24 = vector.broadcast %23 : vector<1x256xf32> to vector<16x256xf32>
    %25 = arith.mulf %22, %24 : vector<16x256xf32>
    %26 = arith.addf %21, %25 : vector<16x256xf32>
    %c3_22 = arith.constant 3 : index
    %c0_23 = arith.constant 0 : index
    %27 = vector.load %arg14[%c3_22, %c0_23] : memref<19x256xf32, #tpu.memory_space<vmem>>, vector<16x256xf32>
    %c3_24 = arith.constant 3 : index
    %c0_25 = arith.constant 0 : index
    %28 = vector.load %arg3[%c3_24, %c0_25] : memref<4x256xf32, #tpu.memory_space<vmem>>, vector<1x256xf32>
    %29 = vector.broadcast %28 : vector<1x256xf32> to vector<16x256xf32>
    %30 = arith.mulf %27, %29 : vector<16x256xf32>
    %31 = arith.addf %26, %30 : vector<16x256xf32>
    %32 = arith.negf %31 : vector<16x256xf32>
    %33 = math.exp %32 : vector<16x256xf32>
    %cst_26 = arith.constant 1.000000e+00 : f32
    %34 = vector.broadcast %cst_26 : f32 to vector<16x256xf32>
    %35 = arith.addf %34, %33 : vector<16x256xf32>
    %36 = arith.divf %34, %35 : vector<16x256xf32>
    %37 = arith.mulf %31, %36 : vector<16x256xf32>
    %c0_27 = arith.constant 0 : index
    %c0_28 = arith.constant 0 : index
    %38 = vector.load %arg16[%c0_27, %c0_28] : memref<16x256xf32, #tpu.memory_space<vmem>>, vector<16x256xf32>
    tpu.vector_store %arg16[%c0_27, %c0_28], %37 {strides = array<i32>} : memref<16x256xf32, #tpu.memory_space<vmem>>, vector<16x256xf32>,
    %39 = arith.truncf %37 : vector<16x256xf32> to vector<16x256xbf16>
    %c0_29 = arith.constant 0 : index
    %c0_30 = arith.constant 0 : index
    %40 = vector.load %arg5[%c0_29, %c0_30] : memref<256x24xbf16, #tpu.memory_space<vmem>>, vector<256x24xbf16>
    %cst_31 = arith.constant dense<0.000000e+00> : vector<16x24xf32>
    %41 = tpu.matmul %39, %40, %cst_31 {dimension_numbers = #tpu.dot_dimension_numbers<[1], [0], [0], [1], [0, 0, 1, 1], [], []>} : vector<16x256xbf16>, vector<256x24xbf16>, vector<16x24xf32> -> vector<16x24xf32>
    %42 = vector.extract_strided_slice %41 {offsets = [0, 8], sizes = [16, 8], strides = [1, 1]} : vector<16x24xf32> to vector<16x8xf32>
    %c0_32 = arith.constant 0 : index
    %c0_33 = arith.constant 0 : index
    %43 = vector.load %arg18[%c0_32, %c0_33] : memref<16x8xf32, #tpu.memory_space<vmem>>, vector<16x8xf32>
    tpu.vector_store %arg18[%c0_32, %c0_33], %42 {strides = array<i32>} : memref<16x8xf32, #tpu.memory_space<vmem>>, vector<16x8xf32>,
    %44 = vector.extract_strided_slice %41 {offsets = [0, 16], sizes = [16, 8], strides = [1, 1]} : vector<16x24xf32> to vector<16x8xf32>
    %c0_34 = arith.constant 0 : index
    %c0_35 = arith.constant 0 : index
    %45 = vector.load %arg19[%c0_34, %c0_35] : memref<16x8xf32, #tpu.memory_space<vmem>>, vector<16x8xf32>
    tpu.vector_store %arg19[%c0_34, %c0_35], %44 {strides = array<i32>} : memref<16x8xf32, #tpu.memory_space<vmem>>, vector<16x8xf32>,
    %46 = vector.extract_strided_slice %41 {offsets = [0, 0], sizes = [16, 8], strides = [1, 1]} : vector<16x24xf32> to vector<16x8xf32>
    %47 = arith.truncf %46 : vector<16x8xf32> to vector<16x8xbf16>
    %c0_36 = arith.constant 0 : index
    %c0_37 = arith.constant 0 : index
    %48 = vector.load %arg6[%c0_36, %c0_37] : memref<8x256xbf16, #tpu.memory_space<vmem>>, vector<8x256xbf16>
    %cst_38 = arith.constant dense<0.000000e+00> : vector<16x256xf32>
    %49 = tpu.matmul %47, %48, %cst_38 {dimension_numbers = #tpu.dot_dimension_numbers<[1], [0], [0], [1], [0, 0, 1, 1], [], []>} : vector<16x8xbf16>, vector<8x256xbf16>, vector<16x256xf32> -> vector<16x256xf32>
    %c0_39 = arith.constant 0 : index
    %c0_40 = arith.constant 0 : index
    %50 = vector.load %arg7[%c0_39, %c0_40] : memref<1x256xf32, #tpu.memory_space<vmem>>, vector<1x256xf32>
    %51 = vector.broadcast %50 : vector<1x256xf32> to vector<16x256xf32>
    %52 = arith.addf %49, %51 : vector<16x256xf32>
    %cst_41 = arith.constant 0.000000e+00 : f32
    %53 = vector.broadcast %cst_41 : f32 to vector<16x256xf32>
    %54 = arith.maximumf %52, %53 : vector<16x256xf32>
    %55 = math.absf %52 : vector<16x256xf32>
    %cst_42 = arith.constant 0.000000e+00 : f32
    %56 = vector.broadcast %cst_42 : f32 to vector<16x256xf32>
    %57 = arith.subf %56, %55 : vector<16x256xf32>
    %58 = math.exp %57 : vector<16x256xf32>
    %cst_43 = arith.constant 1.000000e+00 : f32
    %59 = vector.broadcast %cst_43 : f32 to vector<16x256xf32>
    %60 = arith.addf %59, %58 : vector<16x256xf32>
    %61 = math.log %60 : vector<16x256xf32>
    %62 = arith.addf %54, %61 : vector<16x256xf32>
    %c0_44 = arith.constant 0 : index
    %c0_45 = arith.constant 0 : index
    %63 = vector.load %arg17[%c0_44, %c0_45] : memref<16x256xf32, #tpu.memory_space<vmem>>, vector<16x256xf32>
    tpu.vector_store %arg17[%c0_44, %c0_45], %62 {strides = array<i32>} : memref<16x256xf32, #tpu.memory_space<vmem>>, vector<16x256xf32>,
    %c0_46 = arith.constant 0 : index
    %c0_47 = arith.constant 0 : index
    %64 = vector.load %arg8[%c0_46, %c0_47] : memref<8x256xf32, #tpu.memory_space<vmem>>, vector<8x256xf32>
    %c0_48 = arith.constant 0 : index
    %c0_49 = arith.constant 0 : index
    %65 = vector.load %arg9[%c0_48, %c0_49] : memref<1x256xf32, #tpu.memory_space<vmem>>, vector<1x256xf32>
    %cst_50 = arith.constant 0.000000e+00 : f32
    %66 = vector.broadcast %cst_50 : f32 to vector<8x256xf32>
    %c0_i32 = arith.constant 0 : i32
    %c2_i32 = arith.constant 2 : i32
    %67 = arith.addi %c0_i32, %c2_i32 : i32
    %c1_i32 = arith.constant 1 : i32
    %68 = scf.for %arg22 = %c0_i32 to %67 step %c1_i32 iter_args(%arg23 = %66) -> (vector<8x256xf32>)  : i32 {
      %c8_i32 = arith.constant 8 : i32
      %85 = arith.muli %arg22, %c8_i32 : i32
      %86 = tpu.assume_multiple %85, 8 : i32
      %87 = arith.index_cast %86 : i32 to index
      %c0_67 = arith.constant 0 : index
      %88 = vector.load %arg17[%87, %c0_67] : memref<16x256xf32, #tpu.memory_space<vmem>>, vector<8x256xf32>
      %89 = arith.index_cast %86 : i32 to index
      %c0_68 = arith.constant 0 : index
      %90 = vector.load %arg16[%89, %c0_68] : memref<16x256xf32, #tpu.memory_space<vmem>>, vector<8x256xf32>
      %91 = arith.index_cast %86 : i32 to index
      %c0_69 = arith.constant 0 : index
      %92 = vector.load %arg15[%91, %c0_69] : memref<16x256xf32, #tpu.memory_space<vmem>>, vector<8x256xf32>
      %93 = arith.index_cast %86 : i32 to index
      %c0_70 = arith.constant 0 : index
      %94 = vector.load %arg18[%93, %c0_70] : memref<16x8xf32, #tpu.memory_space<vmem>>, vector<8x8xf32>
      %95 = tpu.transpose %94, [1, 0] : vector<8x8xf32> -> vector<8x8xf32>
      %96 = arith.index_cast %86 : i32 to index
      %c0_71 = arith.constant 0 : index
      %97 = vector.load %arg19[%96, %c0_71] : memref<16x8xf32, #tpu.memory_space<vmem>>, vector<8x8xf32>
      %98 = tpu.transpose %97, [1, 0] : vector<8x8xf32> -> vector<8x8xf32>
      %99 = vector.shape_cast %88 : vector<8x256xf32> to vector<8x1x256xf32>
      %100 = vector.shape_cast %64 : vector<8x256xf32> to vector<1x8x256xf32>
      %101 = vector.broadcast %99 : vector<8x1x256xf32> to vector<8x8x256xf32>
      %102 = vector.broadcast %100 : vector<1x8x256xf32> to vector<8x8x256xf32>
      %103 = arith.mulf %101, %102 : vector<8x8x256xf32>
      %104 = math.exp %103 : vector<8x8x256xf32>
      %105 = arith.mulf %88, %90 : vector<8x256xf32>
      %106 = vector.extract_strided_slice %104 {offsets = [0, 0, 0], sizes = [1, 8, 256], strides = [1, 1, 1]} : vector<8x8x256xf32> to vector<1x8x256xf32>
      %107 = vector.shape_cast %106 : vector<1x8x256xf32> to vector<8x256xf32>
      %108 = arith.mulf %107, %arg23 : vector<8x256xf32>
      %109 = vector.extract_strided_slice %95 {offsets = [0, 0], sizes = [8, 1], strides = [1, 1]} : vector<8x8xf32> to vector<8x1xf32>
      %110 = vector.extract_strided_slice %105 {offsets = [0, 0], sizes = [1, 256], strides = [1, 1]} : vector<8x256xf32> to vector<1x256xf32>
      %111 = vector.broadcast %109 : vector<8x1xf32> to vector<8x256xf32>
      %112 = vector.broadcast %110 : vector<1x256xf32> to vector<8x256xf32>
      %113 = arith.mulf %111, %112 : vector<8x256xf32>
      %114 = arith.addf %108, %113 : vector<8x256xf32>
      %115 = vector.extract_strided_slice %98 {offsets = [0, 0], sizes = [8, 1], strides = [1, 1]} : vector<8x8xf32> to vector<8x1xf32>
      %116 = vector.broadcast %115 : vector<8x1xf32> to vector<8x256xf32>
      %117 = arith.mulf %116, %114 : vector<8x256xf32>
      %cst_72 = arith.constant dense<0.000000e+00> : vector<256xf32>
      %118 = vector.multi_reduction <add>, %117, %cst_72 [0] : vector<8x256xf32> to vector<256xf32>
      %119 = vector.shape_cast %118 : vector<256xf32> to vector<1x256xf32>
      %c0_73 = arith.constant 0 : index
      %c0_74 = arith.constant 0 : index
      %120 = vector.load %arg20[%c0_73, %c0_74] : memref<8x256xf32, #tpu.memory_space<vmem>>, vector<1x256xf32>
      tpu.vector_store %arg20[%c0_73, %c0_74], %119 {strides = array<i32>} : memref<8x256xf32, #tpu.memory_space<vmem>>, vector<1x256xf32>,
      %121 = vector.extract_strided_slice %104 {offsets = [1, 0, 0], sizes = [1, 8, 256], strides = [1, 1, 1]} : vector<8x8x256xf32> to vector<1x8x256xf32>
      %122 = vector.shape_cast %121 : vector<1x8x256xf32> to vector<8x256xf32>
      %123 = arith.mulf %122, %114 : vector<8x256xf32>
      %124 = vector.extract_strided_slice %95 {offsets = [0, 1], sizes = [8, 1], strides = [1, 1]} : vector<8x8xf32> to vector<8x1xf32>
      %125 = vector.extract_strided_slice %105 {offsets = [1, 0], sizes = [1, 256], strides = [1, 1]} : vector<8x256xf32> to vector<1x256xf32>
      %126 = vector.broadcast %124 : vector<8x1xf32> to vector<8x256xf32>
      %127 = vector.broadcast %125 : vector<1x256xf32> to vector<8x256xf32>
      %128 = arith.mulf %126, %127 : vector<8x256xf32>
      %129 = arith.addf %123, %128 : vector<8x256xf32>
      %130 = vector.extract_strided_slice %98 {offsets = [0, 1], sizes = [8, 1], strides = [1, 1]} : vector<8x8xf32> to vector<8x1xf32>
      %131 = vector.broadcast %130 : vector<8x1xf32> to vector<8x256xf32>
      %132 = arith.mulf %131, %129 : vector<8x256xf32>
      %cst_75 = arith.constant dense<0.000000e+00> : vector<256xf32>
      %133 = vector.multi_reduction <add>, %132, %cst_75 [0] : vector<8x256xf32> to vector<256xf32>
      %134 = vector.shape_cast %133 : vector<256xf32> to vector<1x256xf32>
      %c1_76 = arith.constant 1 : index
      %c0_77 = arith.constant 0 : index
      %135 = vector.load %arg20[%c1_76, %c0_77] : memref<8x256xf32, #tpu.memory_space<vmem>>, vector<1x256xf32>
      tpu.vector_store %arg20[%c1_76, %c0_77], %134 {strides = array<i32>} : memref<8x256xf32, #tpu.memory_space<vmem>>, vector<1x256xf32>,
      %136 = vector.extract_strided_slice %104 {offsets = [2, 0, 0], sizes = [1, 8, 256], strides = [1, 1, 1]} : vector<8x8x256xf32> to vector<1x8x256xf32>
      %137 = vector.shape_cast %136 : vector<1x8x256xf32> to vector<8x256xf32>
      %138 = arith.mulf %137, %129 : vector<8x256xf32>
      %139 = vector.extract_strided_slice %95 {offsets = [0, 2], sizes = [8, 1], strides = [1, 1]} : vector<8x8xf32> to vector<8x1xf32>
      %140 = vector.extract_strided_slice %105 {offsets = [2, 0], sizes = [1, 256], strides = [1, 1]} : vector<8x256xf32> to vector<1x256xf32>
      %141 = vector.broadcast %139 : vector<8x1xf32> to vector<8x256xf32>
      %142 = vector.broadcast %140 : vector<1x256xf32> to vector<8x256xf32>
      %143 = arith.mulf %141, %142 : vector<8x256xf32>
      %144 = arith.addf %138, %143 : vector<8x256xf32>
      %145 = vector.extract_strided_slice %98 {offsets = [0, 2], sizes = [8, 1], strides = [1, 1]} : vector<8x8xf32> to vector<8x1xf32>
      %146 = vector.broadcast %145 : vector<8x1xf32> to vector<8x256xf32>
      %147 = arith.mulf %146, %144 : vector<8x256xf32>
      %cst_78 = arith.constant dense<0.000000e+00> : vector<256xf32>
      %148 = vector.multi_reduction <add>, %147, %cst_78 [0] : vector<8x256xf32> to vector<256xf32>
      %149 = vector.shape_cast %148 : vector<256xf32> to vector<1x256xf32>
      %c2_79 = arith.constant 2 : index
      %c0_80 = arith.constant 0 : index
      %150 = vector.load %arg20[%c2_79, %c0_80] : memref<8x256xf32, #tpu.memory_space<vmem>>, vector<1x256xf32>
      tpu.vector_store %arg20[%c2_79, %c0_80], %149 {strides = array<i32>} : memref<8x256xf32, #tpu.memory_space<vmem>>, vector<1x256xf32>,
      %151 = vector.extract_strided_slice %104 {offsets = [3, 0, 0], sizes = [1, 8, 256], strides = [1, 1, 1]} : vector<8x8x256xf32> to vector<1x8x256xf32>
      %152 = vector.shape_cast %151 : vector<1x8x256xf32> to vector<8x256xf32>
      %153 = arith.mulf %152, %144 : vector<8x256xf32>
      %154 = vector.extract_strided_slice %95 {offsets = [0, 3], sizes = [8, 1], strides = [1, 1]} : vector<8x8xf32> to vector<8x1xf32>
      %155 = vector.extract_strided_slice %105 {offsets = [3, 0], sizes = [1, 256], strides = [1, 1]} : vector<8x256xf32> to vector<1x256xf32>
      %156 = vector.broadcast %154 : vector<8x1xf32> to vector<8x256xf32>
      %157 = vector.broadcast %155 : vector<1x256xf32> to vector<8x256xf32>
      %158 = arith.mulf %156, %157 : vector<8x256xf32>
      %159 = arith.addf %153, %158 : vector<8x256xf32>
      %160 = vector.extract_strided_slice %98 {offsets = [0, 3], sizes = [8, 1], strides = [1, 1]} : vector<8x8xf32> to vector<8x1xf32>
      %161 = vector.broadcast %160 : vector<8x1xf32> to vector<8x256xf32>
      %162 = arith.mulf %161, %159 : vector<8x256xf32>
      %cst_81 = arith.constant dense<0.000000e+00> : vector<256xf32>
      %163 = vector.multi_reduction <add>, %162, %cst_81 [0] : vector<8x256xf32> to vector<256xf32>
      %164 = vector.shape_cast %163 : vector<256xf32> to vector<1x256xf32>
      %c3_82 = arith.constant 3 : index
      %c0_83 = arith.constant 0 : index
      %165 = vector.load %arg20[%c3_82, %c0_83] : memref<8x256xf32, #tpu.memory_space<vmem>>, vector<1x256xf32>
      tpu.vector_store %arg20[%c3_82, %c0_83], %164 {strides = array<i32>} : memref<8x256xf32, #tpu.memory_space<vmem>>, vector<1x256xf32>,
      %166 = vector.extract_strided_slice %104 {offsets = [4, 0, 0], sizes = [1, 8, 256], strides = [1, 1, 1]} : vector<8x8x256xf32> to vector<1x8x256xf32>
      %167 = vector.shape_cast %166 : vector<1x8x256xf32> to vector<8x256xf32>
      %168 = arith.mulf %167, %159 : vector<8x256xf32>
      %169 = vector.extract_strided_slice %95 {offsets = [0, 4], sizes = [8, 1], strides = [1, 1]} : vector<8x8xf32> to vector<8x1xf32>
      %170 = vector.extract_strided_slice %105 {offsets = [4, 0], sizes = [1, 256], strides = [1, 1]} : vector<8x256xf32> to vector<1x256xf32>
      %171 = vector.broadcast %169 : vector<8x1xf32> to vector<8x256xf32>
      %172 = vector.broadcast %170 : vector<1x256xf32> to vector<8x256xf32>
      %173 = arith.mulf %171, %172 : vector<8x256xf32>
      %174 = arith.addf %168, %173 : vector<8x256xf32>
      %175 = vector.extract_strided_slice %98 {offsets = [0, 4], sizes = [8, 1], strides = [1, 1]} : vector<8x8xf32> to vector<8x1xf32>
      %176 = vector.broadcast %175 : vector<8x1xf32> to vector<8x256xf32>
      %177 = arith.mulf %176, %174 : vector<8x256xf32>
      %cst_84 = arith.constant dense<0.000000e+00> : vector<256xf32>
      %178 = vector.multi_reduction <add>, %177, %cst_84 [0] : vector<8x256xf32> to vector<256xf32>
      %179 = vector.shape_cast %178 : vector<256xf32> to vector<1x256xf32>
      %c4 = arith.constant 4 : index
      %c0_85 = arith.constant 0 : index
      %180 = vector.load %arg20[%c4, %c0_85] : memref<8x256xf32, #tpu.memory_space<vmem>>, vector<1x256xf32>
      tpu.vector_store %arg20[%c4, %c0_85], %179 {strides = array<i32>} : memref<8x256xf32, #tpu.memory_space<vmem>>, vector<1x256xf32>,
      %181 = vector.extract_strided_slice %104 {offsets = [5, 0, 0], sizes = [1, 8, 256], strides = [1, 1, 1]} : vector<8x8x256xf32> to vector<1x8x256xf32>
      %182 = vector.shape_cast %181 : vector<1x8x256xf32> to vector<8x256xf32>
      %183 = arith.mulf %182, %174 : vector<8x256xf32>
      %184 = vector.extract_strided_slice %95 {offsets = [0, 5], sizes = [8, 1], strides = [1, 1]} : vector<8x8xf32> to vector<8x1xf32>
      %185 = vector.extract_strided_slice %105 {offsets = [5, 0], sizes = [1, 256], strides = [1, 1]} : vector<8x256xf32> to vector<1x256xf32>
      %186 = vector.broadcast %184 : vector<8x1xf32> to vector<8x256xf32>
      %187 = vector.broadcast %185 : vector<1x256xf32> to vector<8x256xf32>
      %188 = arith.mulf %186, %187 : vector<8x256xf32>
      %189 = arith.addf %183, %188 : vector<8x256xf32>
      %190 = vector.extract_strided_slice %98 {offsets = [0, 5], sizes = [8, 1], strides = [1, 1]} : vector<8x8xf32> to vector<8x1xf32>
      %191 = vector.broadcast %190 : vector<8x1xf32> to vector<8x256xf32>
      %192 = arith.mulf %191, %189 : vector<8x256xf32>
      %cst_86 = arith.constant dense<0.000000e+00> : vector<256xf32>
      %193 = vector.multi_reduction <add>, %192, %cst_86 [0] : vector<8x256xf32> to vector<256xf32>
      %194 = vector.shape_cast %193 : vector<256xf32> to vector<1x256xf32>
      %c5 = arith.constant 5 : index
      %c0_87 = arith.constant 0 : index
      %195 = vector.load %arg20[%c5, %c0_87] : memref<8x256xf32, #tpu.memory_space<vmem>>, vector<1x256xf32>
      tpu.vector_store %arg20[%c5, %c0_87], %194 {strides = array<i32>} : memref<8x256xf32, #tpu.memory_space<vmem>>, vector<1x256xf32>,
      %196 = vector.extract_strided_slice %104 {offsets = [6, 0, 0], sizes = [1, 8, 256], strides = [1, 1, 1]} : vector<8x8x256xf32> to vector<1x8x256xf32>
      %197 = vector.shape_cast %196 : vector<1x8x256xf32> to vector<8x256xf32>
      %198 = arith.mulf %197, %189 : vector<8x256xf32>
      %199 = vector.extract_strided_slice %95 {offsets = [0, 6], sizes = [8, 1], strides = [1, 1]} : vector<8x8xf32> to vector<8x1xf32>
      %200 = vector.extract_strided_slice %105 {offsets = [6, 0], sizes = [1, 256], strides = [1, 1]} : vector<8x256xf32> to vector<1x256xf32>
      %201 = vector.broadcast %199 : vector<8x1xf32> to vector<8x256xf32>
      %202 = vector.broadcast %200 : vector<1x256xf32> to vector<8x256xf32>
      %203 = arith.mulf %201, %202 : vector<8x256xf32>
      %204 = arith.addf %198, %203 : vector<8x256xf32>
      %205 = vector.extract_strided_slice %98 {offsets = [0, 6], sizes = [8, 1], strides = [1, 1]} : vector<8x8xf32> to vector<8x1xf32>
      %206 = vector.broadcast %205 : vector<8x1xf32> to vector<8x256xf32>
      %207 = arith.mulf %206, %204 : vector<8x256xf32>
      %cst_88 = arith.constant dense<0.000000e+00> : vector<256xf32>
      %208 = vector.multi_reduction <add>, %207, %cst_88 [0] : vector<8x256xf32> to vector<256xf32>
      %209 = vector.shape_cast %208 : vector<256xf32> to vector<1x256xf32>
      %c6 = arith.constant 6 : index
      %c0_89 = arith.constant 0 : index
      %210 = vector.load %arg20[%c6, %c0_89] : memref<8x256xf32, #tpu.memory_space<vmem>>, vector<1x256xf32>
      tpu.vector_store %arg20[%c6, %c0_89], %209 {strides = array<i32>} : memref<8x256xf32, #tpu.memory_space<vmem>>, vector<1x256xf32>,
      %211 = vector.extract_strided_slice %104 {offsets = [7, 0, 0], sizes = [1, 8, 256], strides = [1, 1, 1]} : vector<8x8x256xf32> to vector<1x8x256xf32>
      %212 = vector.shape_cast %211 : vector<1x8x256xf32> to vector<8x256xf32>
      %213 = arith.mulf %212, %204 : vector<8x256xf32>
      %214 = vector.extract_strided_slice %95 {offsets = [0, 7], sizes = [8, 1], strides = [1, 1]} : vector<8x8xf32> to vector<8x1xf32>
      %215 = vector.extract_strided_slice %105 {offsets = [7, 0], sizes = [1, 256], strides = [1, 1]} : vector<8x256xf32> to vector<1x256xf32>
      %216 = vector.broadcast %214 : vector<8x1xf32> to vector<8x256xf32>
      %217 = vector.broadcast %215 : vector<1x256xf32> to vector<8x256xf32>
      %218 = arith.mulf %216, %217 : vector<8x256xf32>
      %219 = arith.addf %213, %218 : vector<8x256xf32>
      %220 = vector.extract_strided_slice %98 {offsets = [0, 7], sizes = [8, 1], strides = [1, 1]} : vector<8x8xf32> to vector<8x1xf32>
      %221 = vector.broadcast %220 : vector<8x1xf32> to vector<8x256xf32>
      %222 = arith.mulf %221, %219 : vector<8x256xf32>
      %cst_90 = arith.constant dense<0.000000e+00> : vector<256xf32>
      %223 = vector.multi_reduction <add>, %222, %cst_90 [0] : vector<8x256xf32> to vector<256xf32>
      %224 = vector.shape_cast %223 : vector<256xf32> to vector<1x256xf32>
      %c7 = arith.constant 7 : index
      %c0_91 = arith.constant 0 : index
      %225 = vector.load %arg20[%c7, %c0_91] : memref<8x256xf32, #tpu.memory_space<vmem>>, vector<1x256xf32>
      tpu.vector_store %arg20[%c7, %c0_91], %224 {strides = array<i32>} : memref<8x256xf32, #tpu.memory_space<vmem>>, vector<1x256xf32>,
      %c0_92 = arith.constant 0 : index
      %c0_93 = arith.constant 0 : index
      %226 = vector.load %arg20[%c0_92, %c0_93] : memref<8x256xf32, #tpu.memory_space<vmem>>, vector<8x256xf32>
      %227 = vector.broadcast %65 : vector<1x256xf32> to vector<8x256xf32>
      %228 = arith.mulf %227, %90 : vector<8x256xf32>
      %229 = arith.addf %226, %228 : vector<8x256xf32>
      %230 = arith.negf %92 : vector<8x256xf32>
      %231 = math.exp %230 : vector<8x256xf32>
      %cst_94 = arith.constant 1.000000e+00 : f32
      %232 = vector.broadcast %cst_94 : f32 to vector<8x256xf32>
      %233 = arith.addf %232, %231 : vector<8x256xf32>
      %234 = arith.divf %232, %233 : vector<8x256xf32>
      %235 = arith.mulf %92, %234 : vector<8x256xf32>
      %236 = arith.mulf %229, %235 : vector<8x256xf32>
      %237 = arith.truncf %236 : vector<8x256xf32> to vector<8x256xbf16>
      %238 = arith.index_cast %86 : i32 to index
      %c0_95 = arith.constant 0 : index
      %239 = vector.load %arg21[%238, %c0_95] : memref<16x256xbf16, #tpu.memory_space<vmem>>, vector<8x256xbf16>
      tpu.vector_store %arg21[%238, %c0_95], %237 {strides = array<i32>} : memref<16x256xbf16, #tpu.memory_space<vmem>>, vector<8x256xbf16>,
      scf.yield %219 : vector<8x256xf32>
    }
    %c2_i32_51 = arith.constant 2 : i32
    %c0_52 = arith.constant 0 : index
    %c0_53 = arith.constant 0 : index
    %69 = vector.load %arg21[%c0_52, %c0_53] : memref<16x256xbf16, #tpu.memory_space<vmem>>, vector<16x256xbf16>
    %c0_54 = arith.constant 0 : index
    %c0_55 = arith.constant 0 : index
    %70 = vector.load %arg10[%c0_54, %c0_55] : memref<256x128xbf16, #tpu.memory_space<vmem>>, vector<256x128xbf16>
    %cst_56 = arith.constant dense<0.000000e+00> : vector<16x128xf32>
    %71 = tpu.matmul %69, %70, %cst_56 {dimension_numbers = #tpu.dot_dimension_numbers<[1], [0], [0], [1], [0, 0, 1, 1], [], []>} : vector<16x256xbf16>, vector<256x128xbf16>, vector<16x128xf32> -> vector<16x128xf32>
    %c0_57 = arith.constant 0 : index
    %c0_58 = arith.constant 0 : index
    %c0_59 = arith.constant 0 : index
    %72 = vector.load %arg1[%c0_57, %c0_58, %c0_59] : memref<1x16x128xbf16, #tpu.memory_space<vmem>>, vector<1x16x128xbf16>
    %73 = vector.shape_cast %72 : vector<1x16x128xbf16> to vector<16x128xbf16>
    %74 = arith.extf %73 : vector<16x128xbf16> to vector<16x128xf32>
    %75 = arith.addf %74, %71 : vector<16x128xf32>
    %c0_60 = arith.constant 0 : index
    %c0_61 = arith.constant 0 : index
    %76 = vector.load %arg11[%c0_60, %c0_61] : memref<1x128xf32, #tpu.memory_space<vmem>>, vector<1x128xf32>
    %77 = vector.broadcast %76 : vector<1x128xf32> to vector<16x128xf32>
    %78 = arith.mulf %75, %77 : vector<16x128xf32>
    %c0_62 = arith.constant 0 : index
    %c0_63 = arith.constant 0 : index
    %79 = vector.load %arg12[%c0_62, %c0_63] : memref<1x128xf32, #tpu.memory_space<vmem>>, vector<1x128xf32>
    %80 = vector.broadcast %79 : vector<1x128xf32> to vector<16x128xf32>
    %81 = arith.addf %78, %80 : vector<16x128xf32>
    %c0_64 = arith.constant 0 : index
    %c0_65 = arith.constant 0 : index
    %c0_66 = arith.constant 0 : index
    %82 = vector.load %arg13[%c0_64, %c0_65, %c0_66] : memref<1x16x128xf32, #tpu.memory_space<vmem>>, vector<1x16x128xf32>
    %83 = vector.shape_cast %82 : vector<1x16x128xf32> to vector<16x128xf32>
    %84 = vector.shape_cast %81 : vector<16x128xf32> to vector<1x16x128xf32>
    tpu.vector_store %arg13[%c0_64, %c0_65, %c0_66], %84 {strides = array<i32>} : memref<1x16x128xf32, #tpu.memory_space<vmem>>, vector<1x16x128xf32>,
    return
  }
  func.func @transform_0(%arg0: i32) -> (i32, i32, i32) {
    %c0_i32 = arith.constant 0 : i32
    %c0_i32_0 = arith.constant 0 : i32
    %c0_i32_1 = arith.constant 0 : i32
    return %arg0, %c0_i32, %c0_i32_0 : i32, i32, i32
  }
  func.func @transform_1(%arg0: i32) -> (i32, i32) {
    %c0_i32 = arith.constant 0 : i32
    %c0_i32_0 = arith.constant 0 : i32
    %c0_i32_1 = arith.constant 0 : i32
    return %c0_i32, %c0_i32_0 : i32, i32
  }
  func.func @transform_2(%arg0: i32) -> (i32, i32) {
    %c0_i32 = arith.constant 0 : i32
    %c0_i32_0 = arith.constant 0 : i32
    %c0_i32_1 = arith.constant 0 : i32
    return %c0_i32, %c0_i32_0 : i32, i32
  }
  func.func @transform_3(%arg0: i32) -> (i32, i32) {
    %c0_i32 = arith.constant 0 : i32
    %c0_i32_0 = arith.constant 0 : i32
    %c0_i32_1 = arith.constant 0 : i32
    return %c0_i32, %c0_i32_0 : i32, i32
  }
  func.func @transform_4(%arg0: i32) -> (i32, i32) {
    %c0_i32 = arith.constant 0 : i32
    %c0_i32_0 = arith.constant 0 : i32
    %c0_i32_1 = arith.constant 0 : i32
    return %c0_i32, %c0_i32_0 : i32, i32
  }
  func.func @transform_5(%arg0: i32) -> (i32, i32) {
    %c0_i32 = arith.constant 0 : i32
    %c0_i32_0 = arith.constant 0 : i32
    %c0_i32_1 = arith.constant 0 : i32
    return %c0_i32, %c0_i32_0 : i32, i32
  }
  func.func @transform_6(%arg0: i32) -> (i32, i32) {
    %c0_i32 = arith.constant 0 : i32
    %c0_i32_0 = arith.constant 0 : i32
    %c0_i32_1 = arith.constant 0 : i32
    return %c0_i32, %c0_i32_0 : i32, i32
  }
  func.func @transform_7(%arg0: i32) -> (i32, i32) {
    %c0_i32 = arith.constant 0 : i32
    %c0_i32_0 = arith.constant 0 : i32
    %c0_i32_1 = arith.constant 0 : i32
    return %c0_i32, %c0_i32_0 : i32, i32
  }
  func.func @transform_8(%arg0: i32) -> (i32, i32) {
    %c0_i32 = arith.constant 0 : i32
    %c0_i32_0 = arith.constant 0 : i32
    %c0_i32_1 = arith.constant 0 : i32
    return %c0_i32, %c0_i32_0 : i32, i32
  }
  func.func @transform_9(%arg0: i32) -> (i32, i32) {
    %c0_i32 = arith.constant 0 : i32
    %c0_i32_0 = arith.constant 0 : i32
    %c0_i32_1 = arith.constant 0 : i32
    return %c0_i32, %c0_i32_0 : i32, i32
  }
  func.func @transform_10(%arg0: i32) -> (i32, i32) {
    %c0_i32 = arith.constant 0 : i32
    %c0_i32_0 = arith.constant 0 : i32
    %c0_i32_1 = arith.constant 0 : i32
    return %c0_i32, %c0_i32_0 : i32, i32
  }
  func.func @transform_11(%arg0: i32) -> (i32, i32) {
    %c0_i32 = arith.constant 0 : i32
    %c0_i32_0 = arith.constant 0 : i32
    %c0_i32_1 = arith.constant 0 : i32
    return %c0_i32, %c0_i32_0 : i32, i32
  }
  func.func @transform_12(%arg0: i32) -> (i32, i32, i32) {
    %c0_i32 = arith.constant 0 : i32
    %c0_i32_0 = arith.constant 0 : i32
    %c0_i32_1 = arith.constant 0 : i32
    return %arg0, %c0_i32, %c0_i32_0 : i32, i32, i32
  }
}

</mosaic_0001>

<llo_original>
// kernel: encoder_afcm_block.6
$region0: #{encoder_afcm_block.6}
  #allocation0 [shape = 'u32[]', space=smem, size = 0x4, offset = 0x4, fixed_abs, tag = 'smem constant byte address 0x4 - core index']
  #allocation1 [shape = 'u32[72,128]{1,0:T(1,128)}', space=vmem, size = 0x9000, scoped, tag = 'internal scratch']
  #allocation2 [shape = 'f32[18,128]{1,0:T(8,128)}', space=vmem, size = 0x3000, scoped, tag = 'scratch operand']
  %s0 = inlined_call_operand.vmem [shape: bf16[2,16,128], index: 0, kind: input, shape index: {}]
  %s1 = inlined_call_operand.hbm [shape: bf16[384,128], index: 1, kind: input, shape index: {}]
  %s2 = inlined_call_operand.hbm [shape: f32[1,128], index: 2, kind: input, shape index: {}]
  %s3 = inlined_call_operand.hbm [shape: f32[1,128], index: 3, kind: input, shape index: {}]
  %s4 = inlined_call_operand.hbm [shape: f32[1,128], index: 4, kind: input, shape index: {}]
  %s5 = inlined_call_operand.hbm [shape: f32[1,128], index: 5, kind: input, shape index: {}]
  %s6 = inlined_call_operand.hbm [shape: f32[1,128], index: 6, kind: input, shape index: {}]
  %s7 = inlined_call_operand.vmem [shape: bf16[2,16,128], index: 7, kind: output, shape index: {}]
  %s8 = sld [smem:[#allocation0]]
  $region85: #{encoder_afcm_block.6} parent=0
    _
  %s10 = ssub.s32 1, %s8
  %s11 = scalar_select 0, %s10, %s8
  $region1: #{encoder_afcm_block.6} parent=0
    #allocation3 [shape = 'u8[98304]{0}', space=vmem, size = 0x18000, scoped, tag = 'input window, operand 1, single buffered']
    #allocation4 [shape = 's32[2]{0}', space=sflag, size = 0x8, scoped, tag = 'scoped memory for encoder_afcm_block.6']
    #allocation5 [shape = 'u8[512]{0}', space=vmem, size = 0x400, scoped, tag = 'input window, operand 2, single buffered']
    #allocation6 [shape = 's32[1]{0}', space=sflag, size = 0x4, scoped, tag = 'scoped memory for encoder_afcm_block.6']
    #allocation7 [shape = 'u8[512]{0}', space=vmem, size = 0x400, scoped, tag = 'input window, operand 3, single buffered']
    #allocation8 [shape = 'u8[512]{0}', space=vmem, size = 0x400, scoped, tag = 'input window, operand 4, single buffered']
    #allocation9 [shape = 's32[1]{0}', space=sflag, size = 0x4, scoped, tag = 'scoped memory for encoder_afcm_block.6']
    #allocation10 [shape = 'u8[512]{0}', space=vmem, size = 0x400, scoped, tag = 'input window, operand 5, single buffered']
    #allocation11 [shape = 'u8[512]{0}', space=vmem, size = 0x400, scoped, tag = 'input window, operand 6, single buffered']
    #allocation12 [shape = 's32[1]{0}', space=sflag, size = 0x4, scoped, tag = 'scoped memory for encoder_afcm_block.6']
    %12 = vsyncpa [#allocation4], 0
    %13 = vsyncpa [#allocation6], 0
    %14 = vsyncpa [#allocation9], 0
    %15 = vsyncpa [#allocation12], 0
    loop: start=0, step=1, limit=4
    $region2: #{encoder_afcm_block.6} parent=1 // loop_pre_header
      _
    $region3: #{encoder_afcm_block.6} parent=1 // loop_header
      %s17 = sphi 0, %s21
      %p18 = scmp.ge.s32.totalorder %s17, 4
      %s27 = sphi 0, %s29
      %s30 = sphi 0, %s27
      %s31 = sphi 0, %s30
      %s47 = sphi 0, %s31
      %s51 = sphi 0, %s51
      %s53 = sphi 0, %s51
      %s54 = sphi 0, %s53
      %s68 = sphi 0, %s54
      %s72 = sphi 0, %s72
      %s74 = sphi 0, %s72
      %s75 = sphi 0, %s74
      %s89 = sphi 0, %s75
      %s93 = sphi 0, %s93
      %s95 = sphi 0, %s93
      %s96 = sphi 0, %s95
      %s110 = sphi 0, %s96
      %s114 = sphi 0, %s114
      %s116 = sphi 0, %s114
      %s117 = sphi 0, %s116
      %s131 = sphi 0, %s117
      %s135 = sphi 0, %s135
      %s137 = sphi 0, %s135
      %s138 = sphi 0, %s137
      %s152 = sphi 0, %s138
      %s156 = sphi 0, %s156
      %s158 = sphi 0, %s156
      %s159 = sphi 0, %s158
      %s173 = sphi 0, %s159
      %s179 = sphi 0, %s181
      %s182 = sphi 0, %s179
      %s183 = sphi 0, %s182
      %s199 = sphi 0, %s183
    $region4: #{encoder_afcm_block.6} parent=1 // loop_header_branch
      %20 = sbr.rel (%p18) target = $region8
    $region5: #{encoder_afcm_block.6} parent=1 // loop_body
      %s22 = ssub.s32 %s17, 1
      %s23 = ssub.s32 %s17, 2
      %s24 = sadd.s32 %s17, 1
      %s25 = ssub.s32 %s17, %s24
      %p26 = scmp.eq.s32.totalorder %s25, 0
      %s28 = sadd.s32 %s27, 1
      %s29 = scalar_select %p26, %s27, %s28
      %p32 = pneg %p26
      %p33 = scmp.eq.s32.totalorder %s17, 1
      %p34 = por %p32, %p33
      %p35 = scmp.ne.s32.totalorder %s27, %s30
      %p36 = scmp.eq.s32.totalorder %s17, 0
      %p37 = por %p35, %p36
      %p38 = scmp.ne.s32.totalorder %s27, %s30
      %p39 = scmp.eq.s32.totalorder %s22, 1
      %p40 = por %p38, %p39
      %p41 = scmp.ne.s32.totalorder %s30, %s31
      %p42 = scmp.eq.s32.totalorder %s22, 0
      %p43 = por %p41, %p42
      %p44 = scmp.ne.s32.totalorder %s30, %s31
      %p45 = scmp.eq.s32.totalorder %s23, 1
      %p46 = por %p44, %p45
      %p48 = scmp.ne.s32.totalorder %s31, %s47
      %p49 = scmp.eq.s32.totalorder %s23, 0
      %p50 = por %p48, %p49
      %s52 = sadd.s32 %s51, 1
      %p55 = scmp.eq.s32.totalorder %s17, 1
      %p56 = scmp.ne.s32.totalorder %s51, %s53
      %p57 = scmp.eq.s32.totalorder %s17, 0
      %p58 = por %p56, %p57
      %p59 = scmp.ne.s32.totalorder %s51, %s53
      %p60 = scmp.eq.s32.totalorder %s22, 1
      %p61 = por %p59, %p60
      %p62 = scmp.ne.s32.totalorder %s53, %s54
      %p63 = scmp.eq.s32.totalorder %s22, 0
      %p64 = por %p62, %p63
      %p65 = scmp.ne.s32.totalorder %s53, %s54
      %p66 = scmp.eq.s32.totalorder %s23, 1
      %p67 = por %p65, %p66
      %p69 = scmp.ne.s32.totalorder %s54, %s68
      %p70 = scmp.eq.s32.totalorder %s23, 0
      %p71 = por %p69, %p70
      %s73 = sadd.s32 %s72, 1
      %p76 = scmp.eq.s32.totalorder %s17, 1
      %p77 = scmp.ne.s32.totalorder %s72, %s74
      %p78 = scmp.eq.s32.totalorder %s17, 0
      %p79 = por %p77, %p78
      %p80 = scmp.ne.s32.totalorder %s72, %s74
      %p81 = scmp.eq.s32.totalorder %s22, 1
      %p82 = por %p80, %p81
      %p83 = scmp.ne.s32.totalorder %s74, %s75
      %p84 = scmp.eq.s32.totalorder %s22, 0
      %p85 = por %p83, %p84
      %p86 = scmp.ne.s32.totalorder %s74, %s75
      %p87 = scmp.eq.s32.totalorder %s23, 1
      %p88 = por %p86, %p87
      %p90 = scmp.ne.s32.totalorder %s75, %s89
      %p91 = scmp.eq.s32.totalorder %s23, 0
      %p92 = por %p90, %p91
      %s94 = sadd.s32 %s93, 1
      %p97 = scmp.eq.s32.totalorder %s17, 1
      %p98 = scmp.ne.s32.totalorder %s93, %s95
      %p99 = scmp.eq.s32.totalorder %s17, 0
      %p100 = por %p98, %p99
      %p101 = scmp.ne.s32.totalorder %s93, %s95
      %p102 = scmp.eq.s32.totalorder %s22, 1
      %p103 = por %p101, %p102
      %p104 = scmp.ne.s32.totalorder %s95, %s96
      %p105 = scmp.eq.s32.totalorder %s22, 0
      %p106 = por %p104, %p105
      %p107 = scmp.ne.s32.totalorder %s95, %s96
      %p108 = scmp.eq.s32.totalorder %s23, 1
      %p109 = por %p107, %p108
      %p111 = scmp.ne.s32.totalorder %s96, %s110
      %p112 = scmp.eq.s32.totalorder %s23, 0
      %p113 = por %p111, %p112
      %s115 = sadd.s32 %s114, 1
      %p118 = scmp.eq.s32.totalorder %s17, 1
      %p119 = scmp.ne.s32.totalorder %s114, %s116
      %p120 = scmp.eq.s32.totalorder %s17, 0
      %p121 = por %p119, %p120
      %p122 = scmp.ne.s32.totalorder %s114, %s116
      %p123 = scmp.eq.s32.totalorder %s22, 1
      %p124 = por %p122, %p123
      %p125 = scmp.ne.s32.totalorder %s116, %s117
      %p126 = scmp.eq.s32.totalorder %s22, 0
      %p127 = por %p125, %p126
      %p128 = scmp.ne.s32.totalorder %s116, %s117
      %p129 = scmp.eq.s32.totalorder %s23, 1
      %p130 = por %p128, %p129
      %p132 = scmp.ne.s32.totalorder %s117, %s131
      %p133 = scmp.eq.s32.totalorder %s23, 0
      %p134 = por %p132, %p133
      %s136 = sadd.s32 %s135, 1
      %p139 = scmp.eq.s32.totalorder %s17, 1
      %p140 = scmp.ne.s32.totalorder %s135, %s137
      %p141 = scmp.eq.s32.totalorder %s17, 0
      %p142 = por %p140, %p141
      %p143 = scmp.ne.s32.totalorder %s135, %s137
      %p144 = scmp.eq.s32.totalorder %s22, 1
      %p145 = por %p143, %p144
      %p146 = scmp.ne.s32.totalorder %s137, %s138
      %p147 = scmp.eq.s32.totalorder %s22, 0
      %p148 = por %p146, %p147
      %p149 = scmp.ne.s32.totalorder %s137, %s138
      %p150 = scmp.eq.s32.totalorder %s23, 1
      %p151 = por %p149, %p150
      %p153 = scmp.ne.s32.totalorder %s138, %s152
      %p154 = scmp.eq.s32.totalorder %s23, 0
      %p155 = por %p153, %p154
      %s157 = sadd.s32 %s156, 1
      %p160 = scmp.eq.s32.totalorder %s17, 1
      %p161 = scmp.ne.s32.totalorder %s156, %s158
      %p162 = scmp.eq.s32.totalorder %s17, 0
      %p163 = por %p161, %p162
      %p164 = scmp.ne.s32.totalorder %s156, %s158
      %p165 = scmp.eq.s32.totalorder %s22, 1
      %p166 = por %p164, %p165
      %p167 = scmp.ne.s32.totalorder %s158, %s159
      %p168 = scmp.eq.s32.totalorder %s22, 0
      %p169 = por %p167, %p168
      %p170 = scmp.ne.s32.totalorder %s158, %s159
      %p171 = scmp.eq.s32.totalorder %s23, 1
      %p172 = por %p170, %p171
      %p174 = scmp.ne.s32.totalorder %s159, %s173
      %p175 = scmp.eq.s32.totalorder %s23, 0
      %p176 = por %p174, %p175
      %s177 = ssub.s32 %s17, %s24
      %p178 = scmp.eq.s32.totalorder %s177, 0
      %s180 = sadd.s32 %s179, 1
      %s181 = scalar_select %p178, %s179, %s180
      %p184 = pneg %p178
      %p185 = scmp.eq.s32.totalorder %s17, 1
      %p186 = por %p184, %p185
      %p187 = scmp.ne.s32.totalorder %s179, %s182
      %p188 = scmp.eq.s32.totalorder %s17, 0
      %p189 = por %p187, %p188
      %p190 = scmp.ne.s32.totalorder %s179, %s182
      %p191 = scmp.eq.s32.totalorder %s22, 1
      %p192 = por %p190, %p191
      %p193 = scmp.ne.s32.totalorder %s182, %s183
      %p194 = scmp.eq.s32.totalorder %s22, 0
      %p195 = por %p193, %p194
      %p196 = scmp.ne.s32.totalorder %s182, %s183
      %p197 = scmp.eq.s32.totalorder %s23, 1
      %p198 = por %p196, %p197
      %p200 = scmp.ne.s32.totalorder %s183, %s199
      %p201 = scmp.eq.s32.totalorder %s23, 0
      %p202 = por %p200, %p201
      %p203 = scmp.le.s32.totalorder 1, %s17
      %p204 = scmp.lt.s32.totalorder %s17, 3
      %p205 = pnand %p203, %p204
      %p206 = pneg %p205
      // Predicated region
      $region9: #{encoder_afcm_block.6} parent=5 // pred_check
        _
      $region10: #{encoder_afcm_block.6} parent=5 // pred_check_branch
        %208 = sbr.rel (%p205) target = $region12
      $region11: #{encoder_afcm_block.6} parent=5 // pred_region
        %s209 = ssub.s32 %s17, 1
        // Predicated region
        $region13: #{encoder_afcm_block.6} parent=11 // pred_check
          %p210 = pneg %p64
        $region14: #{encoder_afcm_block.6} parent=11 // pred_check_branch
          %212 = sbr.rel (%p210) target = $region16
        $region15: #{encoder_afcm_block.6} parent=11 // pred_region
          %214 = vsyncadd [#allocation4], 0
          %s215 = sshll.u32 %s1, 4
          %s216 = int_to_ptr.hbm [resolvable:$true] %s215
          %s217 = sshll.u32 [#allocation3], 4
          %s218 = int_to_ptr.vmem [resolvable:$true] %s217
          %223 = dma.hbm_to_vmem [thread:$0]  %s216, 3072, %s218, [#allocation4], 64, 64, 4
        $region16: #{encoder_afcm_block.6} parent=11 // pred_fallthru
          _
        // Predicated region
        $region17: #{encoder_afcm_block.6} parent=11 // pred_check
          %p224 = pneg %p85
        $region18: #{encoder_afcm_block.6} parent=11 // pred_check_branch
          %226 = sbr.rel (%p224) target = $region20
        $region19: #{encoder_afcm_block.6} parent=11 // pred_region
          %228 = vsyncadd [#allocation6], 0
          %s230 = sshll.u32 %s2, 4
          %s231 = int_to_ptr.hbm [resolvable:$true] %s230
          %s232 = sshll.u32 [#allocation5], 4
          %s233 = int_to_ptr.vmem [resolvable:$true] %s232
          %235 = dma.hbm_to_vmem [thread:$0]  %s231, 16, %s233, [#allocation6]
        $region20: #{encoder_afcm_block.6} parent=11 // pred_fallthru
          _
        // Predicated region
        $region21: #{encoder_afcm_block.6} parent=11 // pred_check
          %p236 = pneg %p106
        $region22: #{encoder_afcm_block.6} parent=11 // pred_check_branch
          %238 = sbr.rel (%p236) target = $region24
        $region23: #{encoder_afcm_block.6} parent=11 // pred_region
          %240 = vsyncadd [#allocation6], 0
          %s242 = sshll.u32 %s3, 4
          %s243 = int_to_ptr.hbm [resolvable:$true] %s242
          %s244 = sshll.u32 [#allocation7], 4
          %s245 = int_to_ptr.vmem [resolvable:$true] %s244
          %247 = dma.hbm_to_vmem [thread:$0]  %s243, 16, %s245, [#allocation6]
        $region24: #{encoder_afcm_block.6} parent=11 // pred_fallthru
          _
        // Predicated region
        $region25: #{encoder_afcm_block.6} parent=11 // pred_check
          %p248 = pneg %p127
        $region26: #{encoder_afcm_block.6} parent=11 // pred_check_branch
          %250 = sbr.rel (%p248) target = $region28
        $region27: #{encoder_afcm_block.6} parent=11 // pred_region
          %252 = vsyncadd [#allocation9], 0
          %s254 = sshll.u32 %s4, 4
          %s255 = int_to_ptr.hbm [resolvable:$true] %s254
          %s256 = sshll.u32 [#allocation8], 4
          %s257 = int_to_ptr.vmem [resolvable:$true] %s256
          %259 = dma.hbm_to_vmem [thread:$0]  %s255, 16, %s257, [#allocation9]
        $region28: #{encoder_afcm_block.6} parent=11 // pred_fallthru
          _
        // Predicated region
        $region29: #{encoder_afcm_block.6} parent=11 // pred_check
          %p260 = pneg %p148
        $region30: #{encoder_afcm_block.6} parent=11 // pred_check_branch
          %262 = sbr.rel (%p260) target = $region32
        $region31: #{encoder_afcm_block.6} parent=11 // pred_region
          %264 = vsyncadd [#allocation9], 0
          %s266 = sshll.u32 %s5, 4
          %s267 = int_to_ptr.hbm [resolvable:$true] %s266
          %s268 = sshll.u32 [#allocation10], 4
          %s269 = int_to_ptr.vmem [resolvable:$true] %s268
          %271 = dma.hbm_to_vmem [thread:$0]  %s267, 16, %s269, [#allocation9]
        $region32: #{encoder_afcm_block.6} parent=11 // pred_fallthru
          _
        // Predicated region
        $region33: #{encoder_afcm_block.6} parent=11 // pred_check
          %p272 = pneg %p169
        $region34: #{encoder_afcm_block.6} parent=11 // pred_check_branch
          %274 = sbr.rel (%p272) target = $region36
        $region35: #{encoder_afcm_block.6} parent=11 // pred_region
          %276 = vsyncadd [#allocation12], 0
          %s278 = sshll.u32 %s6, 4
          %s279 = int_to_ptr.hbm [resolvable:$true] %s278
          %s280 = sshll.u32 [#allocation11], 4
          %s281 = int_to_ptr.vmem [resolvable:$true] %s280
          %283 = dma.hbm_to_vmem [thread:$0]  %s279, 16, %s281, [#allocation12]
        $region36: #{encoder_afcm_block.6} parent=11 // pred_fallthru
          _
      $region12: #{encoder_afcm_block.6} parent=5 // pred_fallthru
        _
      %p284 = scmp.lt.s32.totalorder %s17, 2
      // Predicated region
      $region37: #{encoder_afcm_block.6} parent=5 // pred_check
        %p285 = pneg %p284
      $region38: #{encoder_afcm_block.6} parent=5 // pred_check_branch
        %287 = sbr.rel (%p285) target = $region40
      $region39: #{encoder_afcm_block.6} parent=5 // pred_region
        // Predicated region
        $region41: #{encoder_afcm_block.6} parent=39 // pred_check
          %p288 = pneg %p37
        $region42: #{encoder_afcm_block.6} parent=39 // pred_check_branch
          %290 = sbr.rel (%p288) target = $region44
        $region43: #{encoder_afcm_block.6} parent=39 // pred_region
          %p291 = scmp.lt.s32.totalorder %s17, 1
          %s292 = scalar_select %p291, %s17, 1
          %s293 = smul.addr %s292, 2
          %s294 = smul.addr %s293, 4
          %s295 = scalar_lea.vmem %s0, %s294
        $region44: #{encoder_afcm_block.6} parent=39 // pred_fallthru
          _
      $region40: #{encoder_afcm_block.6} parent=5 // pred_fallthru
        _
      %p296 = scmp.le.s32.totalorder 1, %s17
      %p297 = scmp.lt.s32.totalorder %s17, 3
      %p298 = pnand %p296, %p297
      %p299 = pneg %p298
      // Predicated region
      $region45: #{encoder_afcm_block.6} parent=5 // pred_check
        _
      $region46: #{encoder_afcm_block.6} parent=5 // pred_check_branch
        %301 = sbr.rel (%p298) target = $region48
      $region47: #{encoder_afcm_block.6} parent=5 // pred_region
        %s302 = ssub.s32 %s17, 1
        // Predicated region
        $region49: #{encoder_afcm_block.6} parent=47 // pred_check
          %p303 = pneg %p64
        $region50: #{encoder_afcm_block.6} parent=47 // pred_check_branch
          %305 = sbr.rel (%p303) target = $region52
        $region51: #{encoder_afcm_block.6} parent=47 // pred_region
          %307 = dma.done [#allocation4], 3072
        $region52: #{encoder_afcm_block.6} parent=47 // pred_fallthru
          _
        // Predicated region
        $region53: #{encoder_afcm_block.6} parent=47 // pred_check
          %p308 = pneg %p85
        $region54: #{encoder_afcm_block.6} parent=47 // pred_check_branch
          %310 = sbr.rel (%p308) target = $region56
        $region55: #{encoder_afcm_block.6} parent=47 // pred_region
          %312 = dma.done [#allocation6], 16
        $region56: #{encoder_afcm_block.6} parent=47 // pred_fallthru
          _
        // Predicated region
        $region57: #{encoder_afcm_block.6} parent=47 // pred_check
          %p313 = pneg %p106
        $region58: #{encoder_afcm_block.6} parent=47 // pred_check_branch
          %315 = sbr.rel (%p313) target = $region60
        $region59: #{encoder_afcm_block.6} parent=47 // pred_region
          %317 = dma.done [#allocation6], 16
        $region60: #{encoder_afcm_block.6} parent=47 // pred_fallthru
          _
        // Predicated region
        $region61: #{encoder_afcm_block.6} parent=47 // pred_check
          %p318 = pneg %p127
        $region62: #{encoder_afcm_block.6} parent=47 // pred_check_branch
          %320 = sbr.rel (%p318) target = $region64
        $region63: #{encoder_afcm_block.6} parent=47 // pred_region
          %322 = dma.done [#allocation9], 16
        $region64: #{encoder_afcm_block.6} parent=47 // pred_fallthru
          _
        // Predicated region
        $region65: #{encoder_afcm_block.6} parent=47 // pred_check
          %p323 = pneg %p148
        $region66: #{encoder_afcm_block.6} parent=47 // pred_check_branch
          %325 = sbr.rel (%p323) target = $region68
        $region67: #{encoder_afcm_block.6} parent=47 // pred_region
          %327 = dma.done [#allocation9], 16
        $region68: #{encoder_afcm_block.6} parent=47 // pred_fallthru
          _
        // Predicated region
        $region69: #{encoder_afcm_block.6} parent=47 // pred_check
          %p328 = pneg %p169
        $region70: #{encoder_afcm_block.6} parent=47 // pred_check_branch
          %330 = sbr.rel (%p328) target = $region72
        $region71: #{encoder_afcm_block.6} parent=47 // pred_region
          %332 = dma.done [#allocation12], 16
        $region72: #{encoder_afcm_block.6} parent=47 // pred_fallthru
          _
        %p333 = scmp.lt.s32.totalorder %s22, 1
        %s334 = scalar_select %p333, %s22, 1
        %s335 = smul.addr %s334, 2
        %s336 = smul.addr %s335, 4
        %s337 = scalar_lea.vmem %s0, %s336
        %p338 = pneg %p43
        %p339 = pneg %p40
        %p340 = pneg %p64
        %p341 = pneg %p61
        %p342 = pneg %p85
        %p343 = pneg %p82
        %p344 = pneg %p106
        %p345 = pneg %p103
        %p346 = pneg %p127
        %p347 = pneg %p124
        %p348 = pneg %p148
        %p349 = pneg %p145
        %p350 = pneg %p169
        %p351 = pneg %p166
        %p352 = pneg %p195
        %p353 = pneg %p192
        %p354 = scmp.lt.s32.totalorder %s22, 1
        %s355 = scalar_select %p354, %s22, 1
        %s356 = smul.addr %s355, 2
        %s357 = smul.addr %s356, 4
        %s358 = scalar_lea.vmem %s7, %s357
        %p359 = scmp.lt.s32.totalorder %s22, 1
        %s360 = scalar_select %p359, %s22, 1
        %s361 = smul.addr %s360, 2
        %s362 = smul.addr %s361, 4
        %s363 = scalar_lea.vmem %s0, %s362
        %p364 = scmp.lt.s32.totalorder %s22, 1
        %s365 = scalar_select %p364, %s22, 1
        %s366 = smul.addr %s365, 2
        %s367 = smul.addr %s366, 4
        %s368 = scalar_lea.vmem %s7, %s367
        %v369 = vld [vmem:[%s363] sm:$0xf]
        %v370 = vld [vmem:[%s363 + $0x4] sm:$0xf]
        %371 = vst [vmem:[#allocation2] sm:$0x1] 0.0
        %v372 = vunpack.c.l.bf16 %v369
        %v373 = vunpack.c.l.bf16 %v370
        %374 = vst [vmem:[#allocation2 + $0x1] sm:$0xff] %v372
        %375 = vst [vmem:[#allocation2 + $0x9] sm:$0xff] %v373
        %376 = vst [vmem:[#allocation2 + $0x11] sm:$0x1] 0.0
        %v377 = vld [vmem:[#allocation2] sm:$0xff]
        %v378 = vld [vmem:[#allocation2 + $0x8] sm:$0xff]
        %v379 = vld [vmem:[#allocation2 + $0x1] sm:$0xff]
        %v380 = vld [vmem:[#allocation2 + $0x9] sm:$0xff]
        %v381 = vld [vmem:[#allocation2 + $0x2] sm:$0xff]
        %v382 = vld [vmem:[#allocation2 + $0xa] sm:$0xff]
        %v383 = vpack.c.bf16 %v378, %v377
        %v384 = vpack.c.bf16 %v380, %v379
        %v385 = vpack.c.bf16 %v382, %v381
        %v386 = vld [vmem:[#allocation3] sm:$0xf]
        %v387 = vld [vmem:[#allocation3 + $0x4] sm:$0xf]
        %v388 = vld [vmem:[#allocation3 + $0x8] sm:$0xf]
        %v389 = vld [vmem:[#allocation3 + $0xc] sm:$0xf]
        %v390 = vld [vmem:[#allocation3 + $0x10] sm:$0xf]
        %v391 = vld [vmem:[#allocation3 + $0x14] sm:$0xf]
        %v392 = vld [vmem:[#allocation3 + $0x18] sm:$0xf]
        %v393 = vld [vmem:[#allocation3 + $0x1c] sm:$0xf]
        %v394 = vld [vmem:[#allocation3 + $0x20] sm:$0xf]
        %v395 = vld [vmem:[#allocation3 + $0x24] sm:$0xf]
        %v396 = vld [vmem:[#allocation3 + $0x28] sm:$0xf]
        %v397 = vld [vmem:[#allocation3 + $0x2c] sm:$0xf]
        %v398 = vld [vmem:[#allocation3 + $0x30] sm:$0xf]
        %v399 = vld [vmem:[#allocation3 + $0x34] sm:$0xf]
        %v400 = vld [vmem:[#allocation3 + $0x38] sm:$0xf]
        %v401 = vld [vmem:[#allocation3 + $0x3c] sm:$0xf]
        %v402 = vld [vmem:[#allocation3 + $0x40] sm:$0xf]
        %v403 = vld [vmem:[#allocation3 + $0x44] sm:$0xf]
        %v404 = vld [vmem:[#allocation3 + $0x48] sm:$0xf]
        %v405 = vld [vmem:[#allocation3 + $0x4c] sm:$0xf]
        %v406 = vld [vmem:[#allocation3 + $0x50] sm:$0xf]
        %v407 = vld [vmem:[#allocation3 + $0x54] sm:$0xf]
        %v408 = vld [vmem:[#allocation3 + $0x58] sm:$0xf]
        %v409 = vld [vmem:[#allocation3 + $0x5c] sm:$0xf]
        %v410 = vld [vmem:[#allocation3 + $0x60] sm:$0xf]
        %v411 = vld [vmem:[#allocation3 + $0x64] sm:$0xf]
        %v412 = vld [vmem:[#allocation3 + $0x68] sm:$0xf]
        %v413 = vld [vmem:[#allocation3 + $0x6c] sm:$0xf]
        %v414 = vld [vmem:[#allocation3 + $0x70] sm:$0xf]
        %v415 = vld [vmem:[#allocation3 + $0x74] sm:$0xf]
        %v416 = vld [vmem:[#allocation3 + $0x78] sm:$0xf]
        %v417 = vld [vmem:[#allocation3 + $0x7c] sm:$0xf]
        %v418 = vld [vmem:[#allocation3 + $0x80] sm:$0xf]
        %v419 = vld [vmem:[#allocation3 + $0x84] sm:$0xf]
        %v420 = vld [vmem:[#allocation3 + $0x88] sm:$0xf]
        %v421 = vld [vmem:[#allocation3 + $0x8c] sm:$0xf]
        %v422 = vld [vmem:[#allocation3 + $0x90] sm:$0xf]
        %v423 = vld [vmem:[#allocation3 + $0x94] sm:$0xf]
        %v424 = vld [vmem:[#allocation3 + $0x98] sm:$0xf]
        %v425 = vld [vmem:[#allocation3 + $0x9c] sm:$0xf]
        %v426 = vld [vmem:[#allocation3 + $0xa0] sm:$0xf]
        %v427 = vld [vmem:[#allocation3 + $0xa4] sm:$0xf]
        %v428 = vld [vmem:[#allocation3 + $0xa8] sm:$0xf]
        %v429 = vld [vmem:[#allocation3 + $0xac] sm:$0xf]
        %v430 = vld [vmem:[#allocation3 + $0xb0] sm:$0xf]
        %v431 = vld [vmem:[#allocation3 + $0xb4] sm:$0xf]
        %v432 = vld [vmem:[#allocation3 + $0xb8] sm:$0xf]
        %v433 = vld [vmem:[#allocation3 + $0xbc] sm:$0xf]
        %v434 = vld [vmem:[#allocation5] sm:$0x1]
        %v436 = vperm.slane %v434, 0
        %v486 = vunpack.c.l.b16 %v386
        %v487 = vunpack.c.l.b16 %v387
        %v488 = vunpack.c.l.b16 %v388
        %v489 = vunpack.c.l.b16 %v389
        %v490 = vunpack.c.l.b16 %v390
        %v491 = vunpack.c.l.b16 %v391
        %v492 = vunpack.c.l.b16 %v392
        %v493 = vunpack.c.l.b16 %v393
        %v494 = vunpack.c.l.b16 %v394
        %v495 = vunpack.c.l.b16 %v395
        %v496 = vunpack.c.l.b16 %v396
        %v497 = vunpack.c.l.b16 %v397
        %v498 = vunpack.c.l.b16 %v398
        %v499 = vunpack.c.l.b16 %v399
        %v500 = vunpack.c.l.b16 %v400
        %v501 = vunpack.c.l.b16 %v401
        %v502 = vunpack.c.l.b16 %v402
        %v503 = vunpack.c.l.b16 %v403
        %v504 = vunpack.c.l.b16 %v404
        %v505 = vunpack.c.l.b16 %v405
        %v506 = vunpack.c.l.b16 %v406
        %v507 = vunpack.c.l.b16 %v407
        %v508 = vunpack.c.l.b16 %v408
        %v509 = vunpack.c.l.b16 %v409
        %v510 = vunpack.c.l.b16 %v410
        %v511 = vunpack.c.l.b16 %v411
        %v512 = vunpack.c.l.b16 %v412
        %v513 = vunpack.c.l.b16 %v413
        %v514 = vunpack.c.l.b16 %v414
        %v515 = vunpack.c.l.b16 %v415
        %v516 = vunpack.c.l.b16 %v416
        %v517 = vunpack.c.l.b16 %v417
        %v518 = vunpack.c.l.b16 %v418
        %v519 = vunpack.c.l.b16 %v419
        %v520 = vunpack.c.l.b16 %v420
        %v521 = vunpack.c.l.b16 %v421
        %v522 = vunpack.c.l.b16 %v422
        %v523 = vunpack.c.l.b16 %v423
        %v524 = vunpack.c.l.b16 %v424
        %v525 = vunpack.c.l.b16 %v425
        %v526 = vunpack.c.l.b16 %v426
        %v527 = vunpack.c.l.b16 %v427
        %v528 = vunpack.c.l.b16 %v428
        %v529 = vunpack.c.l.b16 %v429
        %v530 = vunpack.c.l.b16 %v430
        %v531 = vunpack.c.l.b16 %v431
        %v532 = vunpack.c.l.b16 %v432
        %v533 = vunpack.c.l.b16 %v433
        %v534 = vpack.c.b16 %v487, %v486
        %v535 = vpack.c.b16 %v489, %v488
        %v536 = vpack.c.b16 %v491, %v490
        %v537 = vpack.c.b16 %v493, %v492
        %v538 = vpack.c.b16 %v495, %v494
        %v539 = vpack.c.b16 %v497, %v496
        %v540 = vpack.c.b16 %v499, %v498
        %v541 = vpack.c.b16 %v501, %v500
        %v542 = vpack.c.b16 %v503, %v502
        %v543 = vpack.c.b16 %v505, %v504
        %v544 = vpack.c.b16 %v507, %v506
        %v545 = vpack.c.b16 %v509, %v508
        %v546 = vpack.c.b16 %v511, %v510
        %v547 = vpack.c.b16 %v513, %v512
        %v548 = vpack.c.b16 %v515, %v514
        %v549 = vpack.c.b16 %v517, %v516
        %v550 = vpack.c.b16 %v519, %v518
        %v551 = vpack.c.b16 %v521, %v520
        %v552 = vpack.c.b16 %v523, %v522
        %v553 = vpack.c.b16 %v525, %v524
        %v554 = vpack.c.b16 %v527, %v526
        %v555 = vpack.c.b16 %v529, %v528
        %v556 = vpack.c.b16 %v531, %v530
        %v557 = vpack.c.b16 %v533, %v532
        %582 = vmatpush.bf16.msra.mxu0 %v541
        %583 = vmatpush.bf16.msra.mxu0 %v540
        %584 = vmatpush.bf16.msra.mxu0 %v539
        %585 = vmatpush.bf16.msra.mxu0 %v538
        %586 = vmatpush.bf16.msra.mxu0 %v537
        %587 = vmatpush.bf16.msra.mxu0 %v536
        %588 = vmatpush.bf16.msra.mxu0 %v535
        %589 = vmatpush.bf16.msra.mxu0 %v534
        %590 = vmatmul.bf16.gmra.mxu0 %v383
        %v591 = vpop.f32.mrf.mxu0
        %v592 = vadd.f32 %v436, %v591
        %v593 = vpop.f32.mrf.mxu0
        %v594 = vadd.f32 %v436, %v593
        %595 = vdwg.mxu0
        %596 = vmatpush.bf16.msra.mxu0 %v549
        %597 = vmatpush.bf16.msra.mxu0 %v548
        %598 = vmatpush.bf16.msra.mxu0 %v547
        %599 = vmatpush.bf16.msra.mxu0 %v546
        %600 = vmatpush.bf16.msra.mxu0 %v545
        %601 = vmatpush.bf16.msra.mxu0 %v544
        %602 = vmatpush.bf16.msra.mxu0 %v543
        %603 = vmatpush.bf16.msra.mxu0 %v542
        %604 = vmatmul.bf16.gmra.mxu0 %v384
        %v605 = vpop.f32.mrf.mxu0
        %v606 = vadd.f32 %v592, %v605
        %v607 = vpop.f32.mrf.mxu0
        %v608 = vadd.f32 %v594, %v607
        %609 = vdwg.mxu0
        %610 = vmatpush.bf16.msra.mxu0 %v557
        %611 = vmatpush.bf16.msra.mxu0 %v556
        %612 = vmatpush.bf16.msra.mxu0 %v555
        %613 = vmatpush.bf16.msra.mxu0 %v554
        %614 = vmatpush.bf16.msra.mxu0 %v553
        %615 = vmatpush.bf16.msra.mxu0 %v552
        %616 = vmatpush.bf16.msra.mxu0 %v551
        %617 = vmatpush.bf16.msra.mxu0 %v550
        %618 = vmatmul.bf16.gmra.mxu0 %v385
        %v619 = vpop.f32.mrf.mxu0
        %v620 = vadd.f32 %v606, %v619
        %v621 = vpop.f32.mrf.mxu0
        %v622 = vadd.f32 %v608, %v621
        %623 = vdwg.mxu0
        %v624 = vadd.f32 %v372, %v620
        %v625 = vadd.f32 %v373, %v622
        %v626 = vld [vmem:[#allocation7] sm:$0x1]
        %v628 = vperm.slane %v626, 0
        %v630 = vmul.f32 %v624, %v628
        %v631 = vmul.f32 %v625, %v628
        %v632 = vld [vmem:[#allocation8] sm:$0x1]
        %v634 = vperm.slane %v632, 0
        %v636 = vadd.f32 %v630, %v634
        %v637 = vadd.f32 %v631, %v634
        %v638 = vadd.f32 %v372, %v636
        %v639 = vadd.f32 %v373, %v637
        %v640 = vld [vmem:[#allocation10] sm:$0x1]
        %v642 = vperm.slane %v640, 0
        %v644 = vmul.f32 %v638, %v642
        %v645 = vmul.f32 %v639, %v642
        %v646 = vld [vmem:[#allocation11] sm:$0x1]
        %v648 = vperm.slane %v646, 0
        %v650 = vadd.f32 %v644, %v648
        %v651 = vadd.f32 %v645, %v648
        %v652 = vpack.c.bf16 %v650, %v650
        %v653 = vpack.c.bf16 %v651, %v651
        %654 = vst [vmem:[%s368] sm:$0xf] %v652
        %655 = vst [vmem:[%s368 + $0x4] sm:$0xf] %v653
        %p656 = scmp.lt.s32.totalorder %s22, 1
        %s657 = scalar_select %p656, %s22, 1
        %s658 = smul.addr %s657, 2
        %s659 = smul.addr %s658, 4
        %s660 = scalar_lea.vmem %s7, %s659
        // Predicated region
        $region73: #{encoder_afcm_block.6} parent=47 // pred_check
          %p661 = pneg %p192
        $region74: #{encoder_afcm_block.6} parent=47 // pred_check_branch
          %663 = sbr.rel (%p661) target = $region76
        $region75: #{encoder_afcm_block.6} parent=47 // pred_region
          _
        $region76: #{encoder_afcm_block.6} parent=47 // pred_fallthru
          _
      $region48: #{encoder_afcm_block.6} parent=5 // pred_fallthru
        _
      %p664 = scmp.le.s32.totalorder 2, %s17
      // Predicated region
      $region77: #{encoder_afcm_block.6} parent=5 // pred_check
        %p665 = pneg %p664
      $region78: #{encoder_afcm_block.6} parent=5 // pred_check_branch
        %667 = sbr.rel (%p665) target = $region80
      $region79: #{encoder_afcm_block.6} parent=5 // pred_region
        %s668 = ssub.s32 %s17, 2
        // Predicated region
        $region81: #{encoder_afcm_block.6} parent=79 // pred_check
          %p669 = pneg %p198
        $region82: #{encoder_afcm_block.6} parent=79 // pred_check_branch
          %671 = sbr.rel (%p669) target = $region84
        $region83: #{encoder_afcm_block.6} parent=79 // pred_region
          %p672 = scmp.lt.s32.totalorder %s23, 1
          %s673 = scalar_select %p672, %s23, 1
          %s674 = smul.addr %s673, 2
          %s675 = smul.addr %s674, 4
          %s676 = scalar_lea.vmem %s7, %s675
        $region84: #{encoder_afcm_block.6} parent=79 // pred_fallthru
          _
      $region80: #{encoder_afcm_block.6} parent=5 // pred_fallthru
        _
    $region6: #{encoder_afcm_block.6} parent=1 // loop_footer
      %s21 = sadd.s32 1, %s17
    $region7: #{encoder_afcm_block.6} parent=1 // loop_footer_branch
      %16 = sbr.rel target = $region3
    $region8: #{encoder_afcm_block.6} parent=1 // loop_exit
      _
    %677 = vsyncpa [#allocation4], 1
    %s678 = scalar_lea.sflag [#allocation4], 1
    %679 = vsyncpa %s678, 1
    %680 = vsyncpa [#allocation6], 1
    %681 = vsyncpa [#allocation9], 1
    %682 = vsyncpa [#allocation12], 1

// kernel: encoder_afcm_block.4
$region0: #{encoder_afcm_block.4}
  #allocation0 [shape = 'u32[]', space=smem, size = 0x4, offset = 0x4, fixed_abs, tag = 'smem constant byte address 0x4 - core index']
  #allocation1 [shape = 'u32[72,128]{1,0:T(1,128)}', space=vmem, size = 0x9000, scoped, tag = 'internal scratch']
  %s0 = inlined_call_operand.hbm [shape: f32[2,16,128], index: 0, kind: input, shape index: {}]
  %s1 = inlined_call_operand.hbm [shape: bf16[128,384], index: 1, kind: input, shape index: {}]
  %s2 = inlined_call_operand.hbm [shape: f32[1,384], index: 2, kind: input, shape index: {}]
  %s3 = inlined_call_operand.hbm [shape: bf16[128,128], index: 3, kind: input, shape index: {}]
  %s4 = inlined_call_operand.hbm [shape: f32[1,128], index: 4, kind: input, shape index: {}]
  %s5 = inlined_call_operand.hbm [shape: f32[1,128], index: 5, kind: input, shape index: {}]
  %s6 = inlined_call_operand.hbm [shape: f32[1,128], index: 6, kind: input, shape index: {}]
  %s7 = inlined_call_operand.vmem [shape: bf16[2,16,128], index: 7, kind: output, shape index: {}]
  %s8 = sld [smem:[#allocation0]]
  $region89: #{encoder_afcm_block.4} parent=0
    _
  %s10 = ssub.s32 1, %s8
  %s11 = scalar_select 0, %s10, %s8
  $region1: #{encoder_afcm_block.4} parent=0
    #allocation2 [shape = 'u8[16384]{0}', space=vmem, size = 0x4000, scoped, tag = 'input window, operand 0']
    #allocation3 [shape = 's32[2]{0}', space=sflag, size = 0x8, scoped, tag = 'scoped memory for encoder_afcm_block.4']
    #allocation4 [shape = 'u8[98304]{0}', space=vmem, size = 0x18000, scoped, tag = 'input window, operand 1, single buffered']
    #allocation5 [shape = 's32[1]{0}', space=sflag, size = 0x4, scoped, tag = 'scoped memory for encoder_afcm_block.4']
    #allocation6 [shape = 'u8[1536]{0}', space=vmem, size = 0x800, scoped, tag = 'input window, operand 2, single buffered']
    #allocation7 [shape = 'u8[32768]{0}', space=vmem, size = 0x8000, scoped, tag = 'input window, operand 3, single buffered']
    #allocation8 [shape = 's32[1]{0}', space=sflag, size = 0x4, scoped, tag = 'scoped memory for encoder_afcm_block.4']
    #allocation9 [shape = 'u8[512]{0}', space=vmem, size = 0x400, scoped, tag = 'input window, operand 4, single buffered']
    #allocation10 [shape = 'u8[512]{0}', space=vmem, size = 0x400, scoped, tag = 'input window, operand 5, single buffered']
    #allocation11 [shape = 's32[1]{0}', space=sflag, size = 0x4, scoped, tag = 'scoped memory for encoder_afcm_block.4']
    #allocation12 [shape = 'u8[512]{0}', space=vmem, size = 0x400, scoped, tag = 'input window, operand 6, single buffered']
    %12 = vsyncpa [#allocation3], 0
    %s13 = scalar_lea.sflag [#allocation3], 1
    %14 = vsyncpa %s13, 0
    %15 = vsyncpa [#allocation5], 0
    %16 = vsyncpa [#allocation8], 0
    %17 = vsyncpa [#allocation11], 0
    loop: start=0, step=1, limit=4
    $region2: #{encoder_afcm_block.4} parent=1 // loop_pre_header
      _
    $region3: #{encoder_afcm_block.4} parent=1 // loop_header
      %s19 = sphi 0, %s23
      %p20 = scmp.ge.s32.totalorder %s19, 4
      %s29 = sphi 0, %s31
      %s32 = sphi 0, %s29
      %s33 = sphi 0, %s32
      %s49 = sphi 0, %s33
      %s53 = sphi 0, %s53
      %s55 = sphi 0, %s53
      %s56 = sphi 0, %s55
      %s70 = sphi 0, %s56
      %s74 = sphi 0, %s74
      %s76 = sphi 0, %s74
      %s77 = sphi 0, %s76
      %s91 = sphi 0, %s77
      %s95 = sphi 0, %s95
      %s97 = sphi 0, %s95
      %s98 = sphi 0, %s97
      %s112 = sphi 0, %s98
      %s116 = sphi 0, %s116
      %s118 = sphi 0, %s116
      %s119 = sphi 0, %s118
      %s133 = sphi 0, %s119
      %s137 = sphi 0, %s137
      %s139 = sphi 0, %s137
      %s140 = sphi 0, %s139
      %s154 = sphi 0, %s140
      %s158 = sphi 0, %s158
      %s160 = sphi 0, %s158
      %s161 = sphi 0, %s160
      %s175 = sphi 0, %s161
      %s181 = sphi 0, %s183
      %s184 = sphi 0, %s181
      %s185 = sphi 0, %s184
      %s201 = sphi 0, %s185
    $region4: #{encoder_afcm_block.4} parent=1 // loop_header_branch
      %22 = sbr.rel (%p20) target = $region8
    $region5: #{encoder_afcm_block.4} parent=1 // loop_body
      %s24 = ssub.s32 %s19, 1
      %s25 = ssub.s32 %s19, 2
      %s26 = sadd.s32 %s19, 1
      %s27 = ssub.s32 %s19, %s26
      %p28 = scmp.eq.s32.totalorder %s27, 0
      %s30 = sadd.s32 %s29, 1
      %s31 = scalar_select %p28, %s29, %s30
      %p34 = pneg %p28
      %p35 = scmp.eq.s32.totalorder %s19, 1
      %p36 = por %p34, %p35
      %p37 = scmp.ne.s32.totalorder %s29, %s32
      %p38 = scmp.eq.s32.totalorder %s19, 0
      %p39 = por %p37, %p38
      %p40 = scmp.ne.s32.totalorder %s29, %s32
      %p41 = scmp.eq.s32.totalorder %s24, 1
      %p42 = por %p40, %p41
      %p43 = scmp.ne.s32.totalorder %s32, %s33
      %p44 = scmp.eq.s32.totalorder %s24, 0
      %p45 = por %p43, %p44
      %p46 = scmp.ne.s32.totalorder %s32, %s33
      %p47 = scmp.eq.s32.totalorder %s25, 1
      %p48 = por %p46, %p47
      %p50 = scmp.ne.s32.totalorder %s33, %s49
      %p51 = scmp.eq.s32.totalorder %s25, 0
      %p52 = por %p50, %p51
      %s54 = sadd.s32 %s53, 1
      %p57 = scmp.eq.s32.totalorder %s19, 1
      %p58 = scmp.ne.s32.totalorder %s53, %s55
      %p59 = scmp.eq.s32.totalorder %s19, 0
      %p60 = por %p58, %p59
      %p61 = scmp.ne.s32.totalorder %s53, %s55
      %p62 = scmp.eq.s32.totalorder %s24, 1
      %p63 = por %p61, %p62
      %p64 = scmp.ne.s32.totalorder %s55, %s56
      %p65 = scmp.eq.s32.totalorder %s24, 0
      %p66 = por %p64, %p65
      %p67 = scmp.ne.s32.totalorder %s55, %s56
      %p68 = scmp.eq.s32.totalorder %s25, 1
      %p69 = por %p67, %p68
      %p71 = scmp.ne.s32.totalorder %s56, %s70
      %p72 = scmp.eq.s32.totalorder %s25, 0
      %p73 = por %p71, %p72
      %s75 = sadd.s32 %s74, 1
      %p78 = scmp.eq.s32.totalorder %s19, 1
      %p79 = scmp.ne.s32.totalorder %s74, %s76
      %p80 = scmp.eq.s32.totalorder %s19, 0
      %p81 = por %p79, %p80
      %p82 = scmp.ne.s32.totalorder %s74, %s76
      %p83 = scmp.eq.s32.totalorder %s24, 1
      %p84 = por %p82, %p83
      %p85 = scmp.ne.s32.totalorder %s76, %s77
      %p86 = scmp.eq.s32.totalorder %s24, 0
      %p87 = por %p85, %p86
      %p88 = scmp.ne.s32.totalorder %s76, %s77
      %p89 = scmp.eq.s32.totalorder %s25, 1
      %p90 = por %p88, %p89
      %p92 = scmp.ne.s32.totalorder %s77, %s91
      %p93 = scmp.eq.s32.totalorder %s25, 0
      %p94 = por %p92, %p93
      %s96 = sadd.s32 %s95, 1
      %p99 = scmp.eq.s32.totalorder %s19, 1
      %p100 = scmp.ne.s32.totalorder %s95, %s97
      %p101 = scmp.eq.s32.totalorder %s19, 0
      %p102 = por %p100, %p101
      %p103 = scmp.ne.s32.totalorder %s95, %s97
      %p104 = scmp.eq.s32.totalorder %s24, 1
      %p105 = por %p103, %p104
      %p106 = scmp.ne.s32.totalorder %s97, %s98
      %p107 = scmp.eq.s32.totalorder %s24, 0
      %p108 = por %p106, %p107
      %p109 = scmp.ne.s32.totalorder %s97, %s98
      %p110 = scmp.eq.s32.totalorder %s25, 1
      %p111 = por %p109, %p110
      %p113 = scmp.ne.s32.totalorder %s98, %s112
      %p114 = scmp.eq.s32.totalorder %s25, 0
      %p115 = por %p113, %p114
      %s117 = sadd.s32 %s116, 1
      %p120 = scmp.eq.s32.totalorder %s19, 1
      %p121 = scmp.ne.s32.totalorder %s116, %s118
      %p122 = scmp.eq.s32.totalorder %s19, 0
      %p123 = por %p121, %p122
      %p124 = scmp.ne.s32.totalorder %s116, %s118
      %p125 = scmp.eq.s32.totalorder %s24, 1
      %p126 = por %p124, %p125
      %p127 = scmp.ne.s32.totalorder %s118, %s119
      %p128 = scmp.eq.s32.totalorder %s24, 0
      %p129 = por %p127, %p128
      %p130 = scmp.ne.s32.totalorder %s118, %s119
      %p131 = scmp.eq.s32.totalorder %s25, 1
      %p132 = por %p130, %p131
      %p134 = scmp.ne.s32.totalorder %s119, %s133
      %p135 = scmp.eq.s32.totalorder %s25, 0
      %p136 = por %p134, %p135
      %s138 = sadd.s32 %s137, 1
      %p141 = scmp.eq.s32.totalorder %s19, 1
      %p142 = scmp.ne.s32.totalorder %s137, %s139
      %p143 = scmp.eq.s32.totalorder %s19, 0
      %p144 = por %p142, %p143
      %p145 = scmp.ne.s32.totalorder %s137, %s139
      %p146 = scmp.eq.s32.totalorder %s24, 1
      %p147 = por %p145, %p146
      %p148 = scmp.ne.s32.totalorder %s139, %s140
      %p149 = scmp.eq.s32.totalorder %s24, 0
      %p150 = por %p148, %p149
      %p151 = scmp.ne.s32.totalorder %s139, %s140
      %p152 = scmp.eq.s32.totalorder %s25, 1
      %p153 = por %p151, %p152
      %p155 = scmp.ne.s32.totalorder %s140, %s154
      %p156 = scmp.eq.s32.totalorder %s25, 0
      %p157 = por %p155, %p156
      %s159 = sadd.s32 %s158, 1
      %p162 = scmp.eq.s32.totalorder %s19, 1
      %p163 = scmp.ne.s32.totalorder %s158, %s160
      %p164 = scmp.eq.s32.totalorder %s19, 0
      %p165 = por %p163, %p164
      %p166 = scmp.ne.s32.totalorder %s158, %s160
      %p167 = scmp.eq.s32.totalorder %s24, 1
      %p168 = por %p166, %p167
      %p169 = scmp.ne.s32.totalorder %s160, %s161
      %p170 = scmp.eq.s32.totalorder %s24, 0
      %p171 = por %p169, %p170
      %p172 = scmp.ne.s32.totalorder %s160, %s161
      %p173 = scmp.eq.s32.totalorder %s25, 1
      %p174 = por %p172, %p173
      %p176 = scmp.ne.s32.totalorder %s161, %s175
      %p177 = scmp.eq.s32.totalorder %s25, 0
      %p178 = por %p176, %p177
      %s179 = ssub.s32 %s19, %s26
      %p180 = scmp.eq.s32.totalorder %s179, 0
      %s182 = sadd.s32 %s181, 1
      %s183 = scalar_select %p180, %s181, %s182
      %p186 = pneg %p180
      %p187 = scmp.eq.s32.totalorder %s19, 1
      %p188 = por %p186, %p187
      %p189 = scmp.ne.s32.totalorder %s181, %s184
      %p190 = scmp.eq.s32.totalorder %s19, 0
      %p191 = por %p189, %p190
      %p192 = scmp.ne.s32.totalorder %s181, %s184
      %p193 = scmp.eq.s32.totalorder %s24, 1
      %p194 = por %p192, %p193
      %p195 = scmp.ne.s32.totalorder %s184, %s185
      %p196 = scmp.eq.s32.totalorder %s24, 0
      %p197 = por %p195, %p196
      %p198 = scmp.ne.s32.totalorder %s184, %s185
      %p199 = scmp.eq.s32.totalorder %s25, 1
      %p200 = por %p198, %p199
      %p202 = scmp.ne.s32.totalorder %s185, %s201
      %p203 = scmp.eq.s32.totalorder %s25, 0
      %p204 = por %p202, %p203
      %p205 = scmp.le.s32.totalorder 1, %s19
      %p206 = scmp.lt.s32.totalorder %s19, 3
      %p207 = pnand %p205, %p206
      %p208 = pneg %p207
      // Predicated region
      $region9: #{encoder_afcm_block.4} parent=5 // pred_check
        _
      $region10: #{encoder_afcm_block.4} parent=5 // pred_check_branch
        %210 = sbr.rel (%p207) target = $region12
      $region11: #{encoder_afcm_block.4} parent=5 // pred_region
        %s211 = ssub.s32 %s19, 1
        // Predicated region
        $region13: #{encoder_afcm_block.4} parent=11 // pred_check
          %p212 = pneg %p66
        $region14: #{encoder_afcm_block.4} parent=11 // pred_check_branch
          %214 = sbr.rel (%p212) target = $region16
        $region15: #{encoder_afcm_block.4} parent=11 // pred_region
          %216 = vsyncadd [#allocation5], 0
          %s217 = sshll.u32 %s1, 4
          %s218 = int_to_ptr.hbm [resolvable:$true] %s217
          %s219 = sshll.u32 [#allocation4], 4
          %s220 = int_to_ptr.vmem [resolvable:$true] %s219
          %225 = dma.hbm_to_vmem [thread:$0]  %s218, 3072, %s220, [#allocation5], 192, 192, 12
        $region16: #{encoder_afcm_block.4} parent=11 // pred_fallthru
          _
        // Predicated region
        $region17: #{encoder_afcm_block.4} parent=11 // pred_check
          %p226 = pneg %p87
        $region18: #{encoder_afcm_block.4} parent=11 // pred_check_branch
          %228 = sbr.rel (%p226) target = $region20
        $region19: #{encoder_afcm_block.4} parent=11 // pred_region
          %230 = vsyncadd [#allocation5], 0
          %s232 = sshll.u32 %s2, 4
          %s233 = int_to_ptr.hbm [resolvable:$true] %s232
          %s234 = sshll.u32 [#allocation6], 4
          %s235 = int_to_ptr.vmem [resolvable:$true] %s234
          %237 = dma.hbm_to_vmem [thread:$0]  %s233, 48, %s235, [#allocation5]
        $region20: #{encoder_afcm_block.4} parent=11 // pred_fallthru
          _
        // Predicated region
        $region21: #{encoder_afcm_block.4} parent=11 // pred_check
          %p238 = pneg %p108
        $region22: #{encoder_afcm_block.4} parent=11 // pred_check_branch
          %240 = sbr.rel (%p238) target = $region24
        $region23: #{encoder_afcm_block.4} parent=11 // pred_region
          %242 = vsyncadd [#allocation8], 0
          %s243 = sshll.u32 %s3, 4
          %s244 = int_to_ptr.hbm [resolvable:$true] %s243
          %s245 = sshll.u32 [#allocation7], 4
          %s246 = int_to_ptr.vmem [resolvable:$true] %s245
          %251 = dma.hbm_to_vmem [thread:$0]  %s244, 1024, %s246, [#allocation8], 64, 64, 4
        $region24: #{encoder_afcm_block.4} parent=11 // pred_fallthru
          _
        // Predicated region
        $region25: #{encoder_afcm_block.4} parent=11 // pred_check
          %p252 = pneg %p129
        $region26: #{encoder_afcm_block.4} parent=11 // pred_check_branch
          %254 = sbr.rel (%p252) target = $region28
        $region27: #{encoder_afcm_block.4} parent=11 // pred_region
          %256 = vsyncadd [#allocation8], 0
          %s258 = sshll.u32 %s4, 4
          %s259 = int_to_ptr.hbm [resolvable:$true] %s258
          %s260 = sshll.u32 [#allocation9], 4
          %s261 = int_to_ptr.vmem [resolvable:$true] %s260
          %263 = dma.hbm_to_vmem [thread:$0]  %s259, 16, %s261, [#allocation8]
        $region28: #{encoder_afcm_block.4} parent=11 // pred_fallthru
          _
        // Predicated region
        $region29: #{encoder_afcm_block.4} parent=11 // pred_check
          %p264 = pneg %p150
        $region30: #{encoder_afcm_block.4} parent=11 // pred_check_branch
          %266 = sbr.rel (%p264) target = $region32
        $region31: #{encoder_afcm_block.4} parent=11 // pred_region
          %268 = vsyncadd [#allocation11], 0
          %s270 = sshll.u32 %s5, 4
          %s271 = int_to_ptr.hbm [resolvable:$true] %s270
          %s272 = sshll.u32 [#allocation10], 4
          %s273 = int_to_ptr.vmem [resolvable:$true] %s272
          %275 = dma.hbm_to_vmem [thread:$0]  %s271, 16, %s273, [#allocation11]
        $region32: #{encoder_afcm_block.4} parent=11 // pred_fallthru
          _
        // Predicated region
        $region33: #{encoder_afcm_block.4} parent=11 // pred_check
          %p276 = pneg %p171
        $region34: #{encoder_afcm_block.4} parent=11 // pred_check_branch
          %278 = sbr.rel (%p276) target = $region36
        $region35: #{encoder_afcm_block.4} parent=11 // pred_region
          %280 = vsyncadd [#allocation11], 0
          %s282 = sshll.u32 %s6, 4
          %s283 = int_to_ptr.hbm [resolvable:$true] %s282
          %s284 = sshll.u32 [#allocation12], 4
          %s285 = int_to_ptr.vmem [resolvable:$true] %s284
          %287 = dma.hbm_to_vmem [thread:$0]  %s283, 16, %s285, [#allocation11]
        $region36: #{encoder_afcm_block.4} parent=11 // pred_fallthru
          _
      $region12: #{encoder_afcm_block.4} parent=5 // pred_fallthru
        _
      %p288 = scmp.lt.s32.totalorder %s19, 2
      // Predicated region
      $region37: #{encoder_afcm_block.4} parent=5 // pred_check
        %p289 = pneg %p288
      $region38: #{encoder_afcm_block.4} parent=5 // pred_check_branch
        %291 = sbr.rel (%p289) target = $region40
      $region39: #{encoder_afcm_block.4} parent=5 // pred_region
        // Predicated region
        $region41: #{encoder_afcm_block.4} parent=39 // pred_check
          %p292 = pneg %p39
        $region42: #{encoder_afcm_block.4} parent=39 // pred_check_branch
          %294 = sbr.rel (%p292) target = $region44
        $region43: #{encoder_afcm_block.4} parent=39 // pred_region
          %s295 = sand.u32 %s29, 1
          %s296 = scalar_lea.sflag [#allocation3], %s295
          %s297 = sand.u32 %s29, 1
          %s298 = smul.addr %s297, 16
          %s299 = scalar_lea.vmem [#allocation2], %s298
          %301 = vsyncadd %s296, 0
          %s302 = smul.addr %s19, 2
          %s303 = smul.addr %s302, 8
          %s304 = scalar_lea.hbm %s0, %s303
          %s305 = sshll.u32 %s304, 4
          %s306 = int_to_ptr.hbm [resolvable:$true] %s305
          %s307 = sshll.u32 %s299, 4
          %s308 = int_to_ptr.vmem [resolvable:$true] %s307
          %313 = dma.hbm_to_vmem [thread:$0]  %s306, 256, %s308, %s296, 128, 128, 8
        $region44: #{encoder_afcm_block.4} parent=39 // pred_fallthru
          _
      $region40: #{encoder_afcm_block.4} parent=5 // pred_fallthru
        _
      %p314 = scmp.le.s32.totalorder 1, %s19
      %p315 = scmp.lt.s32.totalorder %s19, 3
      %p316 = pnand %p314, %p315
      %p317 = pneg %p316
      // Predicated region
      $region45: #{encoder_afcm_block.4} parent=5 // pred_check
        _
      $region46: #{encoder_afcm_block.4} parent=5 // pred_check_branch
        %319 = sbr.rel (%p316) target = $region48
      $region47: #{encoder_afcm_block.4} parent=5 // pred_region
        %s320 = ssub.s32 %s19, 1
        %s321 = sand.u32 %s32, 1
        %s322 = scalar_lea.sflag [#allocation3], %s321
        %s323 = sand.u32 %s32, 1
        %s324 = smul.addr %s323, 16
        %s325 = scalar_lea.vmem [#allocation2], %s324
        // Predicated region
        $region49: #{encoder_afcm_block.4} parent=47 // pred_check
          %p326 = pneg %p45
        $region50: #{encoder_afcm_block.4} parent=47 // pred_check_branch
          %328 = sbr.rel (%p326) target = $region52
        $region51: #{encoder_afcm_block.4} parent=47 // pred_region
          %330 = dma.done %s322, 256
        $region52: #{encoder_afcm_block.4} parent=47 // pred_fallthru
          _
        // Predicated region
        $region53: #{encoder_afcm_block.4} parent=47 // pred_check
          %p331 = pneg %p66
        $region54: #{encoder_afcm_block.4} parent=47 // pred_check_branch
          %333 = sbr.rel (%p331) target = $region56
        $region55: #{encoder_afcm_block.4} parent=47 // pred_region
          %335 = dma.done [#allocation5], 3072
        $region56: #{encoder_afcm_block.4} parent=47 // pred_fallthru
          _
        // Predicated region
        $region57: #{encoder_afcm_block.4} parent=47 // pred_check
          %p336 = pneg %p87
        $region58: #{encoder_afcm_block.4} parent=47 // pred_check_branch
          %338 = sbr.rel (%p336) target = $region60
        $region59: #{encoder_afcm_block.4} parent=47 // pred_region
          %340 = dma.done [#allocation5], 48
        $region60: #{encoder_afcm_block.4} parent=47 // pred_fallthru
          _
        // Predicated region
        $region61: #{encoder_afcm_block.4} parent=47 // pred_check
          %p341 = pneg %p108
        $region62: #{encoder_afcm_block.4} parent=47 // pred_check_branch
          %343 = sbr.rel (%p341) target = $region64
        $region63: #{encoder_afcm_block.4} parent=47 // pred_region
          %345 = dma.done [#allocation8], 1024
        $region64: #{encoder_afcm_block.4} parent=47 // pred_fallthru
          _
        // Predicated region
        $region65: #{encoder_afcm_block.4} parent=47 // pred_check
          %p346 = pneg %p129
        $region66: #{encoder_afcm_block.4} parent=47 // pred_check_branch
          %348 = sbr.rel (%p346) target = $region68
        $region67: #{encoder_afcm_block.4} parent=47 // pred_region
          %350 = dma.done [#allocation8], 16
        $region68: #{encoder_afcm_block.4} parent=47 // pred_fallthru
          _
        // Predicated region
        $region69: #{encoder_afcm_block.4} parent=47 // pred_check
          %p351 = pneg %p150
        $region70: #{encoder_afcm_block.4} parent=47 // pred_check_branch
          %353 = sbr.rel (%p351) target = $region72
        $region71: #{encoder_afcm_block.4} parent=47 // pred_region
          %355 = dma.done [#allocation11], 16
        $region72: #{encoder_afcm_block.4} parent=47 // pred_fallthru
          _
        // Predicated region
        $region73: #{encoder_afcm_block.4} parent=47 // pred_check
          %p356 = pneg %p171
        $region74: #{encoder_afcm_block.4} parent=47 // pred_check_branch
          %358 = sbr.rel (%p356) target = $region76
        $region75: #{encoder_afcm_block.4} parent=47 // pred_region
          %360 = dma.done [#allocation11], 16
        $region76: #{encoder_afcm_block.4} parent=47 // pred_fallthru
          _
        %s361 = sand.u32 %s32, 1
        %s362 = scalar_lea.sflag [#allocation3], %s361
        %s363 = sand.u32 %s32, 1
        %s364 = smul.addr %s363, 16
        %s365 = scalar_lea.vmem [#allocation2], %s364
        %p366 = pneg %p45
        %p367 = pneg %p42
        %p368 = pneg %p66
        %p369 = pneg %p63
        %p370 = pneg %p87
        %p371 = pneg %p84
        %p372 = pneg %p108
        %p373 = pneg %p105
        %p374 = pneg %p129
        %p375 = pneg %p126
        %p376 = pneg %p150
        %p377 = pneg %p147
        %p378 = pneg %p171
        %p379 = pneg %p168
        %p380 = pneg %p197
        %p381 = pneg %p194
        %p382 = scmp.lt.s32.totalorder %s24, 1
        %s383 = scalar_select %p382, %s24, 1
        %s384 = smul.addr %s383, 2
        %s385 = smul.addr %s384, 4
        %s386 = scalar_lea.vmem %s7, %s385
        %p387 = scmp.lt.s32.totalorder %s24, 1
        %s388 = scalar_select %p387, %s24, 1
        %s389 = smul.addr %s388, 2
        %s390 = smul.addr %s389, 4
        %s391 = scalar_lea.vmem %s7, %s390
        %v393 = vld [vmem:[%s325] sm:$0xff]
        %v394 = vld [vmem:[%s325 + $0x8] sm:$0xff]
        %v395 = vpack.c.bf16 %v394, %v393
        %v396 = vld [vmem:[#allocation4] sm:$0xff]
        %v397 = vld [vmem:[#allocation4 + $0x8] sm:$0xf]
        %v398 = vld [vmem:[#allocation4 + $0xc] sm:$0xff]
        %v399 = vld [vmem:[#allocation4 + $0x14] sm:$0xf]
        %v400 = vld [vmem:[#allocation4 + $0x18] sm:$0xff]
        %v401 = vld [vmem:[#allocation4 + $0x20] sm:$0xf]
        %v402 = vld [vmem:[#allocation4 + $0x24] sm:$0xff]
        %v403 = vld [vmem:[#allocation4 + $0x2c] sm:$0xf]
        %v404 = vld [vmem:[#allocation4 + $0x30] sm:$0xff]
        %v405 = vld [vmem:[#allocation4 + $0x38] sm:$0xf]
        %v406 = vld [vmem:[#allocation4 + $0x3c] sm:$0xff]
        %v407 = vld [vmem:[#allocation4 + $0x44] sm:$0xf]
        %v408 = vld [vmem:[#allocation4 + $0x48] sm:$0xff]
        %v409 = vld [vmem:[#allocation4 + $0x50] sm:$0xf]
        %v410 = vld [vmem:[#allocation4 + $0x54] sm:$0xff]
        %v411 = vld [vmem:[#allocation4 + $0x5c] sm:$0xf]
        %v412 = vld [vmem:[#allocation4 + $0x60] sm:$0xff]
        %v413 = vld [vmem:[#allocation4 + $0x68] sm:$0xf]
        %v414 = vld [vmem:[#allocation4 + $0x6c] sm:$0xff]
        %v415 = vld [vmem:[#allocation4 + $0x74] sm:$0xf]
        %v416 = vld [vmem:[#allocation4 + $0x78] sm:$0xff]
        %v417 = vld [vmem:[#allocation4 + $0x80] sm:$0xf]
        %v418 = vld [vmem:[#allocation4 + $0x84] sm:$0xff]
        %v419 = vld [vmem:[#allocation4 + $0x8c] sm:$0xf]
        %v420 = vld [vmem:[#allocation4 + $0x90] sm:$0xff]
        %v421 = vld [vmem:[#allocation4 + $0x98] sm:$0xf]
        %v422 = vld [vmem:[#allocation4 + $0x9c] sm:$0xff]
        %v423 = vld [vmem:[#allocation4 + $0xa4] sm:$0xf]
        %v424 = vld [vmem:[#allocation4 + $0xa8] sm:$0xff]
        %v425 = vld [vmem:[#allocation4 + $0xb0] sm:$0xf]
        %v426 = vld [vmem:[#allocation4 + $0xb4] sm:$0xff]
        %v427 = vld [vmem:[#allocation4 + $0xbc] sm:$0xf]
        %v428 = vld [vmem:[#allocation6] sm:$0x7]
        %v430 = vperm.slane %v428, 0
        %v431 = vperm.slane %v428, 1
        %v432 = vperm.slane %v428, 2
        %v468 = vunpack.c.l.b16 %v396
        %v469 = vunpack.c.h.b16 %v396
        %v470 = vunpack.c.l.b16 %v397
        %v471 = vunpack.c.l.b16 %v398
        %v472 = vunpack.c.h.b16 %v398
        %v473 = vunpack.c.l.b16 %v399
        %v474 = vunpack.c.l.b16 %v400
        %v475 = vunpack.c.h.b16 %v400
        %v476 = vunpack.c.l.b16 %v401
        %v477 = vunpack.c.l.b16 %v402
        %v478 = vunpack.c.h.b16 %v402
        %v479 = vunpack.c.l.b16 %v403
        %v480 = vunpack.c.l.b16 %v404
        %v481 = vunpack.c.h.b16 %v404
        %v482 = vunpack.c.l.b16 %v405
        %v483 = vunpack.c.l.b16 %v406
        %v484 = vunpack.c.h.b16 %v406
        %v485 = vunpack.c.l.b16 %v407
        %v486 = vunpack.c.l.b16 %v408
        %v487 = vunpack.c.h.b16 %v408
        %v488 = vunpack.c.l.b16 %v409
        %v489 = vunpack.c.l.b16 %v410
        %v490 = vunpack.c.h.b16 %v410
        %v491 = vunpack.c.l.b16 %v411
        %v492 = vunpack.c.l.b16 %v412
        %v493 = vunpack.c.h.b16 %v412
        %v494 = vunpack.c.l.b16 %v413
        %v495 = vunpack.c.l.b16 %v414
        %v496 = vunpack.c.h.b16 %v414
        %v497 = vunpack.c.l.b16 %v415
        %v498 = vunpack.c.l.b16 %v416
        %v499 = vunpack.c.h.b16 %v416
        %v500 = vunpack.c.l.b16 %v417
        %v501 = vunpack.c.l.b16 %v418
        %v502 = vunpack.c.h.b16 %v418
        %v503 = vunpack.c.l.b16 %v419
        %v504 = vunpack.c.l.b16 %v420
        %v505 = vunpack.c.h.b16 %v420
        %v506 = vunpack.c.l.b16 %v421
        %v507 = vunpack.c.l.b16 %v422
        %v508 = vunpack.c.h.b16 %v422
        %v509 = vunpack.c.l.b16 %v423
        %v510 = vunpack.c.l.b16 %v424
        %v511 = vunpack.c.h.b16 %v424
        %v512 = vunpack.c.l.b16 %v425
        %v513 = vunpack.c.l.b16 %v426
        %v514 = vunpack.c.h.b16 %v426
        %v515 = vunpack.c.l.b16 %v427
        %v516 = vpack.c.b16 %v471, %v468
        %v517 = vpack.c.b16 %v472, %v469
        %v518 = vpack.c.b16 %v473, %v470
        %v519 = vpack.c.b16 %v477, %v474
        %v520 = vpack.c.b16 %v478, %v475
        %v521 = vpack.c.b16 %v479, %v476
        %v522 = vpack.c.b16 %v483, %v480
        %v523 = vpack.c.b16 %v484, %v481
        %v524 = vpack.c.b16 %v485, %v482
        %v525 = vpack.c.b16 %v489, %v486
        %v526 = vpack.c.b16 %v490, %v487
        %v527 = vpack.c.b16 %v491, %v488
        %v528 = vpack.c.b16 %v495, %v492
        %v529 = vpack.c.b16 %v496, %v493
        %v530 = vpack.c.b16 %v497, %v494
        %v531 = vpack.c.b16 %v501, %v498
        %v532 = vpack.c.b16 %v502, %v499
        %v533 = vpack.c.b16 %v503, %v500
        %v534 = vpack.c.b16 %v507, %v504
        %v535 = vpack.c.b16 %v508, %v505
        %v536 = vpack.c.b16 %v509, %v506
        %v537 = vpack.c.b16 %v513, %v510
        %v538 = vpack.c.b16 %v514, %v511
        %v539 = vpack.c.b16 %v515, %v512
        %564 = vmatpush.bf16.msra.mxu0 %v537
        %565 = vmatpush.bf16.msra.mxu0 %v534
        %566 = vmatpush.bf16.msra.mxu0 %v531
        %567 = vmatpush.bf16.msra.mxu0 %v528
        %568 = vmatpush.bf16.msra.mxu0 %v525
        %569 = vmatpush.bf16.msra.mxu0 %v522
        %570 = vmatpush.bf16.msra.mxu0 %v519
        %571 = vmatpush.bf16.msra.mxu0 %v516
        %572 = vmatmul.bf16.gmra.mxu0 %v395
        %v573 = vpop.f32.mrf.mxu0
        %v574 = vadd.f32 %v430, %v573
        %v575 = vpop.f32.mrf.mxu0
        %v576 = vadd.f32 %v430, %v575
        %577 = vdwg.mxu0
        %578 = vmatpush.bf16.msra.mxu0 %v538
        %579 = vmatpush.bf16.msra.mxu0 %v535
        %580 = vmatpush.bf16.msra.mxu0 %v532
        %581 = vmatpush.bf16.msra.mxu0 %v529
        %582 = vmatpush.bf16.msra.mxu0 %v526
        %583 = vmatpush.bf16.msra.mxu0 %v523
        %584 = vmatpush.bf16.msra.mxu0 %v520
        %585 = vmatpush.bf16.msra.mxu0 %v517
        %586 = vmatmul.bf16.gmra.mxu0 %v395
        %v587 = vpop.f32.mrf.mxu0
        %v588 = vadd.f32 %v431, %v587
        %v589 = vpop.f32.mrf.mxu0
        %v590 = vadd.f32 %v431, %v589
        %591 = vdwg.mxu0
        %592 = vmatpush.bf16.msra.mxu0 %v539
        %593 = vmatpush.bf16.msra.mxu0 %v536
        %594 = vmatpush.bf16.msra.mxu0 %v533
        %595 = vmatpush.bf16.msra.mxu0 %v530
        %596 = vmatpush.bf16.msra.mxu0 %v527
        %597 = vmatpush.bf16.msra.mxu0 %v524
        %598 = vmatpush.bf16.msra.mxu0 %v521
        %599 = vmatpush.bf16.msra.mxu0 %v518
        %600 = vmatmul.bf16.gmra.mxu0 %v395
        %v601 = vpop.f32.mrf.mxu0
        %v602 = vadd.f32 %v432, %v601
        %v603 = vpop.f32.mrf.mxu0
        %v604 = vadd.f32 %v432, %v603
        %605 = vdwg.mxu0
        %v606 = vmul.f32 %v574, 0.17677669
        %v607 = vmul.f32 %v576, 0.17677669
        %v608 = vpack.c.bf16 %v607, %v606
        %v609 = vpack.c.bf16 %v590, %v588
        %v610 = vpack.c.bf16 %v604, %v602
        %vm611 = vcmask 261120
        %v613 = vsel %vm611, %v608, 0
        %v616 = vsel %vm611, %v609, 0
        %618 = vmatpush.bf16.xpose.msra.mxu0 0
        %619 = vmatpush.bf16.xpose.msra.mxu0 0
        %620 = vmatpush.bf16.xpose.msra.mxu0 0
        %621 = vmatpush.bf16.xpose.msra.mxu0 0
        %622 = vmatpush.bf16.xpose.msra.mxu0 0
        %623 = vmatpush.bf16.xpose.msra.mxu0 0
        %624 = vmatpush.bf16.xpose.msra.mxu0 0
        %625 = vmatpush.bf16.xpose.msra.mxu0 %v616
        %626 = vmatmul.bf16.gmra.mxu0 %v613
        %v627 = vpop.f32.mrf.mxu0
        %v628 = vadd.f32 0.0, %v627
        %v629 = vpop.f32.mrf.mxu0
        %v630 = vadd.f32 0.0, %v629
        %631 = vdwg.mxu0
        %vm632 = vcmask 130048
        %v633 = vsel %vm632, %v628, -inf
        %634 = vmax.xlane.f32.xlu0 %v633
        %v635 = vpop.xlane.xlu0 %634
        %v636 = vsel %vm632, %v630, -inf
        %637 = vmax.xlane.f32.xlu0 %v636
        %v638 = vpop.xlane.xlu0 %637
        %v639 = vsub.f32 %v628, %v635
        %v640 = vsub.f32 %v630, %v638
        %v641 = vmul.f32 %v639, 1.442695
        %v642 = vpow.pop %v641
        %v643 = vmul.f32 %v640, 1.442695
        %v644 = vpow.pop %v643
        %v645 = vsel %vm632, %v642, 0.0
        %646 = vadd.xlane.f32.xlu0 %v645
        %v647 = vpop.xlane.xlu0 %646
        %v648 = vsel %vm632, %v644, 0.0
        %649 = vadd.xlane.f32.xlu0 %v648
        %v650 = vpop.xlane.xlu0 %649
        %v651 = vrcp.pop %v647
        %v652 = vmul.f32 %v647, %v651
        %v653 = vsub.f32 1.0, %v652
        %v654 = vmul.f32 %v651, %v653
        %v655 = vadd.f32 %v651, %v654
        %vm656 = vweird.f32 %v647
        %vm657 = vweird.f32 %v651
        %vm658 = vmor %vm656, %vm657
        %v659 = vsel %vm658, %v651, %v655
        %v660 = vand.u32 2147483647, %v647
        %vm661 = vcmp.eq.f32.partialorder %v660, 8.507059e+37
        %v662 = vand.u32 %v647, 2147483648
        %v663 = vor.u32 1.1754944e-38, %v662
        %v664 = vsel %vm661, %v663, %v659
        %v665 = vmul.f32 %v642, %v664
        %v666 = vrcp.pop %v650
        %v667 = vmul.f32 %v650, %v666
        %v668 = vsub.f32 1.0, %v667
        %v669 = vmul.f32 %v666, %v668
        %v670 = vadd.f32 %v666, %v669
        %vm671 = vweird.f32 %v650
        %vm672 = vweird.f32 %v666
        %vm673 = vmor %vm671, %vm672
        %v674 = vsel %vm673, %v666, %v670
        %v675 = vand.u32 2147483647, %v650
        %vm676 = vcmp.eq.f32.partialorder %v675, 8.507059e+37
        %v677 = vand.u32 %v650, 2147483648
        %v678 = vor.u32 1.1754944e-38, %v677
        %v679 = vsel %vm676, %v678, %v674
        %v680 = vmul.f32 %v644, %v679
        %v681 = vpack.c.bf16 %v680, %v665
        %v683 = vsel %vm632, %v681, 0
        %685 = vmatpush.bf16.msra.mxu0 0
        %686 = vmatpush.bf16.msra.mxu0 0
        %687 = vmatpush.bf16.msra.mxu0 0
        %688 = vmatpush.bf16.msra.mxu0 0
        %689 = vmatpush.bf16.msra.mxu0 0
        %690 = vmatpush.bf16.msra.mxu0 0
        %691 = vmatpush.bf16.msra.mxu0 0
        %692 = vmatpush.bf16.msra.mxu0 %v610
        %693 = vmatmul.bf16.gmra.mxu0 %v683
        %v694 = vpop.f32.mrf.mxu0
        %v695 = vadd.f32 0.0, %v694
        %v696 = vpop.f32.mrf.mxu0
        %v697 = vadd.f32 0.0, %v696
        %698 = vdwg.mxu0
        %700 = vrot.lane.b32.xlu0 %v608, 96
        %v701 = vpop.permute.xlu0 %700
        %703 = vrot.lane.b32.xlu0 %v609, 96
        %v704 = vpop.permute.xlu0 %703
        %v706 = vsel %vm611, %v701, 0
        %v709 = vsel %vm611, %v704, 0
        %711 = vmatpush.bf16.xpose.msra.mxu0 0
        %712 = vmatpush.bf16.xpose.msra.mxu0 0
        %713 = vmatpush.bf16.xpose.msra.mxu0 0
        %714 = vmatpush.bf16.xpose.msra.mxu0 0
        %715 = vmatpush.bf16.xpose.msra.mxu0 0
        %716 = vmatpush.bf16.xpose.msra.mxu0 0
        %717 = vmatpush.bf16.xpose.msra.mxu0 0
        %718 = vmatpush.bf16.xpose.msra.mxu0 %v709
        %719 = vmatmul.bf16.gmra.mxu0 %v706
        %v720 = vpop.f32.mrf.mxu0
        %v721 = vadd.f32 0.0, %v720
        %v722 = vpop.f32.mrf.mxu0
        %v723 = vadd.f32 0.0, %v722
        %724 = vdwg.mxu0
        %v725 = vsel %vm632, %v721, -inf
        %726 = vmax.xlane.f32.xlu0 %v725
        %v727 = vpop.xlane.xlu0 %726
        %v728 = vsel %vm632, %v723, -inf
        %729 = vmax.xlane.f32.xlu0 %v728
        %v730 = vpop.xlane.xlu0 %729
        %v731 = vsub.f32 %v721, %v727
        %v732 = vsub.f32 %v723, %v730
        %v733 = vmul.f32 %v731, 1.442695
        %v734 = vpow.pop %v733
        %v735 = vmul.f32 %v732, 1.442695
        %v736 = vpow.pop %v735
        %v737 = vsel %vm632, %v734, 0.0
        %738 = vadd.xlane.f32.xlu0 %v737
        %v739 = vpop.xlane.xlu0 %738
        %v740 = vsel %vm632, %v736, 0.0
        %741 = vadd.xlane.f32.xlu0 %v740
        %v742 = vpop.xlane.xlu0 %741
        %v743 = vrcp.pop %v739
        %v744 = vmul.f32 %v739, %v743
        %v745 = vsub.f32 1.0, %v744
        %v746 = vmul.f32 %v743, %v745
        %v747 = vadd.f32 %v743, %v746
        %vm748 = vweird.f32 %v739
        %vm749 = vweird.f32 %v743
        %vm750 = vmor %vm748, %vm749
        %v751 = vsel %vm750, %v743, %v747
        %v752 = vand.u32 2147483647, %v739
        %vm753 = vcmp.eq.f32.partialorder %v752, 8.507059e+37
        %v754 = vand.u32 %v739, 2147483648
        %v755 = vor.u32 1.1754944e-38, %v754
        %v756 = vsel %vm753, %v755, %v751
        %v757 = vmul.f32 %v734, %v756
        %v758 = vrcp.pop %v742
        %v759 = vmul.f32 %v742, %v758
        %v760 = vsub.f32 1.0, %v759
        %v761 = vmul.f32 %v758, %v760
        %v762 = vadd.f32 %v758, %v761
        %vm763 = vweird.f32 %v742
        %vm764 = vweird.f32 %v758
        %vm765 = vmor %vm763, %vm764
        %v766 = vsel %vm765, %v758, %v762
        %v767 = vand.u32 2147483647, %v742
        %vm768 = vcmp.eq.f32.partialorder %v767, 8.507059e+37
        %v769 = vand.u32 %v742, 2147483648
        %v770 = vor.u32 1.1754944e-38, %v769
        %v771 = vsel %vm768, %v770, %v766
        %v772 = vmul.f32 %v736, %v771
        %v773 = vpack.c.bf16 %v772, %v757
        %775 = vrot.lane.b32.xlu0 %v610, 96
        %v776 = vpop.permute.xlu0 %775
        %v779 = vsel %vm632, %v773, 0
        %781 = vmatpush.bf16.msra.mxu0 0
        %782 = vmatpush.bf16.msra.mxu0 0
        %783 = vmatpush.bf16.msra.mxu0 0
        %784 = vmatpush.bf16.msra.mxu0 0
        %785 = vmatpush.bf16.msra.mxu0 0
        %786 = vmatpush.bf16.msra.mxu0 0
        %787 = vmatpush.bf16.msra.mxu0 0
        %788 = vmatpush.bf16.msra.mxu0 %v776
        %789 = vmatmul.bf16.gmra.mxu0 %v779
        %v790 = vpop.f32.mrf.mxu0
        %v791 = vadd.f32 0.0, %v790
        %v792 = vpop.f32.mrf.mxu0
        %v793 = vadd.f32 0.0, %v792
        %794 = vdwg.mxu0
        %795 = vrot.lane.b32.xlu0 %v608, 64
        %v796 = vpop.permute.xlu0 %795
        %797 = vrot.lane.b32.xlu0 %v609, 64
        %v798 = vpop.permute.xlu0 %797
        %v800 = vsel %vm611, %v796, 0
        %v803 = vsel %vm611, %v798, 0
        %805 = vmatpush.bf16.xpose.msra.mxu0 0
        %806 = vmatpush.bf16.xpose.msra.mxu0 0
        %807 = vmatpush.bf16.xpose.msra.mxu0 0
        %808 = vmatpush.bf16.xpose.msra.mxu0 0
        %809 = vmatpush.bf16.xpose.msra.mxu0 0
        %810 = vmatpush.bf16.xpose.msra.mxu0 0
        %811 = vmatpush.bf16.xpose.msra.mxu0 0
        %812 = vmatpush.bf16.xpose.msra.mxu0 %v803
        %813 = vmatmul.bf16.gmra.mxu0 %v800
        %v814 = vpop.f32.mrf.mxu0
        %v815 = vadd.f32 0.0, %v814
        %v816 = vpop.f32.mrf.mxu0
        %v817 = vadd.f32 0.0, %v816
        %818 = vdwg.mxu0
        %v819 = vsel %vm632, %v815, -inf
        %820 = vmax.xlane.f32.xlu0 %v819
        %v821 = vpop.xlane.xlu0 %820
        %v822 = vsel %vm632, %v817, -inf
        %823 = vmax.xlane.f32.xlu0 %v822
        %v824 = vpop.xlane.xlu0 %823
        %v825 = vsub.f32 %v815, %v821
        %v826 = vsub.f32 %v817, %v824
        %v827 = vmul.f32 %v825, 1.442695
        %v828 = vpow.pop %v827
        %v829 = vmul.f32 %v826, 1.442695
        %v830 = vpow.pop %v829
        %v831 = vsel %vm632, %v828, 0.0
        %832 = vadd.xlane.f32.xlu0 %v831
        %v833 = vpop.xlane.xlu0 %832
        %v834 = vsel %vm632, %v830, 0.0
        %835 = vadd.xlane.f32.xlu0 %v834
        %v836 = vpop.xlane.xlu0 %835
        %v837 = vrcp.pop %v833
        %v838 = vmul.f32 %v833, %v837
        %v839 = vsub.f32 1.0, %v838
        %v840 = vmul.f32 %v837, %v839
        %v841 = vadd.f32 %v837, %v840
        %vm842 = vweird.f32 %v833
        %vm843 = vweird.f32 %v837
        %vm844 = vmor %vm842, %vm843
        %v845 = vsel %vm844, %v837, %v841
        %v846 = vand.u32 2147483647, %v833
        %vm847 = vcmp.eq.f32.partialorder %v846, 8.507059e+37
        %v848 = vand.u32 %v833, 2147483648
        %v849 = vor.u32 1.1754944e-38, %v848
        %v850 = vsel %vm847, %v849, %v845
        %v851 = vmul.f32 %v828, %v850
        %v852 = vrcp.pop %v836
        %v853 = vmul.f32 %v836, %v852
        %v854 = vsub.f32 1.0, %v853
        %v855 = vmul.f32 %v852, %v854
        %v856 = vadd.f32 %v852, %v855
        %vm857 = vweird.f32 %v836
        %vm858 = vweird.f32 %v852
        %vm859 = vmor %vm857, %vm858
        %v860 = vsel %vm859, %v852, %v856
        %v861 = vand.u32 2147483647, %v836
        %vm862 = vcmp.eq.f32.partialorder %v861, 8.507059e+37
        %v863 = vand.u32 %v836, 2147483648
        %v864 = vor.u32 1.1754944e-38, %v863
        %v865 = vsel %vm862, %v864, %v860
        %v866 = vmul.f32 %v830, %v865
        %v867 = vpack.c.bf16 %v866, %v851
        %868 = vrot.lane.b32.xlu0 %v610, 64
        %v869 = vpop.permute.xlu0 %868
        %v872 = vsel %vm632, %v867, 0
        %874 = vmatpush.bf16.msra.mxu0 0
        %875 = vmatpush.bf16.msra.mxu0 0
        %876 = vmatpush.bf16.msra.mxu0 0
        %877 = vmatpush.bf16.msra.mxu0 0
        %878 = vmatpush.bf16.msra.mxu0 0
        %879 = vmatpush.bf16.msra.mxu0 0
        %880 = vmatpush.bf16.msra.mxu0 0
        %881 = vmatpush.bf16.msra.mxu0 %v869
        %882 = vmatmul.bf16.gmra.mxu0 %v872
        %v883 = vpop.f32.mrf.mxu0
        %v884 = vadd.f32 0.0, %v883
        %v885 = vpop.f32.mrf.mxu0
        %v886 = vadd.f32 0.0, %v885
        %887 = vdwg.mxu0
        %888 = vrot.lane.b32.xlu0 %v608, 32
        %v889 = vpop.permute.xlu0 %888
        %890 = vrot.lane.b32.xlu0 %v609, 32
        %v891 = vpop.permute.xlu0 %890
        %v893 = vsel %vm611, %v889, 0
        %v896 = vsel %vm611, %v891, 0
        %898 = vmatpush.bf16.xpose.msra.mxu0 0
        %899 = vmatpush.bf16.xpose.msra.mxu0 0
        %900 = vmatpush.bf16.xpose.msra.mxu0 0
        %901 = vmatpush.bf16.xpose.msra.mxu0 0
        %902 = vmatpush.bf16.xpose.msra.mxu0 0
        %903 = vmatpush.bf16.xpose.msra.mxu0 0
        %904 = vmatpush.bf16.xpose.msra.mxu0 0
        %905 = vmatpush.bf16.xpose.msra.mxu0 %v896
        %906 = vmatmul.bf16.gmra.mxu0 %v893
        %v907 = vpop.f32.mrf.mxu0
        %v908 = vadd.f32 0.0, %v907
        %v909 = vpop.f32.mrf.mxu0
        %v910 = vadd.f32 0.0, %v909
        %911 = vdwg.mxu0
        %v912 = vsel %vm632, %v908, -inf
        %913 = vmax.xlane.f32.xlu0 %v912
        %v914 = vpop.xlane.xlu0 %913
        %v915 = vsel %vm632, %v910, -inf
        %916 = vmax.xlane.f32.xlu0 %v915
        %v917 = vpop.xlane.xlu0 %916
        %v918 = vsub.f32 %v908, %v914
        %v919 = vsub.f32 %v910, %v917
        %v920 = vmul.f32 %v918, 1.442695
        %v921 = vpow.pop %v920
        %v922 = vmul.f32 %v919, 1.442695
        %v923 = vpow.pop %v922
        %v924 = vsel %vm632, %v921, 0.0
        %925 = vadd.xlane.f32.xlu0 %v924
        %v926 = vpop.xlane.xlu0 %925
        %v927 = vsel %vm632, %v923, 0.0
        %928 = vadd.xlane.f32.xlu0 %v927
        %v929 = vpop.xlane.xlu0 %928
        %v930 = vrcp.pop %v926
        %v931 = vmul.f32 %v926, %v930
        %v932 = vsub.f32 1.0, %v931
        %v933 = vmul.f32 %v930, %v932
        %v934 = vadd.f32 %v930, %v933
        %vm935 = vweird.f32 %v926
        %vm936 = vweird.f32 %v930
        %vm937 = vmor %vm935, %vm936
        %v938 = vsel %vm937, %v930, %v934
        %v939 = vand.u32 2147483647, %v926
        %vm940 = vcmp.eq.f32.partialorder %v939, 8.507059e+37
        %v941 = vand.u32 %v926, 2147483648
        %v942 = vor.u32 1.1754944e-38, %v941
        %v943 = vsel %vm940, %v942, %v938
        %v944 = vmul.f32 %v921, %v943
        %v945 = vrcp.pop %v929
        %v946 = vmul.f32 %v929, %v945
        %v947 = vsub.f32 1.0, %v946
        %v948 = vmul.f32 %v945, %v947
        %v949 = vadd.f32 %v945, %v948
        %vm950 = vweird.f32 %v929
        %vm951 = vweird.f32 %v945
        %vm952 = vmor %vm950, %vm951
        %v953 = vsel %vm952, %v945, %v949
        %v954 = vand.u32 2147483647, %v929
        %vm955 = vcmp.eq.f32.partialorder %v954, 8.507059e+37
        %v956 = vand.u32 %v929, 2147483648
        %v957 = vor.u32 1.1754944e-38, %v956
        %v958 = vsel %vm955, %v957, %v953
        %v959 = vmul.f32 %v923, %v958
        %v960 = vpack.c.bf16 %v959, %v944
        %961 = vrot.lane.b32.xlu0 %v610, 32
        %v962 = vpop.permute.xlu0 %961
        %v965 = vsel %vm632, %v960, 0
        %967 = vmatpush.bf16.msra.mxu0 0
        %968 = vmatpush.bf16.msra.mxu0 0
        %969 = vmatpush.bf16.msra.mxu0 0
        %970 = vmatpush.bf16.msra.mxu0 0
        %971 = vmatpush.bf16.msra.mxu0 0
        %972 = vmatpush.bf16.msra.mxu0 0
        %973 = vmatpush.bf16.msra.mxu0 0
        %974 = vmatpush.bf16.msra.mxu0 %v962
        %975 = vmatmul.bf16.gmra.mxu0 %v965
        %v976 = vpop.f32.mrf.mxu0
        %v977 = vadd.f32 0.0, %v976
        %v978 = vpop.f32.mrf.mxu0
        %v979 = vadd.f32 0.0, %v978
        %980 = vdwg.mxu0
        %983 = vrot.lane.b32.xlu0 %v791, 32
        %v984 = vpop.permute.xlu0 %983
        %985 = vrot.lane.b32.xlu0 %v793, 32
        %v986 = vpop.permute.xlu0 %985
        %991 = vrot.lane.b32.xlu0 %v884, 64
        %v992 = vpop.permute.xlu0 %991
        %993 = vrot.lane.b32.xlu0 %v886, 64
        %v994 = vpop.permute.xlu0 %993
        %999 = vrot.lane.b32.xlu0 %v977, 96
        %v1000 = vpop.permute.xlu0 %999
        %1001 = vrot.lane.b32.xlu0 %v979, 96
        %v1002 = vpop.permute.xlu0 %1001
        %v1005 = vsel %vm611, %v695, %v984
        %v1006 = vsel %vm611, %v697, %v986
        %vm1007 = vcmask 523264
        %v1008 = vsel %vm1007, %v1005, %v992
        %v1009 = vsel %vm1007, %v1006, %v994
        %vm1010 = vcmask 785408
        %v1011 = vsel %vm1010, %v1008, %v1000
        %v1012 = vsel %vm1010, %v1009, %v1002
        %v1013 = vpack.c.bf16 %v1012, %v1011
        %v1014 = vld [vmem:[#allocation7] sm:$0xf]
        %v1015 = vld [vmem:[#allocation7 + $0x4] sm:$0xf]
        %v1016 = vld [vmem:[#allocation7 + $0x8] sm:$0xf]
        %v1017 = vld [vmem:[#allocation7 + $0xc] sm:$0xf]
        %v1018 = vld [vmem:[#allocation7 + $0x10] sm:$0xf]
        %v1019 = vld [vmem:[#allocation7 + $0x14] sm:$0xf]
        %v1020 = vld [vmem:[#allocation7 + $0x18] sm:$0xf]
        %v1021 = vld [vmem:[#allocation7 + $0x1c] sm:$0xf]
        %v1022 = vld [vmem:[#allocation7 + $0x20] sm:$0xf]
        %v1023 = vld [vmem:[#allocation7 + $0x24] sm:$0xf]
        %v1024 = vld [vmem:[#allocation7 + $0x28] sm:$0xf]
        %v1025 = vld [vmem:[#allocation7 + $0x2c] sm:$0xf]
        %v1026 = vld [vmem:[#allocation7 + $0x30] sm:$0xf]
        %v1027 = vld [vmem:[#allocation7 + $0x34] sm:$0xf]
        %v1028 = vld [vmem:[#allocation7 + $0x38] sm:$0xf]
        %v1029 = vld [vmem:[#allocation7 + $0x3c] sm:$0xf]
        %v1030 = vld [vmem:[#allocation9] sm:$0x1]
        %v1032 = vperm.slane %v1030, 0
        %v1050 = vunpack.c.l.b16 %v1014
        %v1051 = vunpack.c.l.b16 %v1015
        %v1052 = vunpack.c.l.b16 %v1016
        %v1053 = vunpack.c.l.b16 %v1017
        %v1054 = vunpack.c.l.b16 %v1018
        %v1055 = vunpack.c.l.b16 %v1019
        %v1056 = vunpack.c.l.b16 %v1020
        %v1057 = vunpack.c.l.b16 %v1021
        %v1058 = vunpack.c.l.b16 %v1022
        %v1059 = vunpack.c.l.b16 %v1023
        %v1060 = vunpack.c.l.b16 %v1024
        %v1061 = vunpack.c.l.b16 %v1025
        %v1062 = vunpack.c.l.b16 %v1026
        %v1063 = vunpack.c.l.b16 %v1027
        %v1064 = vunpack.c.l.b16 %v1028
        %v1065 = vunpack.c.l.b16 %v1029
        %v1066 = vpack.c.b16 %v1051, %v1050
        %v1067 = vpack.c.b16 %v1053, %v1052
        %v1068 = vpack.c.b16 %v1055, %v1054
        %v1069 = vpack.c.b16 %v1057, %v1056
        %v1070 = vpack.c.b16 %v1059, %v1058
        %v1071 = vpack.c.b16 %v1061, %v1060
        %v1072 = vpack.c.b16 %v1063, %v1062
        %v1073 = vpack.c.b16 %v1065, %v1064
        %1082 = vmatpush.bf16.msra.mxu0 %v1073
        %1083 = vmatpush.bf16.msra.mxu0 %v1072
        %1084 = vmatpush.bf16.msra.mxu0 %v1071
        %1085 = vmatpush.bf16.msra.mxu0 %v1070
        %1086 = vmatpush.bf16.msra.mxu0 %v1069
        %1087 = vmatpush.bf16.msra.mxu0 %v1068
        %1088 = vmatpush.bf16.msra.mxu0 %v1067
        %1089 = vmatpush.bf16.msra.mxu0 %v1066
        %1090 = vmatmul.bf16.gmra.mxu0 %v1013
        %v1091 = vpop.f32.mrf.mxu0
        %v1092 = vadd.f32 %v1032, %v1091
        %v1093 = vpop.f32.mrf.mxu0
        %v1094 = vadd.f32 %v1032, %v1093
        %1095 = vdwg.mxu0
        %v1096 = vadd.f32 %v393, %v1092
        %v1097 = vadd.f32 %v394, %v1094
        %v1098 = vld [vmem:[#allocation10] sm:$0x1]
        %v1100 = vperm.slane %v1098, 0
        %v1102 = vmul.f32 %v1096, %v1100
        %v1103 = vmul.f32 %v1097, %v1100
        %v1104 = vld [vmem:[#allocation12] sm:$0x1]
        %v1106 = vperm.slane %v1104, 0
        %v1108 = vadd.f32 %v1102, %v1106
        %v1109 = vadd.f32 %v1103, %v1106
        %v1110 = vpack.c.bf16 %v1108, %v1108
        %v1111 = vpack.c.bf16 %v1109, %v1109
        %1112 = vst [vmem:[%s391] sm:$0xf] %v1110
        %1113 = vst [vmem:[%s391 + $0x4] sm:$0xf] %v1111
        %p1114 = scmp.lt.s32.totalorder %s24, 1
        %s1115 = scalar_select %p1114, %s24, 1
        %s1116 = smul.addr %s1115, 2
        %s1117 = smul.addr %s1116, 4
        %s1118 = scalar_lea.vmem %s7, %s1117
        // Predicated region
        $region77: #{encoder_afcm_block.4} parent=47 // pred_check
          %p1119 = pneg %p194
        $region78: #{encoder_afcm_block.4} parent=47 // pred_check_branch
          %1121 = sbr.rel (%p1119) target = $region80
        $region79: #{encoder_afcm_block.4} parent=47 // pred_region
          _
        $region80: #{encoder_afcm_block.4} parent=47 // pred_fallthru
          _
      $region48: #{encoder_afcm_block.4} parent=5 // pred_fallthru
        _
      %p1122 = scmp.le.s32.totalorder 2, %s19
      // Predicated region
      $region81: #{encoder_afcm_block.4} parent=5 // pred_check
        %p1123 = pneg %p1122
      $region82: #{encoder_afcm_block.4} parent=5 // pred_check_branch
        %1125 = sbr.rel (%p1123) target = $region84
      $region83: #{encoder_afcm_block.4} parent=5 // pred_region
        %s1126 = ssub.s32 %s19, 2
        // Predicated region
        $region85: #{encoder_afcm_block.4} parent=83 // pred_check
          %p1127 = pneg %p200
        $region86: #{encoder_afcm_block.4} parent=83 // pred_check_branch
          %1129 = sbr.rel (%p1127) target = $region88
        $region87: #{encoder_afcm_block.4} parent=83 // pred_region
          %p1130 = scmp.lt.s32.totalorder %s25, 1
          %s1131 = scalar_select %p1130, %s25, 1
          %s1132 = smul.addr %s1131, 2
          %s1133 = smul.addr %s1132, 4
          %s1134 = scalar_lea.vmem %s7, %s1133
        $region88: #{encoder_afcm_block.4} parent=83 // pred_fallthru
          _
      $region84: #{encoder_afcm_block.4} parent=5 // pred_fallthru
        _
    $region6: #{encoder_afcm_block.4} parent=1 // loop_footer
      %s23 = sadd.s32 1, %s19
    $region7: #{encoder_afcm_block.4} parent=1 // loop_footer_branch
      %18 = sbr.rel target = $region3
    $region8: #{encoder_afcm_block.4} parent=1 // loop_exit
      _
    %1135 = vsyncpa [#allocation3], 1
    %s1136 = scalar_lea.sflag [#allocation3], 1
    %1137 = vsyncpa %s1136, 1
    %1138 = vsyncpa [#allocation5], 1
    %1139 = vsyncpa [#allocation8], 1
    %1140 = vsyncpa [#allocation11], 1

// kernel: encoder_afcm_block.5
$region0: #{encoder_afcm_block.5}
  #allocation0 [shape = 'u32[]', space=smem, size = 0x4, offset = 0x4, fixed_abs, tag = 'smem constant byte address 0x4 - core index']
  #allocation1 [shape = 'u32[72,128]{1,0:T(1,128)}', space=vmem, size = 0x9000, scoped, tag = 'internal scratch']
  %s0 = inlined_call_operand.vmem [shape: bf16[32,128], index: 0, kind: input, shape index: {}]
  %s1 = inlined_call_operand.hbm [shape: bf16[128,256], index: 1, kind: input, shape index: {}]
  %s2 = inlined_call_operand.hbm [shape: f32[1,256], index: 2, kind: input, shape index: {}]
  %s3 = inlined_call_operand.hbm [shape: bf16[256,128], index: 3, kind: input, shape index: {}]
  %s4 = inlined_call_operand.hbm [shape: f32[1,128], index: 4, kind: input, shape index: {}]
  %s5 = inlined_call_operand.hbm [shape: f32[1,128], index: 5, kind: input, shape index: {}]
  %s6 = inlined_call_operand.hbm [shape: f32[1,128], index: 6, kind: input, shape index: {}]
  %s7 = inlined_call_operand.hbm [shape: bf16[128,256], index: 7, kind: input, shape index: {}]
  %s8 = inlined_call_operand.hbm [shape: f32[1,256], index: 8, kind: input, shape index: {}]
  %s9 = inlined_call_operand.hbm [shape: bf16[256,128], index: 9, kind: input, shape index: {}]
  %s10 = inlined_call_operand.hbm [shape: f32[1,128], index: 10, kind: input, shape index: {}]
  %s11 = inlined_call_operand.hbm [shape: f32[1,128], index: 11, kind: input, shape index: {}]
  %s12 = inlined_call_operand.hbm [shape: f32[1,128], index: 12, kind: input, shape index: {}]
  %s13 = inlined_call_operand.vmem [shape: bf16[32,128], index: 13, kind: output, shape index: {}]
  %s14 = sld [smem:[#allocation0]]
  $region110: #{encoder_afcm_block.5} parent=0
    _
  %s16 = ssub.s32 1, %s14
  %s17 = scalar_select 0, %s16, %s14
  $region1: #{encoder_afcm_block.5} parent=0
    #allocation2 [shape = 'u8[65536]{0}', space=vmem, size = 0x10000, scoped, tag = 'input window, operand 1, single buffered']
    #allocation3 [shape = 's32[1]{0}', space=sflag, size = 0x4, scoped, tag = 'scoped memory for encoder_afcm_block.5']
    #allocation4 [shape = 'u8[1024]{0}', space=vmem, size = 0x400, scoped, tag = 'input window, operand 2, single buffered']
    #allocation5 [shape = 's32[1]{0}', space=sflag, size = 0x4, scoped, tag = 'scoped memory for encoder_afcm_block.5']
    #allocation6 [shape = 'u8[65536]{0}', space=vmem, size = 0x10000, scoped, tag = 'input window, operand 3, single buffered']
    #allocation7 [shape = 'u8[512]{0}', space=vmem, size = 0x400, scoped, tag = 'input window, operand 4, single buffered']
    #allocation8 [shape = 's32[1]{0}', space=sflag, size = 0x4, scoped, tag = 'scoped memory for encoder_afcm_block.5']
    #allocation9 [shape = 'u8[512]{0}', space=vmem, size = 0x400, scoped, tag = 'input window, operand 5, single buffered']
    #allocation10 [shape = 'u8[512]{0}', space=vmem, size = 0x400, scoped, tag = 'input window, operand 6, single buffered']
    #allocation11 [shape = 's32[1]{0}', space=sflag, size = 0x4, scoped, tag = 'scoped memory for encoder_afcm_block.5']
    #allocation12 [shape = 'u8[65536]{0}', space=vmem, size = 0x10000, scoped, tag = 'input window, operand 7, single buffered']
    #allocation13 [shape = 'u8[1024]{0}', space=vmem, size = 0x400, scoped, tag = 'input window, operand 8, single buffered']
    #allocation14 [shape = 's32[1]{0}', space=sflag, size = 0x4, scoped, tag = 'scoped memory for encoder_afcm_block.5']
    #allocation15 [shape = 'u8[65536]{0}', space=vmem, size = 0x10000, scoped, tag = 'input window, operand 9, single buffered']
    #allocation16 [shape = 'u8[512]{0}', space=vmem, size = 0x400, scoped, tag = 'input window, operand 10, single buffered']
    #allocation17 [shape = 's32[1]{0}', space=sflag, size = 0x4, scoped, tag = 'scoped memory for encoder_afcm_block.5']
    #allocation18 [shape = 'u8[512]{0}', space=vmem, size = 0x400, scoped, tag = 'input window, operand 11, single buffered']
    #allocation19 [shape = 'u8[512]{0}', space=vmem, size = 0x400, scoped, tag = 'input window, operand 12, single buffered']
    #allocation20 [shape = 's32[1]{0}', space=sflag, size = 0x4, scoped, tag = 'scoped memory for encoder_afcm_block.5']
    %18 = vsyncpa [#allocation3], 0
    %19 = vsyncpa [#allocation5], 0
    %20 = vsyncpa [#allocation8], 0
    %21 = vsyncpa [#allocation11], 0
    %22 = vsyncpa [#allocation14], 0
    %23 = vsyncpa [#allocation17], 0
    %24 = vsyncpa [#allocation20], 0
    // Predicated region
    $region2: #{encoder_afcm_block.5} parent=1 // pred_check
      _
    $region3: #{encoder_afcm_block.5} parent=1 // pred_check_branch
      %26 = sbr.rel (0) target = $region5
    $region4: #{encoder_afcm_block.5} parent=1 // pred_region
      _
    $region5: #{encoder_afcm_block.5} parent=1 // pred_fallthru
      _
    // Predicated region
    $region6: #{encoder_afcm_block.5} parent=1 // pred_check
      _
    $region7: #{encoder_afcm_block.5} parent=1 // pred_check_branch
      %28 = sbr.rel (0) target = $region9
    $region8: #{encoder_afcm_block.5} parent=1 // pred_region
      %30 = vsyncadd [#allocation3], 0
      %s31 = sshll.u32 %s1, 4
      %s32 = int_to_ptr.hbm [resolvable:$true] %s31
      %s33 = sshll.u32 [#allocation2], 4
      %s34 = int_to_ptr.vmem [resolvable:$true] %s33
      %39 = dma.hbm_to_vmem [thread:$0]  %s32, 2048, %s34, [#allocation3], 128, 128, 8
    $region9: #{encoder_afcm_block.5} parent=1 // pred_fallthru
      _
    // Predicated region
    $region10: #{encoder_afcm_block.5} parent=1 // pred_check
      _
    $region11: #{encoder_afcm_block.5} parent=1 // pred_check_branch
      %41 = sbr.rel (0) target = $region13
    $region12: #{encoder_afcm_block.5} parent=1 // pred_region
      %43 = vsyncadd [#allocation5], 0
      %s45 = sshll.u32 %s2, 4
      %s46 = int_to_ptr.hbm [resolvable:$true] %s45
      %s47 = sshll.u32 [#allocation4], 4
      %s48 = int_to_ptr.vmem [resolvable:$true] %s47
      %50 = dma.hbm_to_vmem [thread:$0]  %s46, 32, %s48, [#allocation5]
    $region13: #{encoder_afcm_block.5} parent=1 // pred_fallthru
      _
    // Predicated region
    $region14: #{encoder_afcm_block.5} parent=1 // pred_check
      _
    $region15: #{encoder_afcm_block.5} parent=1 // pred_check_branch
      %52 = sbr.rel (0) target = $region17
    $region16: #{encoder_afcm_block.5} parent=1 // pred_region
      %54 = vsyncadd [#allocation5], 0
      %s55 = sshll.u32 %s3, 4
      %s56 = int_to_ptr.hbm [resolvable:$true] %s55
      %s57 = sshll.u32 [#allocation6], 4
      %s58 = int_to_ptr.vmem [resolvable:$true] %s57
      %63 = dma.hbm_to_vmem [thread:$0]  %s56, 2048, %s58, [#allocation5], 64, 64, 4
    $region17: #{encoder_afcm_block.5} parent=1 // pred_fallthru
      _
    // Predicated region
    $region18: #{encoder_afcm_block.5} parent=1 // pred_check
      _
    $region19: #{encoder_afcm_block.5} parent=1 // pred_check_branch
      %65 = sbr.rel (0) target = $region21
    $region20: #{encoder_afcm_block.5} parent=1 // pred_region
      %67 = vsyncadd [#allocation8], 0
      %s69 = sshll.u32 %s4, 4
      %s70 = int_to_ptr.hbm [resolvable:$true] %s69
      %s71 = sshll.u32 [#allocation7], 4
      %s72 = int_to_ptr.vmem [resolvable:$true] %s71
      %74 = dma.hbm_to_vmem [thread:$0]  %s70, 16, %s72, [#allocation8]
    $region21: #{encoder_afcm_block.5} parent=1 // pred_fallthru
      _
    // Predicated region
    $region22: #{encoder_afcm_block.5} parent=1 // pred_check
      _
    $region23: #{encoder_afcm_block.5} parent=1 // pred_check_branch
      %76 = sbr.rel (0) target = $region25
    $region24: #{encoder_afcm_block.5} parent=1 // pred_region
      %78 = vsyncadd [#allocation8], 0
      %s80 = sshll.u32 %s5, 4
      %s81 = int_to_ptr.hbm [resolvable:$true] %s80
      %s82 = sshll.u32 [#allocation9], 4
      %s83 = int_to_ptr.vmem [resolvable:$true] %s82
      %85 = dma.hbm_to_vmem [thread:$0]  %s81, 16, %s83, [#allocation8]
    $region25: #{encoder_afcm_block.5} parent=1 // pred_fallthru
      _
    // Predicated region
    $region26: #{encoder_afcm_block.5} parent=1 // pred_check
      _
    $region27: #{encoder_afcm_block.5} parent=1 // pred_check_branch
      %87 = sbr.rel (0) target = $region29
    $region28: #{encoder_afcm_block.5} parent=1 // pred_region
      %89 = vsyncadd [#allocation11], 0
      %s91 = sshll.u32 %s6, 4
      %s92 = int_to_ptr.hbm [resolvable:$true] %s91
      %s93 = sshll.u32 [#allocation10], 4
      %s94 = int_to_ptr.vmem [resolvable:$true] %s93
      %96 = dma.hbm_to_vmem [thread:$0]  %s92, 16, %s94, [#allocation11]
    $region29: #{encoder_afcm_block.5} parent=1 // pred_fallthru
      _
    // Predicated region
    $region30: #{encoder_afcm_block.5} parent=1 // pred_check
      _
    $region31: #{encoder_afcm_block.5} parent=1 // pred_check_branch
      %98 = sbr.rel (0) target = $region33
    $region32: #{encoder_afcm_block.5} parent=1 // pred_region
      %100 = vsyncadd [#allocation11], 0
      %s101 = sshll.u32 %s7, 4
      %s102 = int_to_ptr.hbm [resolvable:$true] %s101
      %s103 = sshll.u32 [#allocation12], 4
      %s104 = int_to_ptr.vmem [resolvable:$true] %s103
      %109 = dma.hbm_to_vmem [thread:$0]  %s102, 2048, %s104, [#allocation11], 128, 128, 8
    $region33: #{encoder_afcm_block.5} parent=1 // pred_fallthru
      _
    // Predicated region
    $region34: #{encoder_afcm_block.5} parent=1 // pred_check
      _
    $region35: #{encoder_afcm_block.5} parent=1 // pred_check_branch
      %111 = sbr.rel (0) target = $region37
    $region36: #{encoder_afcm_block.5} parent=1 // pred_region
      %113 = vsyncadd [#allocation14], 0
      %s115 = sshll.u32 %s8, 4
      %s116 = int_to_ptr.hbm [resolvable:$true] %s115
      %s117 = sshll.u32 [#allocation13], 4
      %s118 = int_to_ptr.vmem [resolvable:$true] %s117
      %120 = dma.hbm_to_vmem [thread:$0]  %s116, 32, %s118, [#allocation14]
    $region37: #{encoder_afcm_block.5} parent=1 // pred_fallthru
      _
    // Predicated region
    $region38: #{encoder_afcm_block.5} parent=1 // pred_check
      _
    $region39: #{encoder_afcm_block.5} parent=1 // pred_check_branch
      %122 = sbr.rel (0) target = $region41
    $region40: #{encoder_afcm_block.5} parent=1 // pred_region
      %124 = vsyncadd [#allocation14], 0
      %s125 = sshll.u32 %s9, 4
      %s126 = int_to_ptr.hbm [resolvable:$true] %s125
      %s127 = sshll.u32 [#allocation15], 4
      %s128 = int_to_ptr.vmem [resolvable:$true] %s127
      %133 = dma.hbm_to_vmem [thread:$0]  %s126, 2048, %s128, [#allocation14], 64, 64, 4
    $region41: #{encoder_afcm_block.5} parent=1 // pred_fallthru
      _
    // Predicated region
    $region42: #{encoder_afcm_block.5} parent=1 // pred_check
      _
    $region43: #{encoder_afcm_block.5} parent=1 // pred_check_branch
      %135 = sbr.rel (0) target = $region45
    $region44: #{encoder_afcm_block.5} parent=1 // pred_region
      %137 = vsyncadd [#allocation17], 0
      %s139 = sshll.u32 %s10, 4
      %s140 = int_to_ptr.hbm [resolvable:$true] %s139
      %s141 = sshll.u32 [#allocation16], 4
      %s142 = int_to_ptr.vmem [resolvable:$true] %s141
      %144 = dma.hbm_to_vmem [thread:$0]  %s140, 16, %s142, [#allocation17]
    $region45: #{encoder_afcm_block.5} parent=1 // pred_fallthru
      _
    // Predicated region
    $region46: #{encoder_afcm_block.5} parent=1 // pred_check
      _
    $region47: #{encoder_afcm_block.5} parent=1 // pred_check_branch
      %146 = sbr.rel (0) target = $region49
    $region48: #{encoder_afcm_block.5} parent=1 // pred_region
      %148 = vsyncadd [#allocation17], 0
      %s150 = sshll.u32 %s11, 4
      %s151 = int_to_ptr.hbm [resolvable:$true] %s150
      %s152 = sshll.u32 [#allocation18], 4
      %s153 = int_to_ptr.vmem [resolvable:$true] %s152
      %155 = dma.hbm_to_vmem [thread:$0]  %s151, 16, %s153, [#allocation17]
    $region49: #{encoder_afcm_block.5} parent=1 // pred_fallthru
      _
    // Predicated region
    $region50: #{encoder_afcm_block.5} parent=1 // pred_check
      _
    $region51: #{encoder_afcm_block.5} parent=1 // pred_check_branch
      %157 = sbr.rel (0) target = $region53
    $region52: #{encoder_afcm_block.5} parent=1 // pred_region
      %159 = vsyncadd [#allocation20], 0
      %s161 = sshll.u32 %s12, 4
      %s162 = int_to_ptr.hbm [resolvable:$true] %s161
      %s163 = sshll.u32 [#allocation19], 4
      %s164 = int_to_ptr.vmem [resolvable:$true] %s163
      %166 = dma.hbm_to_vmem [thread:$0]  %s162, 16, %s164, [#allocation20]
    $region53: #{encoder_afcm_block.5} parent=1 // pred_fallthru
      _
    // Predicated region
    $region54: #{encoder_afcm_block.5} parent=1 // pred_check
      _
    $region55: #{encoder_afcm_block.5} parent=1 // pred_check_branch
      %168 = sbr.rel (0) target = $region57
    $region56: #{encoder_afcm_block.5} parent=1 // pred_region
      %170 = dma.done [#allocation3], 2048
    $region57: #{encoder_afcm_block.5} parent=1 // pred_fallthru
      _
    // Predicated region
    $region58: #{encoder_afcm_block.5} parent=1 // pred_check
      _
    $region59: #{encoder_afcm_block.5} parent=1 // pred_check_branch
      %172 = sbr.rel (0) target = $region61
    $region60: #{encoder_afcm_block.5} parent=1 // pred_region
      %174 = dma.done [#allocation5], 32
    $region61: #{encoder_afcm_block.5} parent=1 // pred_fallthru
      _
    // Predicated region
    $region62: #{encoder_afcm_block.5} parent=1 // pred_check
      _
    $region63: #{encoder_afcm_block.5} parent=1 // pred_check_branch
      %176 = sbr.rel (0) target = $region65
    $region64: #{encoder_afcm_block.5} parent=1 // pred_region
      %178 = dma.done [#allocation5], 2048
    $region65: #{encoder_afcm_block.5} parent=1 // pred_fallthru
      _
    // Predicated region
    $region66: #{encoder_afcm_block.5} parent=1 // pred_check
      _
    $region67: #{encoder_afcm_block.5} parent=1 // pred_check_branch
      %180 = sbr.rel (0) target = $region69
    $region68: #{encoder_afcm_block.5} parent=1 // pred_region
      %182 = dma.done [#allocation8], 16
    $region69: #{encoder_afcm_block.5} parent=1 // pred_fallthru
      _
    // Predicated region
    $region70: #{encoder_afcm_block.5} parent=1 // pred_check
      _
    $region71: #{encoder_afcm_block.5} parent=1 // pred_check_branch
      %184 = sbr.rel (0) target = $region73
    $region72: #{encoder_afcm_block.5} parent=1 // pred_region
      %186 = dma.done [#allocation8], 16
    $region73: #{encoder_afcm_block.5} parent=1 // pred_fallthru
      _
    // Predicated region
    $region74: #{encoder_afcm_block.5} parent=1 // pred_check
      _
    $region75: #{encoder_afcm_block.5} parent=1 // pred_check_branch
      %188 = sbr.rel (0) target = $region77
    $region76: #{encoder_afcm_block.5} parent=1 // pred_region
      %190 = dma.done [#allocation11], 16
    $region77: #{encoder_afcm_block.5} parent=1 // pred_fallthru
      _
    // Predicated region
    $region78: #{encoder_afcm_block.5} parent=1 // pred_check
      _
    $region79: #{encoder_afcm_block.5} parent=1 // pred_check_branch
      %192 = sbr.rel (0) target = $region81
    $region80: #{encoder_afcm_block.5} parent=1 // pred_region
      %194 = dma.done [#allocation11], 2048
    $region81: #{encoder_afcm_block.5} parent=1 // pred_fallthru
      _
    // Predicated region
    $region82: #{encoder_afcm_block.5} parent=1 // pred_check
      _
    $region83: #{encoder_afcm_block.5} parent=1 // pred_check_branch
      %196 = sbr.rel (0) target = $region85
    $region84: #{encoder_afcm_block.5} parent=1 // pred_region
      %198 = dma.done [#allocation14], 32
    $region85: #{encoder_afcm_block.5} parent=1 // pred_fallthru
      _
    // Predicated region
    $region86: #{encoder_afcm_block.5} parent=1 // pred_check
      _
    $region87: #{encoder_afcm_block.5} parent=1 // pred_check_branch
      %200 = sbr.rel (0) target = $region89
    $region88: #{encoder_afcm_block.5} parent=1 // pred_region
      %202 = dma.done [#allocation14], 2048
    $region89: #{encoder_afcm_block.5} parent=1 // pred_fallthru
      _
    // Predicated region
    $region90: #{encoder_afcm_block.5} parent=1 // pred_check
      _
    $region91: #{encoder_afcm_block.5} parent=1 // pred_check_branch
      %204 = sbr.rel (0) target = $region93
    $region92: #{encoder_afcm_block.5} parent=1 // pred_region
      %206 = dma.done [#allocation17], 16
    $region93: #{encoder_afcm_block.5} parent=1 // pred_fallthru
      _
    // Predicated region
    $region94: #{encoder_afcm_block.5} parent=1 // pred_check
      _
    $region95: #{encoder_afcm_block.5} parent=1 // pred_check_branch
      %208 = sbr.rel (0) target = $region97
    $region96: #{encoder_afcm_block.5} parent=1 // pred_region
      %210 = dma.done [#allocation17], 16
    $region97: #{encoder_afcm_block.5} parent=1 // pred_fallthru
      _
    // Predicated region
    $region98: #{encoder_afcm_block.5} parent=1 // pred_check
      _
    $region99: #{encoder_afcm_block.5} parent=1 // pred_check_branch
      %212 = sbr.rel (0) target = $region101
    $region100: #{encoder_afcm_block.5} parent=1 // pred_region
      %214 = dma.done [#allocation20], 16
    $region101: #{encoder_afcm_block.5} parent=1 // pred_fallthru
      _
    %v215 = vld [vmem:[%s0] sm:$0xf]
    %v216 = vld [vmem:[%s0 + $0x4] sm:$0xf]
    %v217 = vld [vmem:[%s0 + $0x8] sm:$0xf]
    %v218 = vld [vmem:[%s0 + $0xc] sm:$0xf]
    %v219 = vunpack.c.l.bf16 %v215
    %v220 = vunpack.c.l.bf16 %v216
    %v221 = vunpack.c.l.bf16 %v217
    %v222 = vunpack.c.l.bf16 %v218
    %v223 = vld [vmem:[#allocation2] sm:$0xff]
    %v224 = vld [vmem:[#allocation2 + $0x8] sm:$0xff]
    %v225 = vld [vmem:[#allocation2 + $0x10] sm:$0xff]
    %v226 = vld [vmem:[#allocation2 + $0x18] sm:$0xff]
    %v227 = vld [vmem:[#allocation2 + $0x20] sm:$0xff]
    %v228 = vld [vmem:[#allocation2 + $0x28] sm:$0xff]
    %v229 = vld [vmem:[#allocation2 + $0x30] sm:$0xff]
    %v230 = vld [vmem:[#allocation2 + $0x38] sm:$0xff]
    %v231 = vld [vmem:[#allocation2 + $0x40] sm:$0xff]
    %v232 = vld [vmem:[#allocation2 + $0x48] sm:$0xff]
    %v233 = vld [vmem:[#allocation2 + $0x50] sm:$0xff]
    %v234 = vld [vmem:[#allocation2 + $0x58] sm:$0xff]
    %v235 = vld [vmem:[#allocation2 + $0x60] sm:$0xff]
    %v236 = vld [vmem:[#allocation2 + $0x68] sm:$0xff]
    %v237 = vld [vmem:[#allocation2 + $0x70] sm:$0xff]
    %v238 = vld [vmem:[#allocation2 + $0x78] sm:$0xff]
    %v239 = vld [vmem:[#allocation4] sm:$0x3]
    %v241 = vperm.slane %v239, 0
    %v242 = vperm.slane %v239, 1
    %v249 = vunpack.c.l.b16 %v215
    %v250 = vunpack.c.l.b16 %v216
    %v251 = vunpack.c.l.b16 %v217
    %v252 = vunpack.c.l.b16 %v218
    %v253 = vpack.c.b16 %v250, %v249
    %v254 = vpack.c.b16 %v252, %v251
    %v273 = vunpack.c.l.b16 %v223
    %v274 = vunpack.c.h.b16 %v223
    %v275 = vunpack.c.l.b16 %v224
    %v276 = vunpack.c.h.b16 %v224
    %v277 = vunpack.c.l.b16 %v225
    %v278 = vunpack.c.h.b16 %v225
    %v279 = vunpack.c.l.b16 %v226
    %v280 = vunpack.c.h.b16 %v226
    %v281 = vunpack.c.l.b16 %v227
    %v282 = vunpack.c.h.b16 %v227
    %v283 = vunpack.c.l.b16 %v228
    %v284 = vunpack.c.h.b16 %v228
    %v285 = vunpack.c.l.b16 %v229
    %v286 = vunpack.c.h.b16 %v229
    %v287 = vunpack.c.l.b16 %v230
    %v288 = vunpack.c.h.b16 %v230
    %v289 = vunpack.c.l.b16 %v231
    %v290 = vunpack.c.h.b16 %v231
    %v291 = vunpack.c.l.b16 %v232
    %v292 = vunpack.c.h.b16 %v232
    %v293 = vunpack.c.l.b16 %v233
    %v294 = vunpack.c.h.b16 %v233
    %v295 = vunpack.c.l.b16 %v234
    %v296 = vunpack.c.h.b16 %v234
    %v297 = vunpack.c.l.b16 %v235
    %v298 = vunpack.c.h.b16 %v235
    %v299 = vunpack.c.l.b16 %v236
    %v300 = vunpack.c.h.b16 %v236
    %v301 = vunpack.c.l.b16 %v237
    %v302 = vunpack.c.h.b16 %v237
    %v303 = vunpack.c.l.b16 %v238
    %v304 = vunpack.c.h.b16 %v238
    %v305 = vpack.c.b16 %v275, %v273
    %v306 = vpack.c.b16 %v276, %v274
    %v307 = vpack.c.b16 %v279, %v277
    %v308 = vpack.c.b16 %v280, %v278
    %v309 = vpack.c.b16 %v283, %v281
    %v310 = vpack.c.b16 %v284, %v282
    %v311 = vpack.c.b16 %v287, %v285
    %v312 = vpack.c.b16 %v288, %v286
    %v313 = vpack.c.b16 %v291, %v289
    %v314 = vpack.c.b16 %v292, %v290
    %v315 = vpack.c.b16 %v295, %v293
    %v316 = vpack.c.b16 %v296, %v294
    %v317 = vpack.c.b16 %v299, %v297
    %v318 = vpack.c.b16 %v300, %v298
    %v319 = vpack.c.b16 %v303, %v301
    %v320 = vpack.c.b16 %v304, %v302
    %337 = vmatpush.bf16.msra.mxu0 %v319
    %338 = vmatpush.bf16.msra.mxu0 %v317
    %339 = vmatpush.bf16.msra.mxu0 %v315
    %340 = vmatpush.bf16.msra.mxu0 %v313
    %341 = vmatpush.bf16.msra.mxu0 %v311
    %342 = vmatpush.bf16.msra.mxu0 %v309
    %343 = vmatpush.bf16.msra.mxu0 %v307
    %344 = vmatpush.bf16.msra.mxu0 %v305
    %345 = vmatmul.bf16.gmra.mxu0 %v253
    %v346 = vpop.f32.mrf.mxu0
    %v347 = vadd.f32 %v241, %v346
    %v348 = vpop.f32.mrf.mxu0
    %v349 = vadd.f32 %v241, %v348
    %350 = vmatmul.bf16.gmra.mxu0 %v254
    %v351 = vpop.f32.mrf.mxu0
    %v352 = vadd.f32 %v241, %v351
    %v353 = vpop.f32.mrf.mxu0
    %v354 = vadd.f32 %v241, %v353
    %355 = vdwg.mxu0
    %356 = vmatpush.bf16.msra.mxu0 %v320
    %357 = vmatpush.bf16.msra.mxu0 %v318
    %358 = vmatpush.bf16.msra.mxu0 %v316
    %359 = vmatpush.bf16.msra.mxu0 %v314
    %360 = vmatpush.bf16.msra.mxu0 %v312
    %361 = vmatpush.bf16.msra.mxu0 %v310
    %362 = vmatpush.bf16.msra.mxu0 %v308
    %363 = vmatpush.bf16.msra.mxu0 %v306
    %364 = vmatmul.bf16.gmra.mxu0 %v253
    %v365 = vpop.f32.mrf.mxu0
    %v366 = vadd.f32 %v242, %v365
    %v367 = vpop.f32.mrf.mxu0
    %v368 = vadd.f32 %v242, %v367
    %369 = vmatmul.bf16.gmra.mxu0 %v254
    %v370 = vpop.f32.mrf.mxu0
    %v371 = vadd.f32 %v242, %v370
    %v372 = vpop.f32.mrf.mxu0
    %v373 = vadd.f32 %v242, %v372
    %374 = vdwg.mxu0
    %v375 = vmul.f32 %v347, %v347
    %v376 = vmul.f32 %v366, %v366
    %v377 = vmul.f32 %v349, %v349
    %v378 = vmul.f32 %v368, %v368
    %v379 = vmul.f32 %v352, %v352
    %v380 = vmul.f32 %v371, %v371
    %v381 = vmul.f32 %v354, %v354
    %v382 = vmul.f32 %v373, %v373
    %v383 = vmul.f32 %v347, %v375
    %v384 = vmul.f32 %v366, %v376
    %v385 = vmul.f32 %v349, %v377
    %v386 = vmul.f32 %v368, %v378
    %v387 = vmul.f32 %v352, %v379
    %v388 = vmul.f32 %v371, %v380
    %v389 = vmul.f32 %v354, %v381
    %v390 = vmul.f32 %v373, %v382
    %v391 = vmul.f32 %v383, 0.044715
    %v392 = vmul.f32 %v384, 0.044715
    %v393 = vmul.f32 %v385, 0.044715
    %v394 = vmul.f32 %v386, 0.044715
    %v395 = vmul.f32 %v387, 0.044715
    %v396 = vmul.f32 %v388, 0.044715
    %v397 = vmul.f32 %v389, 0.044715
    %v398 = vmul.f32 %v390, 0.044715
    %v399 = vadd.f32 %v347, %v391
    %v400 = vadd.f32 %v366, %v392
    %v401 = vadd.f32 %v349, %v393
    %v402 = vadd.f32 %v368, %v394
    %v403 = vadd.f32 %v352, %v395
    %v404 = vadd.f32 %v371, %v396
    %v405 = vadd.f32 %v354, %v397
    %v406 = vadd.f32 %v373, %v398
    %v407 = vmul.f32 %v399, 0.7978846
    %v408 = vmul.f32 %v400, 0.7978846
    %v409 = vmul.f32 %v401, 0.7978846
    %v410 = vmul.f32 %v402, 0.7978846
    %v411 = vmul.f32 %v403, 0.7978846
    %v412 = vmul.f32 %v404, 0.7978846
    %v413 = vmul.f32 %v405, 0.7978846
    %v414 = vmul.f32 %v406, 0.7978846
    %v415 = vtanh.pop %v407
    %v416 = vtanh.pop %v408
    %v417 = vtanh.pop %v409
    %v418 = vtanh.pop %v410
    %v419 = vtanh.pop %v411
    %v420 = vtanh.pop %v412
    %v421 = vtanh.pop %v413
    %v422 = vtanh.pop %v414
    %v423 = vadd.f32 %v415, 1.0
    %v424 = vadd.f32 %v416, 1.0
    %v425 = vadd.f32 %v417, 1.0
    %v426 = vadd.f32 %v418, 1.0
    %v427 = vadd.f32 %v419, 1.0
    %v428 = vadd.f32 %v420, 1.0
    %v429 = vadd.f32 %v421, 1.0
    %v430 = vadd.f32 %v422, 1.0
    %v431 = vmul.f32 %v423, 0.5
    %v432 = vmul.f32 %v424, 0.5
    %v433 = vmul.f32 %v425, 0.5
    %v434 = vmul.f32 %v426, 0.5
    %v435 = vmul.f32 %v427, 0.5
    %v436 = vmul.f32 %v428, 0.5
    %v437 = vmul.f32 %v429, 0.5
    %v438 = vmul.f32 %v430, 0.5
    %v439 = vmul.f32 %v347, %v431
    %v440 = vmul.f32 %v366, %v432
    %v441 = vmul.f32 %v349, %v433
    %v442 = vmul.f32 %v368, %v434
    %v443 = vmul.f32 %v352, %v435
    %v444 = vmul.f32 %v371, %v436
    %v445 = vmul.f32 %v354, %v437
    %v446 = vmul.f32 %v373, %v438
    %v447 = vpack.c.bf16 %v441, %v439
    %v448 = vpack.c.bf16 %v442, %v440
    %v449 = vpack.c.bf16 %v445, %v443
    %v450 = vpack.c.bf16 %v446, %v444
    %v451 = vld [vmem:[#allocation6] sm:$0xf]
    %v452 = vld [vmem:[#allocation6 + $0x4] sm:$0xf]
    %v453 = vld [vmem:[#allocation6 + $0x8] sm:$0xf]
    %v454 = vld [vmem:[#allocation6 + $0xc] sm:$0xf]
    %v455 = vld [vmem:[#allocation6 + $0x10] sm:$0xf]
    %v456 = vld [vmem:[#allocation6 + $0x14] sm:$0xf]
    %v457 = vld [vmem:[#allocation6 + $0x18] sm:$0xf]
    %v458 = vld [vmem:[#allocation6 + $0x1c] sm:$0xf]
    %v459 = vld [vmem:[#allocation6 + $0x20] sm:$0xf]
    %v460 = vld [vmem:[#allocation6 + $0x24] sm:$0xf]
    %v461 = vld [vmem:[#allocation6 + $0x28] sm:$0xf]
    %v462 = vld [vmem:[#allocation6 + $0x2c] sm:$0xf]
    %v463 = vld [vmem:[#allocation6 + $0x30] sm:$0xf]
    %v464 = vld [vmem:[#allocation6 + $0x34] sm:$0xf]
    %v465 = vld [vmem:[#allocation6 + $0x38] sm:$0xf]
    %v466 = vld [vmem:[#allocation6 + $0x3c] sm:$0xf]
    %v467 = vld [vmem:[#allocation6 + $0x40] sm:$0xf]
    %v468 = vld [vmem:[#allocation6 + $0x44] sm:$0xf]
    %v469 = vld [vmem:[#allocation6 + $0x48] sm:$0xf]
    %v470 = vld [vmem:[#allocation6 + $0x4c] sm:$0xf]
    %v471 = vld [vmem:[#allocation6 + $0x50] sm:$0xf]
    %v472 = vld [vmem:[#allocation6 + $0x54] sm:$0xf]
    %v473 = vld [vmem:[#allocation6 + $0x58] sm:$0xf]
    %v474 = vld [vmem:[#allocation6 + $0x5c] sm:$0xf]
    %v475 = vld [vmem:[#allocation6 + $0x60] sm:$0xf]
    %v476 = vld [vmem:[#allocation6 + $0x64] sm:$0xf]
    %v477 = vld [vmem:[#allocation6 + $0x68] sm:$0xf]
    %v478 = vld [vmem:[#allocation6 + $0x6c] sm:$0xf]
    %v479 = vld [vmem:[#allocation6 + $0x70] sm:$0xf]
    %v480 = vld [vmem:[#allocation6 + $0x74] sm:$0xf]
    %v481 = vld [vmem:[#allocation6 + $0x78] sm:$0xf]
    %v482 = vld [vmem:[#allocation6 + $0x7c] sm:$0xf]
    %v483 = vld [vmem:[#allocation7] sm:$0x1]
    %v485 = vperm.slane %v483, 0
    %v519 = vunpack.c.l.b16 %v451
    %v520 = vunpack.c.l.b16 %v452
    %v521 = vunpack.c.l.b16 %v453
    %v522 = vunpack.c.l.b16 %v454
    %v523 = vunpack.c.l.b16 %v455
    %v524 = vunpack.c.l.b16 %v456
    %v525 = vunpack.c.l.b16 %v457
    %v526 = vunpack.c.l.b16 %v458
    %v527 = vunpack.c.l.b16 %v459
    %v528 = vunpack.c.l.b16 %v460
    %v529 = vunpack.c.l.b16 %v461
    %v530 = vunpack.c.l.b16 %v462
    %v531 = vunpack.c.l.b16 %v463
    %v532 = vunpack.c.l.b16 %v464
    %v533 = vunpack.c.l.b16 %v465
    %v534 = vunpack.c.l.b16 %v466
    %v535 = vunpack.c.l.b16 %v467
    %v536 = vunpack.c.l.b16 %v468
    %v537 = vunpack.c.l.b16 %v469
    %v538 = vunpack.c.l.b16 %v470
    %v539 = vunpack.c.l.b16 %v471
    %v540 = vunpack.c.l.b16 %v472
    %v541 = vunpack.c.l.b16 %v473
    %v542 = vunpack.c.l.b16 %v474
    %v543 = vunpack.c.l.b16 %v475
    %v544 = vunpack.c.l.b16 %v476
    %v545 = vunpack.c.l.b16 %v477
    %v546 = vunpack.c.l.b16 %v478
    %v547 = vunpack.c.l.b16 %v479
    %v548 = vunpack.c.l.b16 %v480
    %v549 = vunpack.c.l.b16 %v481
    %v550 = vunpack.c.l.b16 %v482
    %v551 = vpack.c.b16 %v520, %v519
    %v552 = vpack.c.b16 %v522, %v521
    %v553 = vpack.c.b16 %v524, %v523
    %v554 = vpack.c.b16 %v526, %v525
    %v555 = vpack.c.b16 %v528, %v527
    %v556 = vpack.c.b16 %v530, %v529
    %v557 = vpack.c.b16 %v532, %v531
    %v558 = vpack.c.b16 %v534, %v533
    %v559 = vpack.c.b16 %v536, %v535
    %v560 = vpack.c.b16 %v538, %v537
    %v561 = vpack.c.b16 %v540, %v539
    %v562 = vpack.c.b16 %v542, %v541
    %v563 = vpack.c.b16 %v544, %v543
    %v564 = vpack.c.b16 %v546, %v545
    %v565 = vpack.c.b16 %v548, %v547
    %v566 = vpack.c.b16 %v550, %v549
    %583 = vmatpush.bf16.msra.mxu0 %v558
    %584 = vmatpush.bf16.msra.mxu0 %v557
    %585 = vmatpush.bf16.msra.mxu0 %v556
    %586 = vmatpush.bf16.msra.mxu0 %v555
    %587 = vmatpush.bf16.msra.mxu0 %v554
    %588 = vmatpush.bf16.msra.mxu0 %v553
    %589 = vmatpush.bf16.msra.mxu0 %v552
    %590 = vmatpush.bf16.msra.mxu0 %v551
    %591 = vmatmul.bf16.gmra.mxu0 %v447
    %v592 = vpop.f32.mrf.mxu0
    %v593 = vadd.f32 %v485, %v592
    %v594 = vpop.f32.mrf.mxu0
    %v595 = vadd.f32 %v485, %v594
    %596 = vmatmul.bf16.gmra.mxu0 %v449
    %v597 = vpop.f32.mrf.mxu0
    %v598 = vadd.f32 %v485, %v597
    %v599 = vpop.f32.mrf.mxu0
    %v600 = vadd.f32 %v485, %v599
    %601 = vdwg.mxu0
    %602 = vmatpush.bf16.msra.mxu0 %v566
    %603 = vmatpush.bf16.msra.mxu0 %v565
    %604 = vmatpush.bf16.msra.mxu0 %v564
    %605 = vmatpush.bf16.msra.mxu0 %v563
    %606 = vmatpush.bf16.msra.mxu0 %v562
    %607 = vmatpush.bf16.msra.mxu0 %v561
    %608 = vmatpush.bf16.msra.mxu0 %v560
    %609 = vmatpush.bf16.msra.mxu0 %v559
    %610 = vmatmul.bf16.gmra.mxu0 %v448
    %v611 = vpop.f32.mrf.mxu0
    %v612 = vadd.f32 %v593, %v611
    %v613 = vpop.f32.mrf.mxu0
    %v614 = vadd.f32 %v595, %v613
    %615 = vmatmul.bf16.gmra.mxu0 %v450
    %v616 = vpop.f32.mrf.mxu0
    %v617 = vadd.f32 %v598, %v616
    %v618 = vpop.f32.mrf.mxu0
    %v619 = vadd.f32 %v600, %v618
    %620 = vdwg.mxu0
    %v621 = vadd.f32 %v219, %v612
    %v622 = vadd.f32 %v220, %v614
    %v623 = vadd.f32 %v221, %v617
    %v624 = vadd.f32 %v222, %v619
    %v625 = vld [vmem:[#allocation9] sm:$0x1]
    %v627 = vperm.slane %v625, 0
    %v629 = vmul.f32 %v621, %v627
    %v630 = vmul.f32 %v622, %v627
    %v631 = vmul.f32 %v623, %v627
    %v632 = vmul.f32 %v624, %v627
    %v633 = vld [vmem:[#allocation10] sm:$0x1]
    %v635 = vperm.slane %v633, 0
    %v637 = vadd.f32 %v629, %v635
    %v638 = vadd.f32 %v630, %v635
    %v639 = vadd.f32 %v631, %v635
    %v640 = vadd.f32 %v632, %v635
    %v641 = vpack.c.bf16 %v638, %v637
    %v642 = vpack.c.bf16 %v640, %v639
    %v643 = vld [vmem:[#allocation12] sm:$0xff]
    %v644 = vld [vmem:[#allocation12 + $0x8] sm:$0xff]
    %v645 = vld [vmem:[#allocation12 + $0x10] sm:$0xff]
    %v646 = vld [vmem:[#allocation12 + $0x18] sm:$0xff]
    %v647 = vld [vmem:[#allocation12 + $0x20] sm:$0xff]
    %v648 = vld [vmem:[#allocation12 + $0x28] sm:$0xff]
    %v649 = vld [vmem:[#allocation12 + $0x30] sm:$0xff]
    %v650 = vld [vmem:[#allocation12 + $0x38] sm:$0xff]
    %v651 = vld [vmem:[#allocation12 + $0x40] sm:$0xff]
    %v652 = vld [vmem:[#allocation12 + $0x48] sm:$0xff]
    %v653 = vld [vmem:[#allocation12 + $0x50] sm:$0xff]
    %v654 = vld [vmem:[#allocation12 + $0x58] sm:$0xff]
    %v655 = vld [vmem:[#allocation12 + $0x60] sm:$0xff]
    %v656 = vld [vmem:[#allocation12 + $0x68] sm:$0xff]
    %v657 = vld [vmem:[#allocation12 + $0x70] sm:$0xff]
    %v658 = vld [vmem:[#allocation12 + $0x78] sm:$0xff]
    %v659 = vld [vmem:[#allocation13] sm:$0x3]
    %v661 = vperm.slane %v659, 0
    %v662 = vperm.slane %v659, 1
    %v681 = vunpack.c.l.b16 %v643
    %v682 = vunpack.c.h.b16 %v643
    %v683 = vunpack.c.l.b16 %v644
    %v684 = vunpack.c.h.b16 %v644
    %v685 = vunpack.c.l.b16 %v645
    %v686 = vunpack.c.h.b16 %v645
    %v687 = vunpack.c.l.b16 %v646
    %v688 = vunpack.c.h.b16 %v646
    %v689 = vunpack.c.l.b16 %v647
    %v690 = vunpack.c.h.b16 %v647
    %v691 = vunpack.c.l.b16 %v648
    %v692 = vunpack.c.h.b16 %v648
    %v693 = vunpack.c.l.b16 %v649
    %v694 = vunpack.c.h.b16 %v649
    %v695 = vunpack.c.l.b16 %v650
    %v696 = vunpack.c.h.b16 %v650
    %v697 = vunpack.c.l.b16 %v651
    %v698 = vunpack.c.h.b16 %v651
    %v699 = vunpack.c.l.b16 %v652
    %v700 = vunpack.c.h.b16 %v652
    %v701 = vunpack.c.l.b16 %v653
    %v702 = vunpack.c.h.b16 %v653
    %v703 = vunpack.c.l.b16 %v654
    %v704 = vunpack.c.h.b16 %v654
    %v705 = vunpack.c.l.b16 %v655
    %v706 = vunpack.c.h.b16 %v655
    %v707 = vunpack.c.l.b16 %v656
    %v708 = vunpack.c.h.b16 %v656
    %v709 = vunpack.c.l.b16 %v657
    %v710 = vunpack.c.h.b16 %v657
    %v711 = vunpack.c.l.b16 %v658
    %v712 = vunpack.c.h.b16 %v658
    %v713 = vpack.c.b16 %v683, %v681
    %v714 = vpack.c.b16 %v684, %v682
    %v715 = vpack.c.b16 %v687, %v685
    %v716 = vpack.c.b16 %v688, %v686
    %v717 = vpack.c.b16 %v691, %v689
    %v718 = vpack.c.b16 %v692, %v690
    %v719 = vpack.c.b16 %v695, %v693
    %v720 = vpack.c.b16 %v696, %v694
    %v721 = vpack.c.b16 %v699, %v697
    %v722 = vpack.c.b16 %v700, %v698
    %v723 = vpack.c.b16 %v703, %v701
    %v724 = vpack.c.b16 %v704, %v702
    %v725 = vpack.c.b16 %v707, %v705
    %v726 = vpack.c.b16 %v708, %v706
    %v727 = vpack.c.b16 %v711, %v709
    %v728 = vpack.c.b16 %v712, %v710
    %745 = vmatpush.bf16.msra.mxu0 %v727
    %746 = vmatpush.bf16.msra.mxu0 %v725
    %747 = vmatpush.bf16.msra.mxu0 %v723
    %748 = vmatpush.bf16.msra.mxu0 %v721
    %749 = vmatpush.bf16.msra.mxu0 %v719
    %750 = vmatpush.bf16.msra.mxu0 %v717
    %751 = vmatpush.bf16.msra.mxu0 %v715
    %752 = vmatpush.bf16.msra.mxu0 %v713
    %753 = vmatmul.bf16.gmra.mxu0 %v641
    %v754 = vpop.f32.mrf.mxu0
    %v755 = vadd.f32 %v661, %v754
    %v756 = vpop.f32.mrf.mxu0
    %v757 = vadd.f32 %v661, %v756
    %758 = vmatmul.bf16.gmra.mxu0 %v642
    %v759 = vpop.f32.mrf.mxu0
    %v760 = vadd.f32 %v661, %v759
    %v761 = vpop.f32.mrf.mxu0
    %v762 = vadd.f32 %v661, %v761
    %763 = vdwg.mxu0
    %764 = vmatpush.bf16.msra.mxu0 %v728
    %765 = vmatpush.bf16.msra.mxu0 %v726
    %766 = vmatpush.bf16.msra.mxu0 %v724
    %767 = vmatpush.bf16.msra.mxu0 %v722
    %768 = vmatpush.bf16.msra.mxu0 %v720
    %769 = vmatpush.bf16.msra.mxu0 %v718
    %770 = vmatpush.bf16.msra.mxu0 %v716
    %771 = vmatpush.bf16.msra.mxu0 %v714
    %772 = vmatmul.bf16.gmra.mxu0 %v641
    %v773 = vpop.f32.mrf.mxu0
    %v774 = vadd.f32 %v662, %v773
    %v775 = vpop.f32.mrf.mxu0
    %v776 = vadd.f32 %v662, %v775
    %777 = vmatmul.bf16.gmra.mxu0 %v642
    %v778 = vpop.f32.mrf.mxu0
    %v779 = vadd.f32 %v662, %v778
    %v780 = vpop.f32.mrf.mxu0
    %v781 = vadd.f32 %v662, %v780
    %782 = vdwg.mxu0
    %v783 = vmul.f32 %v755, %v755
    %v784 = vmul.f32 %v774, %v774
    %v785 = vmul.f32 %v757, %v757
    %v786 = vmul.f32 %v776, %v776
    %v787 = vmul.f32 %v760, %v760
    %v788 = vmul.f32 %v779, %v779
    %v789 = vmul.f32 %v762, %v762
    %v790 = vmul.f32 %v781, %v781
    %v791 = vmul.f32 %v755, %v783
    %v792 = vmul.f32 %v774, %v784
    %v793 = vmul.f32 %v757, %v785
    %v794 = vmul.f32 %v776, %v786
    %v795 = vmul.f32 %v760, %v787
    %v796 = vmul.f32 %v779, %v788
    %v797 = vmul.f32 %v762, %v789
    %v798 = vmul.f32 %v781, %v790
    %v799 = vmul.f32 %v791, 0.044715
    %v800 = vmul.f32 %v792, 0.044715
    %v801 = vmul.f32 %v793, 0.044715
    %v802 = vmul.f32 %v794, 0.044715
    %v803 = vmul.f32 %v795, 0.044715
    %v804 = vmul.f32 %v796, 0.044715
    %v805 = vmul.f32 %v797, 0.044715
    %v806 = vmul.f32 %v798, 0.044715
    %v807 = vadd.f32 %v755, %v799
    %v808 = vadd.f32 %v774, %v800
    %v809 = vadd.f32 %v757, %v801
    %v810 = vadd.f32 %v776, %v802
    %v811 = vadd.f32 %v760, %v803
    %v812 = vadd.f32 %v779, %v804
    %v813 = vadd.f32 %v762, %v805
    %v814 = vadd.f32 %v781, %v806
    %v815 = vmul.f32 %v807, 0.7978846
    %v816 = vmul.f32 %v808, 0.7978846
    %v817 = vmul.f32 %v809, 0.7978846
    %v818 = vmul.f32 %v810, 0.7978846
    %v819 = vmul.f32 %v811, 0.7978846
    %v820 = vmul.f32 %v812, 0.7978846
    %v821 = vmul.f32 %v813, 0.7978846
    %v822 = vmul.f32 %v814, 0.7978846
    %v823 = vtanh.pop %v815
    %v824 = vtanh.pop %v816
    %v825 = vtanh.pop %v817
    %v826 = vtanh.pop %v818
    %v827 = vtanh.pop %v819
    %v828 = vtanh.pop %v820
    %v829 = vtanh.pop %v821
    %v830 = vtanh.pop %v822
    %v831 = vadd.f32 %v823, 1.0
    %v832 = vadd.f32 %v824, 1.0
    %v833 = vadd.f32 %v825, 1.0
    %v834 = vadd.f32 %v826, 1.0
    %v835 = vadd.f32 %v827, 1.0
    %v836 = vadd.f32 %v828, 1.0
    %v837 = vadd.f32 %v829, 1.0
    %v838 = vadd.f32 %v830, 1.0
    %v839 = vmul.f32 %v831, 0.5
    %v840 = vmul.f32 %v832, 0.5
    %v841 = vmul.f32 %v833, 0.5
    %v842 = vmul.f32 %v834, 0.5
    %v843 = vmul.f32 %v835, 0.5
    %v844 = vmul.f32 %v836, 0.5
    %v845 = vmul.f32 %v837, 0.5
    %v846 = vmul.f32 %v838, 0.5
    %v847 = vmul.f32 %v755, %v839
    %v848 = vmul.f32 %v774, %v840
    %v849 = vmul.f32 %v757, %v841
    %v850 = vmul.f32 %v776, %v842
    %v851 = vmul.f32 %v760, %v843
    %v852 = vmul.f32 %v779, %v844
    %v853 = vmul.f32 %v762, %v845
    %v854 = vmul.f32 %v781, %v846
    %v855 = vpack.c.bf16 %v849, %v847
    %v856 = vpack.c.bf16 %v850, %v848
    %v857 = vpack.c.bf16 %v853, %v851
    %v858 = vpack.c.bf16 %v854, %v852
    %v859 = vld [vmem:[#allocation15] sm:$0xf]
    %v860 = vld [vmem:[#allocation15 + $0x4] sm:$0xf]
    %v861 = vld [vmem:[#allocation15 + $0x8] sm:$0xf]
    %v862 = vld [vmem:[#allocation15 + $0xc] sm:$0xf]
    %v863 = vld [vmem:[#allocation15 + $0x10] sm:$0xf]
    %v864 = vld [vmem:[#allocation15 + $0x14] sm:$0xf]
    %v865 = vld [vmem:[#allocation15 + $0x18] sm:$0xf]
    %v866 = vld [vmem:[#allocation15 + $0x1c] sm:$0xf]
    %v867 = vld [vmem:[#allocation15 + $0x20] sm:$0xf]
    %v868 = vld [vmem:[#allocation15 + $0x24] sm:$0xf]
    %v869 = vld [vmem:[#allocation15 + $0x28] sm:$0xf]
    %v870 = vld [vmem:[#allocation15 + $0x2c] sm:$0xf]
    %v871 = vld [vmem:[#allocation15 + $0x30] sm:$0xf]
    %v872 = vld [vmem:[#allocation15 + $0x34] sm:$0xf]
    %v873 = vld [vmem:[#allocation15 + $0x38] sm:$0xf]
    %v874 = vld [vmem:[#allocation15 + $0x3c] sm:$0xf]
    %v875 = vld [vmem:[#allocation15 + $0x40] sm:$0xf]
    %v876 = vld [vmem:[#allocation15 + $0x44] sm:$0xf]
    %v877 = vld [vmem:[#allocation15 + $0x48] sm:$0xf]
    %v878 = vld [vmem:[#allocation15 + $0x4c] sm:$0xf]
    %v879 = vld [vmem:[#allocation15 + $0x50] sm:$0xf]
    %v880 = vld [vmem:[#allocation15 + $0x54] sm:$0xf]
    %v881 = vld [vmem:[#allocation15 + $0x58] sm:$0xf]
    %v882 = vld [vmem:[#allocation15 + $0x5c] sm:$0xf]
    %v883 = vld [vmem:[#allocation15 + $0x60] sm:$0xf]
    %v884 = vld [vmem:[#allocation15 + $0x64] sm:$0xf]
    %v885 = vld [vmem:[#allocation15 + $0x68] sm:$0xf]
    %v886 = vld [vmem:[#allocation15 + $0x6c] sm:$0xf]
    %v887 = vld [vmem:[#allocation15 + $0x70] sm:$0xf]
    %v888 = vld [vmem:[#allocation15 + $0x74] sm:$0xf]
    %v889 = vld [vmem:[#allocation15 + $0x78] sm:$0xf]
    %v890 = vld [vmem:[#allocation15 + $0x7c] sm:$0xf]
    %v891 = vld [vmem:[#allocation16] sm:$0x1]
    %v893 = vperm.slane %v891, 0
    %v927 = vunpack.c.l.b16 %v859
    %v928 = vunpack.c.l.b16 %v860
    %v929 = vunpack.c.l.b16 %v861
    %v930 = vunpack.c.l.b16 %v862
    %v931 = vunpack.c.l.b16 %v863
    %v932 = vunpack.c.l.b16 %v864
    %v933 = vunpack.c.l.b16 %v865
    %v934 = vunpack.c.l.b16 %v866
    %v935 = vunpack.c.l.b16 %v867
    %v936 = vunpack.c.l.b16 %v868
    %v937 = vunpack.c.l.b16 %v869
    %v938 = vunpack.c.l.b16 %v870
    %v939 = vunpack.c.l.b16 %v871
    %v940 = vunpack.c.l.b16 %v872
    %v941 = vunpack.c.l.b16 %v873
    %v942 = vunpack.c.l.b16 %v874
    %v943 = vunpack.c.l.b16 %v875
    %v944 = vunpack.c.l.b16 %v876
    %v945 = vunpack.c.l.b16 %v877
    %v946 = vunpack.c.l.b16 %v878
    %v947 = vunpack.c.l.b16 %v879
    %v948 = vunpack.c.l.b16 %v880
    %v949 = vunpack.c.l.b16 %v881
    %v950 = vunpack.c.l.b16 %v882
    %v951 = vunpack.c.l.b16 %v883
    %v952 = vunpack.c.l.b16 %v884
    %v953 = vunpack.c.l.b16 %v885
    %v954 = vunpack.c.l.b16 %v886
    %v955 = vunpack.c.l.b16 %v887
    %v956 = vunpack.c.l.b16 %v888
    %v957 = vunpack.c.l.b16 %v889
    %v958 = vunpack.c.l.b16 %v890
    %v959 = vpack.c.b16 %v928, %v927
    %v960 = vpack.c.b16 %v930, %v929
    %v961 = vpack.c.b16 %v932, %v931
    %v962 = vpack.c.b16 %v934, %v933
    %v963 = vpack.c.b16 %v936, %v935
    %v964 = vpack.c.b16 %v938, %v937
    %v965 = vpack.c.b16 %v940, %v939
    %v966 = vpack.c.b16 %v942, %v941
    %v967 = vpack.c.b16 %v944, %v943
    %v968 = vpack.c.b16 %v946, %v945
    %v969 = vpack.c.b16 %v948, %v947
    %v970 = vpack.c.b16 %v950, %v949
    %v971 = vpack.c.b16 %v952, %v951
    %v972 = vpack.c.b16 %v954, %v953
    %v973 = vpack.c.b16 %v956, %v955
    %v974 = vpack.c.b16 %v958, %v957
    %991 = vmatpush.bf16.msra.mxu0 %v966
    %992 = vmatpush.bf16.msra.mxu0 %v965
    %993 = vmatpush.bf16.msra.mxu0 %v964
    %994 = vmatpush.bf16.msra.mxu0 %v963
    %995 = vmatpush.bf16.msra.mxu0 %v962
    %996 = vmatpush.bf16.msra.mxu0 %v961
    %997 = vmatpush.bf16.msra.mxu0 %v960
    %998 = vmatpush.bf16.msra.mxu0 %v959
    %999 = vmatmul.bf16.gmra.mxu0 %v855
    %v1000 = vpop.f32.mrf.mxu0
    %v1001 = vadd.f32 %v893, %v1000
    %v1002 = vpop.f32.mrf.mxu0
    %v1003 = vadd.f32 %v893, %v1002
    %1004 = vmatmul.bf16.gmra.mxu0 %v857
    %v1005 = vpop.f32.mrf.mxu0
    %v1006 = vadd.f32 %v893, %v1005
    %v1007 = vpop.f32.mrf.mxu0
    %v1008 = vadd.f32 %v893, %v1007
    %1009 = vdwg.mxu0
    %1010 = vmatpush.bf16.msra.mxu0 %v974
    %1011 = vmatpush.bf16.msra.mxu0 %v973
    %1012 = vmatpush.bf16.msra.mxu0 %v972
    %1013 = vmatpush.bf16.msra.mxu0 %v971
    %1014 = vmatpush.bf16.msra.mxu0 %v970
    %1015 = vmatpush.bf16.msra.mxu0 %v969
    %1016 = vmatpush.bf16.msra.mxu0 %v968
    %1017 = vmatpush.bf16.msra.mxu0 %v967
    %1018 = vmatmul.bf16.gmra.mxu0 %v856
    %v1019 = vpop.f32.mrf.mxu0
    %v1020 = vadd.f32 %v1001, %v1019
    %v1021 = vpop.f32.mrf.mxu0
    %v1022 = vadd.f32 %v1003, %v1021
    %1023 = vmatmul.bf16.gmra.mxu0 %v858
    %v1024 = vpop.f32.mrf.mxu0
    %v1025 = vadd.f32 %v1006, %v1024
    %v1026 = vpop.f32.mrf.mxu0
    %v1027 = vadd.f32 %v1008, %v1026
    %1028 = vdwg.mxu0
    %v1029 = vadd.f32 %v637, %v1020
    %v1030 = vadd.f32 %v638, %v1022
    %v1031 = vadd.f32 %v639, %v1025
    %v1032 = vadd.f32 %v640, %v1027
    %v1033 = vld [vmem:[#allocation18] sm:$0x1]
    %v1035 = vperm.slane %v1033, 0
    %v1037 = vmul.f32 %v1029, %v1035
    %v1038 = vmul.f32 %v1030, %v1035
    %v1039 = vmul.f32 %v1031, %v1035
    %v1040 = vmul.f32 %v1032, %v1035
    %v1041 = vld [vmem:[#allocation19] sm:$0x1]
    %v1043 = vperm.slane %v1041, 0
    %v1045 = vadd.f32 %v1037, %v1043
    %v1046 = vadd.f32 %v1038, %v1043
    %v1047 = vadd.f32 %v1039, %v1043
    %v1048 = vadd.f32 %v1040, %v1043
    %v1049 = vpack.c.bf16 %v1045, %v1045
    %v1050 = vpack.c.bf16 %v1046, %v1046
    %v1051 = vpack.c.bf16 %v1047, %v1047
    %v1052 = vpack.c.bf16 %v1048, %v1048
    %1053 = vst [vmem:[%s13] sm:$0xf] %v1049
    %1054 = vst [vmem:[%s13 + $0x4] sm:$0xf] %v1050
    %1055 = vst [vmem:[%s13 + $0x8] sm:$0xf] %v1051
    %1056 = vst [vmem:[%s13 + $0xc] sm:$0xf] %v1052
    // Predicated region
    $region102: #{encoder_afcm_block.5} parent=1 // pred_check
      _
    $region103: #{encoder_afcm_block.5} parent=1 // pred_check_branch
      %1058 = sbr.rel (0) target = $region105
    $region104: #{encoder_afcm_block.5} parent=1 // pred_region
      _
    $region105: #{encoder_afcm_block.5} parent=1 // pred_fallthru
      _
    // Predicated region
    $region106: #{encoder_afcm_block.5} parent=1 // pred_check
      _
    $region107: #{encoder_afcm_block.5} parent=1 // pred_check_branch
      %1060 = sbr.rel (0) target = $region109
    $region108: #{encoder_afcm_block.5} parent=1 // pred_region
      _
    $region109: #{encoder_afcm_block.5} parent=1 // pred_fallthru
      _
    %1061 = vsyncpa [#allocation3], 1
    %1062 = vsyncpa [#allocation5], 1
    %1063 = vsyncpa [#allocation8], 1
    %1064 = vsyncpa [#allocation11], 1
    %1065 = vsyncpa [#allocation14], 1
    %1066 = vsyncpa [#allocation17], 1
    %1067 = vsyncpa [#allocation20], 1

// kernel: encoder_afcm_block.7
$region0: #{encoder_afcm_block.7}
  #allocation0 [shape = 'u32[]', space=smem, size = 0x4, offset = 0x4, fixed_abs, tag = 'smem constant byte address 0x4 - core index']
  #allocation1 [shape = 'u32[72,128]{1,0:T(1,128)}', space=vmem, size = 0x9000, scoped, tag = 'internal scratch']
  #allocation2 [shape = 'f32[19,256]{1,0:T(8,128)}', space=vmem, size = 0x6000, scoped, tag = 'scratch operand']
  #allocation3 [shape = 'f32[16,256]{1,0:T(8,128)}', space=vmem, size = 0x4000, scoped, tag = 'scratch operand']
  #allocation4 [shape = 'f32[16,256]{1,0:T(8,128)}', space=vmem, size = 0x4000, scoped, tag = 'scratch operand']
  #allocation5 [shape = 'f32[16,256]{1,0:T(8,128)}', space=vmem, size = 0x4000, scoped, tag = 'scratch operand']
  #allocation6 [shape = 'f32[16,8]{1,0:T(8,128)}', space=vmem, size = 0x2000, scoped, tag = 'scratch operand']
  #allocation7 [shape = 'f32[16,8]{1,0:T(8,128)}', space=vmem, size = 0x2000, scoped, tag = 'scratch operand']
  #allocation8 [shape = 'f32[8,256]{1,0:T(8,128)}', space=vmem, size = 0x2000, scoped, tag = 'scratch operand']
  #allocation9 [shape = 'bf16[16,256]{1,0:T(8,128)(2,1)}', space=vmem, size = 0x2000, scoped, tag = 'scratch operand']
  %s0 = inlined_call_operand.vmem [shape: bf16[2,16,128], index: 0, kind: input, shape index: {}]
  %s1 = inlined_call_operand.hbm [shape: bf16[128,512], index: 1, kind: input, shape index: {}]
  %s2 = inlined_call_operand.vmem [shape: f32[4,256], index: 2, kind: input, shape index: {}]
  %s3 = inlined_call_operand.vmem [shape: f32[1,256], index: 3, kind: input, shape index: {}]
  %s4 = inlined_call_operand.vmem [shape: bf16[256,24], index: 4, kind: input, shape index: {}]
  %s5 = inlined_call_operand.vmem [shape: bf16[8,256], index: 5, kind: input, shape index: {}]
  %s6 = inlined_call_operand.vmem [shape: f32[1,256], index: 6, kind: input, shape index: {}]
  %s7 = inlined_call_operand.vmem [shape: f32[8,256], index: 7, kind: input, shape index: {}]
  %s8 = inlined_call_operand.vmem [shape: f32[1,256], index: 8, kind: input, shape index: {}]
  %s9 = inlined_call_operand.vmem [shape: bf16[256,128], index: 9, kind: input, shape index: {}]
  %s10 = inlined_call_operand.hbm [shape: f32[1,128], index: 10, kind: input, shape index: {}]
  %s11 = inlined_call_operand.hbm [shape: f32[1,128], index: 11, kind: input, shape index: {}]
  %s12 = inlined_call_operand.hbm [shape: f32[2,16,128], index: 12, kind: output, shape index: {}]
  %s13 = sld [smem:[#allocation0]]
  $region100: #{encoder_afcm_block.7} parent=0
    _
  %s15 = ssub.s32 1, %s13
  %s16 = scalar_select 0, %s15, %s13
  $region1: #{encoder_afcm_block.7} parent=0
    #allocation10 [shape = 'u8[131072]{0}', space=vmem, size = 0x20000, scoped, tag = 'input window, operand 1, single buffered']
    #allocation11 [shape = 's32[2]{0}', space=sflag, size = 0x8, scoped, tag = 'scoped memory for encoder_afcm_block.7']
    #allocation12 [shape = 's32[2]{0}', space=sflag, size = 0x8, scoped, tag = 'scoped memory for encoder_afcm_block.7']
    #allocation13 [shape = 'u8[512]{0}', space=vmem, size = 0x400, scoped, tag = 'input window, operand 10, single buffered']
    #allocation14 [shape = 's32[1]{0}', space=sflag, size = 0x4, scoped, tag = 'scoped memory for encoder_afcm_block.7']
    #allocation15 [shape = 'u8[512]{0}', space=vmem, size = 0x400, scoped, tag = 'input window, operand 11, single buffered']
    #allocation16 [shape = 'u8[16384]{0}', space=vmem, size = 0x4000, scoped, tag = 'output window, operand 0']
    %17 = vsyncpa [#allocation11], 0
    %18 = vsyncpa [#allocation14], 0
    %19 = vsyncpa [#allocation12], 0
    %s20 = scalar_lea.sflag [#allocation12], 1
    %21 = vsyncpa %s20, 0
    loop: start=0, step=1, limit=4
    $region2: #{encoder_afcm_block.7} parent=1 // loop_pre_header
      _
    $region3: #{encoder_afcm_block.7} parent=1 // loop_header
      %s23 = sphi 0, %s27
      %p24 = scmp.ge.s32.totalorder %s23, 4
      %s33 = sphi 0, %s35
      %s36 = sphi 0, %s33
      %s37 = sphi 0, %s36
      %s53 = sphi 0, %s37
      %s57 = sphi 0, %s57
      %s59 = sphi 0, %s57
      %s60 = sphi 0, %s59
      %s74 = sphi 0, %s60
      %s78 = sphi 0, %s78
      %s80 = sphi 0, %s78
      %s81 = sphi 0, %s80
      %s95 = sphi 0, %s81
      %s99 = sphi 0, %s99
      %s101 = sphi 0, %s99
      %s102 = sphi 0, %s101
      %s116 = sphi 0, %s102
      %s120 = sphi 0, %s120
      %s122 = sphi 0, %s120
      %s123 = sphi 0, %s122
      %s137 = sphi 0, %s123
      %s141 = sphi 0, %s141
      %s143 = sphi 0, %s141
      %s144 = sphi 0, %s143
      %s158 = sphi 0, %s144
      %s162 = sphi 0, %s162
      %s164 = sphi 0, %s162
      %s165 = sphi 0, %s164
      %s179 = sphi 0, %s165
      %s183 = sphi 0, %s183
      %s185 = sphi 0, %s183
      %s186 = sphi 0, %s185
      %s200 = sphi 0, %s186
      %s204 = sphi 0, %s204
      %s206 = sphi 0, %s204
      %s207 = sphi 0, %s206
      %s221 = sphi 0, %s207
      %s225 = sphi 0, %s225
      %s227 = sphi 0, %s225
      %s228 = sphi 0, %s227
      %s242 = sphi 0, %s228
      %s246 = sphi 0, %s246
      %s248 = sphi 0, %s246
      %s249 = sphi 0, %s248
      %s263 = sphi 0, %s249
      %s267 = sphi 0, %s267
      %s269 = sphi 0, %s267
      %s270 = sphi 0, %s269
      %s284 = sphi 0, %s270
      %s290 = sphi 0, %s292
      %s293 = sphi 0, %s290
      %s294 = sphi 0, %s293
      %s310 = sphi 0, %s294
    $region4: #{encoder_afcm_block.7} parent=1 // loop_header_branch
      %26 = sbr.rel (%p24) target = $region8
    $region5: #{encoder_afcm_block.7} parent=1 // loop_body
      %s28 = ssub.s32 %s23, 1
      %s29 = ssub.s32 %s23, 2
      %s30 = sadd.s32 %s23, 1
      %s31 = ssub.s32 %s23, %s30
      %p32 = scmp.eq.s32.totalorder %s31, 0
      %s34 = sadd.s32 %s33, 1
      %s35 = scalar_select %p32, %s33, %s34
      %p38 = pneg %p32
      %p39 = scmp.eq.s32.totalorder %s23, 1
      %p40 = por %p38, %p39
      %p41 = scmp.ne.s32.totalorder %s33, %s36
      %p42 = scmp.eq.s32.totalorder %s23, 0
      %p43 = por %p41, %p42
      %p44 = scmp.ne.s32.totalorder %s33, %s36
      %p45 = scmp.eq.s32.totalorder %s28, 1
      %p46 = por %p44, %p45
      %p47 = scmp.ne.s32.totalorder %s36, %s37
      %p48 = scmp.eq.s32.totalorder %s28, 0
      %p49 = por %p47, %p48
      %p50 = scmp.ne.s32.totalorder %s36, %s37
      %p51 = scmp.eq.s32.totalorder %s29, 1
      %p52 = por %p50, %p51
      %p54 = scmp.ne.s32.totalorder %s37, %s53
      %p55 = scmp.eq.s32.totalorder %s29, 0
      %p56 = por %p54, %p55
      %s58 = sadd.s32 %s57, 1
      %p61 = scmp.eq.s32.totalorder %s23, 1
      %p62 = scmp.ne.s32.totalorder %s57, %s59
      %p63 = scmp.eq.s32.totalorder %s23, 0
      %p64 = por %p62, %p63
      %p65 = scmp.ne.s32.totalorder %s57, %s59
      %p66 = scmp.eq.s32.totalorder %s28, 1
      %p67 = por %p65, %p66
      %p68 = scmp.ne.s32.totalorder %s59, %s60
      %p69 = scmp.eq.s32.totalorder %s28, 0
      %p70 = por %p68, %p69
      %p71 = scmp.ne.s32.totalorder %s59, %s60
      %p72 = scmp.eq.s32.totalorder %s29, 1
      %p73 = por %p71, %p72
      %p75 = scmp.ne.s32.totalorder %s60, %s74
      %p76 = scmp.eq.s32.totalorder %s29, 0
      %p77 = por %p75, %p76
      %s79 = sadd.s32 %s78, 1
      %p82 = scmp.eq.s32.totalorder %s23, 1
      %p83 = scmp.ne.s32.totalorder %s78, %s80
      %p84 = scmp.eq.s32.totalorder %s23, 0
      %p85 = por %p83, %p84
      %p86 = scmp.ne.s32.totalorder %s78, %s80
      %p87 = scmp.eq.s32.totalorder %s28, 1
      %p88 = por %p86, %p87
      %p89 = scmp.ne.s32.totalorder %s80, %s81
      %p90 = scmp.eq.s32.totalorder %s28, 0
      %p91 = por %p89, %p90
      %p92 = scmp.ne.s32.totalorder %s80, %s81
      %p93 = scmp.eq.s32.totalorder %s29, 1
      %p94 = por %p92, %p93
      %p96 = scmp.ne.s32.totalorder %s81, %s95
      %p97 = scmp.eq.s32.totalorder %s29, 0
      %p98 = por %p96, %p97
      %s100 = sadd.s32 %s99, 1
      %p103 = scmp.eq.s32.totalorder %s23, 1
      %p104 = scmp.ne.s32.totalorder %s99, %s101
      %p105 = scmp.eq.s32.totalorder %s23, 0
      %p106 = por %p104, %p105
      %p107 = scmp.ne.s32.totalorder %s99, %s101
      %p108 = scmp.eq.s32.totalorder %s28, 1
      %p109 = por %p107, %p108
      %p110 = scmp.ne.s32.totalorder %s101, %s102
      %p111 = scmp.eq.s32.totalorder %s28, 0
      %p112 = por %p110, %p111
      %p113 = scmp.ne.s32.totalorder %s101, %s102
      %p114 = scmp.eq.s32.totalorder %s29, 1
      %p115 = por %p113, %p114
      %p117 = scmp.ne.s32.totalorder %s102, %s116
      %p118 = scmp.eq.s32.totalorder %s29, 0
      %p119 = por %p117, %p118
      %s121 = sadd.s32 %s120, 1
      %p124 = scmp.eq.s32.totalorder %s23, 1
      %p125 = scmp.ne.s32.totalorder %s120, %s122
      %p126 = scmp.eq.s32.totalorder %s23, 0
      %p127 = por %p125, %p126
      %p128 = scmp.ne.s32.totalorder %s120, %s122
      %p129 = scmp.eq.s32.totalorder %s28, 1
      %p130 = por %p128, %p129
      %p131 = scmp.ne.s32.totalorder %s122, %s123
      %p132 = scmp.eq.s32.totalorder %s28, 0
      %p133 = por %p131, %p132
      %p134 = scmp.ne.s32.totalorder %s122, %s123
      %p135 = scmp.eq.s32.totalorder %s29, 1
      %p136 = por %p134, %p135
      %p138 = scmp.ne.s32.totalorder %s123, %s137
      %p139 = scmp.eq.s32.totalorder %s29, 0
      %p140 = por %p138, %p139
      %s142 = sadd.s32 %s141, 1
      %p145 = scmp.eq.s32.totalorder %s23, 1
      %p146 = scmp.ne.s32.totalorder %s141, %s143
      %p147 = scmp.eq.s32.totalorder %s23, 0
      %p148 = por %p146, %p147
      %p149 = scmp.ne.s32.totalorder %s141, %s143
      %p150 = scmp.eq.s32.totalorder %s28, 1
      %p151 = por %p149, %p150
      %p152 = scmp.ne.s32.totalorder %s143, %s144
      %p153 = scmp.eq.s32.totalorder %s28, 0
      %p154 = por %p152, %p153
      %p155 = scmp.ne.s32.totalorder %s143, %s144
      %p156 = scmp.eq.s32.totalorder %s29, 1
      %p157 = por %p155, %p156
      %p159 = scmp.ne.s32.totalorder %s144, %s158
      %p160 = scmp.eq.s32.totalorder %s29, 0
      %p161 = por %p159, %p160
      %s163 = sadd.s32 %s162, 1
      %p166 = scmp.eq.s32.totalorder %s23, 1
      %p167 = scmp.ne.s32.totalorder %s162, %s164
      %p168 = scmp.eq.s32.totalorder %s23, 0
      %p169 = por %p167, %p168
      %p170 = scmp.ne.s32.totalorder %s162, %s164
      %p171 = scmp.eq.s32.totalorder %s28, 1
      %p172 = por %p170, %p171
      %p173 = scmp.ne.s32.totalorder %s164, %s165
      %p174 = scmp.eq.s32.totalorder %s28, 0
      %p175 = por %p173, %p174
      %p176 = scmp.ne.s32.totalorder %s164, %s165
      %p177 = scmp.eq.s32.totalorder %s29, 1
      %p178 = por %p176, %p177
      %p180 = scmp.ne.s32.totalorder %s165, %s179
      %p181 = scmp.eq.s32.totalorder %s29, 0
      %p182 = por %p180, %p181
      %s184 = sadd.s32 %s183, 1
      %p187 = scmp.eq.s32.totalorder %s23, 1
      %p188 = scmp.ne.s32.totalorder %s183, %s185
      %p189 = scmp.eq.s32.totalorder %s23, 0
      %p190 = por %p188, %p189
      %p191 = scmp.ne.s32.totalorder %s183, %s185
      %p192 = scmp.eq.s32.totalorder %s28, 1
      %p193 = por %p191, %p192
      %p194 = scmp.ne.s32.totalorder %s185, %s186
      %p195 = scmp.eq.s32.totalorder %s28, 0
      %p196 = por %p194, %p195
      %p197 = scmp.ne.s32.totalorder %s185, %s186
      %p198 = scmp.eq.s32.totalorder %s29, 1
      %p199 = por %p197, %p198
      %p201 = scmp.ne.s32.totalorder %s186, %s200
      %p202 = scmp.eq.s32.totalorder %s29, 0
      %p203 = por %p201, %p202
      %s205 = sadd.s32 %s204, 1
      %p208 = scmp.eq.s32.totalorder %s23, 1
      %p209 = scmp.ne.s32.totalorder %s204, %s206
      %p210 = scmp.eq.s32.totalorder %s23, 0
      %p211 = por %p209, %p210
      %p212 = scmp.ne.s32.totalorder %s204, %s206
      %p213 = scmp.eq.s32.totalorder %s28, 1
      %p214 = por %p212, %p213
      %p215 = scmp.ne.s32.totalorder %s206, %s207
      %p216 = scmp.eq.s32.totalorder %s28, 0
      %p217 = por %p215, %p216
      %p218 = scmp.ne.s32.totalorder %s206, %s207
      %p219 = scmp.eq.s32.totalorder %s29, 1
      %p220 = por %p218, %p219
      %p222 = scmp.ne.s32.totalorder %s207, %s221
      %p223 = scmp.eq.s32.totalorder %s29, 0
      %p224 = por %p222, %p223
      %s226 = sadd.s32 %s225, 1
      %p229 = scmp.eq.s32.totalorder %s23, 1
      %p230 = scmp.ne.s32.totalorder %s225, %s227
      %p231 = scmp.eq.s32.totalorder %s23, 0
      %p232 = por %p230, %p231
      %p233 = scmp.ne.s32.totalorder %s225, %s227
      %p234 = scmp.eq.s32.totalorder %s28, 1
      %p235 = por %p233, %p234
      %p236 = scmp.ne.s32.totalorder %s227, %s228
      %p237 = scmp.eq.s32.totalorder %s28, 0
      %p238 = por %p236, %p237
      %p239 = scmp.ne.s32.totalorder %s227, %s228
      %p240 = scmp.eq.s32.totalorder %s29, 1
      %p241 = por %p239, %p240
      %p243 = scmp.ne.s32.totalorder %s228, %s242
      %p244 = scmp.eq.s32.totalorder %s29, 0
      %p245 = por %p243, %p244
      %s247 = sadd.s32 %s246, 1
      %p250 = scmp.eq.s32.totalorder %s23, 1
      %p251 = scmp.ne.s32.totalorder %s246, %s248
      %p252 = scmp.eq.s32.totalorder %s23, 0
      %p253 = por %p251, %p252
      %p254 = scmp.ne.s32.totalorder %s246, %s248
      %p255 = scmp.eq.s32.totalorder %s28, 1
      %p256 = por %p254, %p255
      %p257 = scmp.ne.s32.totalorder %s248, %s249
      %p258 = scmp.eq.s32.totalorder %s28, 0
      %p259 = por %p257, %p258
      %p260 = scmp.ne.s32.totalorder %s248, %s249
      %p261 = scmp.eq.s32.totalorder %s29, 1
      %p262 = por %p260, %p261
      %p264 = scmp.ne.s32.totalorder %s249, %s263
      %p265 = scmp.eq.s32.totalorder %s29, 0
      %p266 = por %p264, %p265
      %s268 = sadd.s32 %s267, 1
      %p271 = scmp.eq.s32.totalorder %s23, 1
      %p272 = scmp.ne.s32.totalorder %s267, %s269
      %p273 = scmp.eq.s32.totalorder %s23, 0
      %p274 = por %p272, %p273
      %p275 = scmp.ne.s32.totalorder %s267, %s269
      %p276 = scmp.eq.s32.totalorder %s28, 1
      %p277 = por %p275, %p276
      %p278 = scmp.ne.s32.totalorder %s269, %s270
      %p279 = scmp.eq.s32.totalorder %s28, 0
      %p280 = por %p278, %p279
      %p281 = scmp.ne.s32.totalorder %s269, %s270
      %p282 = scmp.eq.s32.totalorder %s29, 1
      %p283 = por %p281, %p282
      %p285 = scmp.ne.s32.totalorder %s270, %s284
      %p286 = scmp.eq.s32.totalorder %s29, 0
      %p287 = por %p285, %p286
      %s288 = ssub.s32 %s23, %s30
      %p289 = scmp.eq.s32.totalorder %s288, 0
      %s291 = sadd.s32 %s290, 1
      %s292 = scalar_select %p289, %s290, %s291
      %p295 = pneg %p289
      %p296 = scmp.eq.s32.totalorder %s23, 1
      %p297 = por %p295, %p296
      %p298 = scmp.ne.s32.totalorder %s290, %s293
      %p299 = scmp.eq.s32.totalorder %s23, 0
      %p300 = por %p298, %p299
      %p301 = scmp.ne.s32.totalorder %s290, %s293
      %p302 = scmp.eq.s32.totalorder %s28, 1
      %p303 = por %p301, %p302
      %p304 = scmp.ne.s32.totalorder %s293, %s294
      %p305 = scmp.eq.s32.totalorder %s28, 0
      %p306 = por %p304, %p305
      %p307 = scmp.ne.s32.totalorder %s293, %s294
      %p308 = scmp.eq.s32.totalorder %s29, 1
      %p309 = por %p307, %p308
      %p311 = scmp.ne.s32.totalorder %s294, %s310
      %p312 = scmp.eq.s32.totalorder %s29, 0
      %p313 = por %p311, %p312
      %p314 = scmp.le.s32.totalorder 1, %s23
      %p315 = scmp.lt.s32.totalorder %s23, 3
      %p316 = pnand %p314, %p315
      %p317 = pneg %p316
      // Predicated region
      $region9: #{encoder_afcm_block.7} parent=5 // pred_check
        _
      $region10: #{encoder_afcm_block.7} parent=5 // pred_check_branch
        %319 = sbr.rel (%p316) target = $region12
      $region11: #{encoder_afcm_block.7} parent=5 // pred_region
        %s320 = ssub.s32 %s23, 1
        // Predicated region
        $region13: #{encoder_afcm_block.7} parent=11 // pred_check
          %p321 = pneg %p70
        $region14: #{encoder_afcm_block.7} parent=11 // pred_check_branch
          %323 = sbr.rel (%p321) target = $region16
        $region15: #{encoder_afcm_block.7} parent=11 // pred_region
          %325 = vsyncadd [#allocation11], 0
          %s326 = sshll.u32 %s1, 4
          %s327 = int_to_ptr.hbm [resolvable:$true] %s326
          %s328 = sshll.u32 [#allocation10], 4
          %s329 = int_to_ptr.vmem [resolvable:$true] %s328
          %334 = dma.hbm_to_vmem [thread:$0]  %s327, 4096, %s329, [#allocation11], 256, 256, 16
        $region16: #{encoder_afcm_block.7} parent=11 // pred_fallthru
          _
        // Predicated region
        $region17: #{encoder_afcm_block.7} parent=11 // pred_check
          %p335 = pneg %p91
        $region18: #{encoder_afcm_block.7} parent=11 // pred_check_branch
          %337 = sbr.rel (%p335) target = $region20
        $region19: #{encoder_afcm_block.7} parent=11 // pred_region
          _
        $region20: #{encoder_afcm_block.7} parent=11 // pred_fallthru
          _
        // Predicated region
        $region21: #{encoder_afcm_block.7} parent=11 // pred_check
          %p338 = pneg %p112
        $region22: #{encoder_afcm_block.7} parent=11 // pred_check_branch
          %340 = sbr.rel (%p338) target = $region24
        $region23: #{encoder_afcm_block.7} parent=11 // pred_region
          _
        $region24: #{encoder_afcm_block.7} parent=11 // pred_fallthru
          _
        // Predicated region
        $region25: #{encoder_afcm_block.7} parent=11 // pred_check
          %p341 = pneg %p133
        $region26: #{encoder_afcm_block.7} parent=11 // pred_check_branch
          %343 = sbr.rel (%p341) target = $region28
        $region27: #{encoder_afcm_block.7} parent=11 // pred_region
          _
        $region28: #{encoder_afcm_block.7} parent=11 // pred_fallthru
          _
        // Predicated region
        $region29: #{encoder_afcm_block.7} parent=11 // pred_check
          %p344 = pneg %p154
        $region30: #{encoder_afcm_block.7} parent=11 // pred_check_branch
          %346 = sbr.rel (%p344) target = $region32
        $region31: #{encoder_afcm_block.7} parent=11 // pred_region
          _
        $region32: #{encoder_afcm_block.7} parent=11 // pred_fallthru
          _
        // Predicated region
        $region33: #{encoder_afcm_block.7} parent=11 // pred_check
          %p347 = pneg %p175
        $region34: #{encoder_afcm_block.7} parent=11 // pred_check_branch
          %349 = sbr.rel (%p347) target = $region36
        $region35: #{encoder_afcm_block.7} parent=11 // pred_region
          _
        $region36: #{encoder_afcm_block.7} parent=11 // pred_fallthru
          _
        // Predicated region
        $region37: #{encoder_afcm_block.7} parent=11 // pred_check
          %p350 = pneg %p196
        $region38: #{encoder_afcm_block.7} parent=11 // pred_check_branch
          %352 = sbr.rel (%p350) target = $region40
        $region39: #{encoder_afcm_block.7} parent=11 // pred_region
          _
        $region40: #{encoder_afcm_block.7} parent=11 // pred_fallthru
          _
        // Predicated region
        $region41: #{encoder_afcm_block.7} parent=11 // pred_check
          %p353 = pneg %p217
        $region42: #{encoder_afcm_block.7} parent=11 // pred_check_branch
          %355 = sbr.rel (%p353) target = $region44
        $region43: #{encoder_afcm_block.7} parent=11 // pred_region
          _
        $region44: #{encoder_afcm_block.7} parent=11 // pred_fallthru
          _
        // Predicated region
        $region45: #{encoder_afcm_block.7} parent=11 // pred_check
          %p356 = pneg %p238
        $region46: #{encoder_afcm_block.7} parent=11 // pred_check_branch
          %358 = sbr.rel (%p356) target = $region48
        $region47: #{encoder_afcm_block.7} parent=11 // pred_region
          _
        $region48: #{encoder_afcm_block.7} parent=11 // pred_fallthru
          _
        // Predicated region
        $region49: #{encoder_afcm_block.7} parent=11 // pred_check
          %p359 = pneg %p259
        $region50: #{encoder_afcm_block.7} parent=11 // pred_check_branch
          %361 = sbr.rel (%p359) target = $region52
        $region51: #{encoder_afcm_block.7} parent=11 // pred_region
          %363 = vsyncadd [#allocation14], 0
          %s365 = sshll.u32 %s10, 4
          %s366 = int_to_ptr.hbm [resolvable:$true] %s365
          %s367 = sshll.u32 [#allocation13], 4
          %s368 = int_to_ptr.vmem [resolvable:$true] %s367
          %370 = dma.hbm_to_vmem [thread:$0]  %s366, 16, %s368, [#allocation14]
        $region52: #{encoder_afcm_block.7} parent=11 // pred_fallthru
          _
        // Predicated region
        $region53: #{encoder_afcm_block.7} parent=11 // pred_check
          %p371 = pneg %p280
        $region54: #{encoder_afcm_block.7} parent=11 // pred_check_branch
          %373 = sbr.rel (%p371) target = $region56
        $region55: #{encoder_afcm_block.7} parent=11 // pred_region
          %375 = vsyncadd [#allocation14], 0
          %s377 = sshll.u32 %s11, 4
          %s378 = int_to_ptr.hbm [resolvable:$true] %s377
          %s379 = sshll.u32 [#allocation15], 4
          %s380 = int_to_ptr.vmem [resolvable:$true] %s379
          %382 = dma.hbm_to_vmem [thread:$0]  %s378, 16, %s380, [#allocation14]
        $region56: #{encoder_afcm_block.7} parent=11 // pred_fallthru
          _
      $region12: #{encoder_afcm_block.7} parent=5 // pred_fallthru
        _
      %p383 = scmp.lt.s32.totalorder %s23, 2
      // Predicated region
      $region57: #{encoder_afcm_block.7} parent=5 // pred_check
        %p384 = pneg %p383
      $region58: #{encoder_afcm_block.7} parent=5 // pred_check_branch
        %386 = sbr.rel (%p384) target = $region60
      $region59: #{encoder_afcm_block.7} parent=5 // pred_region
        // Predicated region
        $region61: #{encoder_afcm_block.7} parent=59 // pred_check
          %p387 = pneg %p43
        $region62: #{encoder_afcm_block.7} parent=59 // pred_check_branch
          %389 = sbr.rel (%p387) target = $region64
        $region63: #{encoder_afcm_block.7} parent=59 // pred_region
          %p390 = scmp.lt.s32.totalorder %s23, 1
          %s391 = scalar_select %p390, %s23, 1
          %s392 = smul.addr %s391, 2
          %s393 = smul.addr %s392, 4
          %s394 = scalar_lea.vmem %s0, %s393
        $region64: #{encoder_afcm_block.7} parent=59 // pred_fallthru
          _
      $region60: #{encoder_afcm_block.7} parent=5 // pred_fallthru
        _
      %p395 = scmp.le.s32.totalorder 1, %s23
      %p396 = scmp.lt.s32.totalorder %s23, 3
      %p397 = pnand %p395, %p396
      %p398 = pneg %p397
      // Predicated region
      $region65: #{encoder_afcm_block.7} parent=5 // pred_check
        _
      $region66: #{encoder_afcm_block.7} parent=5 // pred_check_branch
        %400 = sbr.rel (%p397) target = $region68
      $region67: #{encoder_afcm_block.7} parent=5 // pred_region
        %s401 = ssub.s32 %s23, 1
        // Predicated region
        $region69: #{encoder_afcm_block.7} parent=67 // pred_check
          %p402 = pneg %p70
        $region70: #{encoder_afcm_block.7} parent=67 // pred_check_branch
          %404 = sbr.rel (%p402) target = $region72
        $region71: #{encoder_afcm_block.7} parent=67 // pred_region
          %406 = dma.done [#allocation11], 4096
        $region72: #{encoder_afcm_block.7} parent=67 // pred_fallthru
          _
        // Predicated region
        $region73: #{encoder_afcm_block.7} parent=67 // pred_check
          %p407 = pneg %p259
        $region74: #{encoder_afcm_block.7} parent=67 // pred_check_branch
          %409 = sbr.rel (%p407) target = $region76
        $region75: #{encoder_afcm_block.7} parent=67 // pred_region
          %411 = dma.done [#allocation14], 16
        $region76: #{encoder_afcm_block.7} parent=67 // pred_fallthru
          _
        // Predicated region
        $region77: #{encoder_afcm_block.7} parent=67 // pred_check
          %p412 = pneg %p280
        $region78: #{encoder_afcm_block.7} parent=67 // pred_check_branch
          %414 = sbr.rel (%p412) target = $region80
        $region79: #{encoder_afcm_block.7} parent=67 // pred_region
          %416 = dma.done [#allocation14], 16
        $region80: #{encoder_afcm_block.7} parent=67 // pred_fallthru
          _
        %p417 = scmp.lt.s32.totalorder %s28, 1
        %s418 = scalar_select %p417, %s28, 1
        %s419 = smul.addr %s418, 2
        %s420 = smul.addr %s419, 4
        %s421 = scalar_lea.vmem %s0, %s420
        %p422 = pneg %p49
        %p423 = pneg %p46
        %p424 = pneg %p70
        %p425 = pneg %p67
        %p426 = pneg %p91
        %p427 = pneg %p88
        %p428 = pneg %p112
        %p429 = pneg %p109
        %p430 = pneg %p133
        %p431 = pneg %p130
        %p432 = pneg %p154
        %p433 = pneg %p151
        %p434 = pneg %p175
        %p435 = pneg %p172
        %p436 = pneg %p196
        %p437 = pneg %p193
        %p438 = pneg %p217
        %p439 = pneg %p214
        %p440 = pneg %p238
        %p441 = pneg %p235
        %p442 = pneg %p259
        %p443 = pneg %p256
        %p444 = pneg %p280
        %p445 = pneg %p277
        %p446 = pneg %p306
        %p447 = pneg %p303
        %s448 = sand.u32 %s293, 1
        %s449 = scalar_lea.sflag [#allocation12], %s448
        %s450 = sand.u32 %s293, 1
        %s451 = smul.addr %s450, 16
        %s452 = scalar_lea.vmem [#allocation16], %s451
        %p453 = scmp.lt.s32.totalorder %s28, 1
        %s454 = scalar_select %p453, %s28, 1
        %s455 = smul.addr %s454, 2
        %s456 = smul.addr %s455, 4
        %s457 = scalar_lea.vmem %s0, %s456
        %v459 = vld [vmem:[%s457] sm:$0xf]
        %v460 = vld [vmem:[%s457 + $0x4] sm:$0xf]
        %v461 = vld [vmem:[#allocation10] sm:$0xff]
        %v462 = vld [vmem:[#allocation10 + $0x8] sm:$0xff]
        %v463 = vld [vmem:[#allocation10 + $0x10] sm:$0xff]
        %v464 = vld [vmem:[#allocation10 + $0x18] sm:$0xff]
        %v465 = vld [vmem:[#allocation10 + $0x20] sm:$0xff]
        %v466 = vld [vmem:[#allocation10 + $0x28] sm:$0xff]
        %v467 = vld [vmem:[#allocation10 + $0x30] sm:$0xff]
        %v468 = vld [vmem:[#allocation10 + $0x38] sm:$0xff]
        %v469 = vld [vmem:[#allocation10 + $0x40] sm:$0xff]
        %v470 = vld [vmem:[#allocation10 + $0x48] sm:$0xff]
        %v471 = vld [vmem:[#allocation10 + $0x50] sm:$0xff]
        %v472 = vld [vmem:[#allocation10 + $0x58] sm:$0xff]
        %v473 = vld [vmem:[#allocation10 + $0x60] sm:$0xff]
        %v474 = vld [vmem:[#allocation10 + $0x68] sm:$0xff]
        %v475 = vld [vmem:[#allocation10 + $0x70] sm:$0xff]
        %v476 = vld [vmem:[#allocation10 + $0x78] sm:$0xff]
        %v477 = vld [vmem:[#allocation10 + $0x80] sm:$0xff]
        %v478 = vld [vmem:[#allocation10 + $0x88] sm:$0xff]
        %v479 = vld [vmem:[#allocation10 + $0x90] sm:$0xff]
        %v480 = vld [vmem:[#allocation10 + $0x98] sm:$0xff]
        %v481 = vld [vmem:[#allocation10 + $0xa0] sm:$0xff]
        %v482 = vld [vmem:[#allocation10 + $0xa8] sm:$0xff]
        %v483 = vld [vmem:[#allocation10 + $0xb0] sm:$0xff]
        %v484 = vld [vmem:[#allocation10 + $0xb8] sm:$0xff]
        %v485 = vld [vmem:[#allocation10 + $0xc0] sm:$0xff]
        %v486 = vld [vmem:[#allocation10 + $0xc8] sm:$0xff]
        %v487 = vld [vmem:[#allocation10 + $0xd0] sm:$0xff]
        %v488 = vld [vmem:[#allocation10 + $0xd8] sm:$0xff]
        %v489 = vld [vmem:[#allocation10 + $0xe0] sm:$0xff]
        %v490 = vld [vmem:[#allocation10 + $0xe8] sm:$0xff]
        %v491 = vld [vmem:[#allocation10 + $0xf0] sm:$0xff]
        %v492 = vld [vmem:[#allocation10 + $0xf8] sm:$0xff]
        %v495 = vunpack.c.l.b16 %v459
        %v496 = vunpack.c.l.b16 %v460
        %v497 = vpack.c.b16 %v496, %v495
        %v531 = vunpack.c.l.b16 %v461
        %v532 = vunpack.c.h.b16 %v461
        %v533 = vunpack.c.l.b16 %v462
        %v534 = vunpack.c.h.b16 %v462
        %v535 = vunpack.c.l.b16 %v463
        %v536 = vunpack.c.h.b16 %v463
        %v537 = vunpack.c.l.b16 %v464
        %v538 = vunpack.c.h.b16 %v464
        %v539 = vunpack.c.l.b16 %v465
        %v540 = vunpack.c.h.b16 %v465
        %v541 = vunpack.c.l.b16 %v466
        %v542 = vunpack.c.h.b16 %v466
        %v543 = vunpack.c.l.b16 %v467
        %v544 = vunpack.c.h.b16 %v467
        %v545 = vunpack.c.l.b16 %v468
        %v546 = vunpack.c.h.b16 %v468
        %v547 = vunpack.c.l.b16 %v469
        %v548 = vunpack.c.h.b16 %v469
        %v549 = vunpack.c.l.b16 %v470
        %v550 = vunpack.c.h.b16 %v470
        %v551 = vunpack.c.l.b16 %v471
        %v552 = vunpack.c.h.b16 %v471
        %v553 = vunpack.c.l.b16 %v472
        %v554 = vunpack.c.h.b16 %v472
        %v555 = vunpack.c.l.b16 %v473
        %v556 = vunpack.c.h.b16 %v473
        %v557 = vunpack.c.l.b16 %v474
        %v558 = vunpack.c.h.b16 %v474
        %v559 = vunpack.c.l.b16 %v475
        %v560 = vunpack.c.h.b16 %v475
        %v561 = vunpack.c.l.b16 %v476
        %v562 = vunpack.c.h.b16 %v476
        %v563 = vunpack.c.l.b16 %v477
        %v564 = vunpack.c.h.b16 %v477
        %v565 = vunpack.c.l.b16 %v478
        %v566 = vunpack.c.h.b16 %v478
        %v567 = vunpack.c.l.b16 %v479
        %v568 = vunpack.c.h.b16 %v479
        %v569 = vunpack.c.l.b16 %v480
        %v570 = vunpack.c.h.b16 %v480
        %v571 = vunpack.c.l.b16 %v481
        %v572 = vunpack.c.h.b16 %v481
        %v573 = vunpack.c.l.b16 %v482
        %v574 = vunpack.c.h.b16 %v482
        %v575 = vunpack.c.l.b16 %v483
        %v576 = vunpack.c.h.b16 %v483
        %v577 = vunpack.c.l.b16 %v484
        %v578 = vunpack.c.h.b16 %v484
        %v579 = vunpack.c.l.b16 %v485
        %v580 = vunpack.c.h.b16 %v485
        %v581 = vunpack.c.l.b16 %v486
        %v582 = vunpack.c.h.b16 %v486
        %v583 = vunpack.c.l.b16 %v487
        %v584 = vunpack.c.h.b16 %v487
        %v585 = vunpack.c.l.b16 %v488
        %v586 = vunpack.c.h.b16 %v488
        %v587 = vunpack.c.l.b16 %v489
        %v588 = vunpack.c.h.b16 %v489
        %v589 = vunpack.c.l.b16 %v490
        %v590 = vunpack.c.h.b16 %v490
        %v591 = vunpack.c.l.b16 %v491
        %v592 = vunpack.c.h.b16 %v491
        %v593 = vunpack.c.l.b16 %v492
        %v594 = vunpack.c.h.b16 %v492
        %v595 = vpack.c.b16 %v535, %v531
        %v596 = vpack.c.b16 %v536, %v532
        %v597 = vpack.c.b16 %v537, %v533
        %v598 = vpack.c.b16 %v538, %v534
        %v599 = vpack.c.b16 %v543, %v539
        %v600 = vpack.c.b16 %v544, %v540
        %v601 = vpack.c.b16 %v545, %v541
        %v602 = vpack.c.b16 %v546, %v542
        %v603 = vpack.c.b16 %v551, %v547
        %v604 = vpack.c.b16 %v552, %v548
        %v605 = vpack.c.b16 %v553, %v549
        %v606 = vpack.c.b16 %v554, %v550
        %v607 = vpack.c.b16 %v559, %v555
        %v608 = vpack.c.b16 %v560, %v556
        %v609 = vpack.c.b16 %v561, %v557
        %v610 = vpack.c.b16 %v562, %v558
        %v611 = vpack.c.b16 %v567, %v563
        %v612 = vpack.c.b16 %v568, %v564
        %v613 = vpack.c.b16 %v569, %v565
        %v614 = vpack.c.b16 %v570, %v566
        %v615 = vpack.c.b16 %v575, %v571
        %v616 = vpack.c.b16 %v576, %v572
        %v617 = vpack.c.b16 %v577, %v573
        %v618 = vpack.c.b16 %v578, %v574
        %v619 = vpack.c.b16 %v583, %v579
        %v620 = vpack.c.b16 %v584, %v580
        %v621 = vpack.c.b16 %v585, %v581
        %v622 = vpack.c.b16 %v586, %v582
        %v623 = vpack.c.b16 %v591, %v587
        %v624 = vpack.c.b16 %v592, %v588
        %v625 = vpack.c.b16 %v593, %v589
        %v626 = vpack.c.b16 %v594, %v590
        %659 = vmatpush.bf16.msra.mxu0 %v623
        %660 = vmatpush.bf16.msra.mxu0 %v619
        %661 = vmatpush.bf16.msra.mxu0 %v615
        %662 = vmatpush.bf16.msra.mxu0 %v611
        %663 = vmatpush.bf16.msra.mxu0 %v607
        %664 = vmatpush.bf16.msra.mxu0 %v603
        %665 = vmatpush.bf16.msra.mxu0 %v599
        %666 = vmatpush.bf16.msra.mxu0 %v595
        %667 = vmatmul.bf16.gmra.mxu0 %v497
        %v668 = vpop.f32.mrf.mxu0
        %v669 = vadd.f32 0.0, %v668
        %v670 = vpop.f32.mrf.mxu0
        %v671 = vadd.f32 0.0, %v670
        %672 = vdwg.mxu0
        %673 = vmatpush.bf16.msra.mxu0 %v624
        %674 = vmatpush.bf16.msra.mxu0 %v620
        %675 = vmatpush.bf16.msra.mxu0 %v616
        %676 = vmatpush.bf16.msra.mxu0 %v612
        %677 = vmatpush.bf16.msra.mxu0 %v608
        %678 = vmatpush.bf16.msra.mxu0 %v604
        %679 = vmatpush.bf16.msra.mxu0 %v600
        %680 = vmatpush.bf16.msra.mxu0 %v596
        %681 = vmatmul.bf16.gmra.mxu0 %v497
        %v682 = vpop.f32.mrf.mxu0
        %v683 = vadd.f32 0.0, %v682
        %v684 = vpop.f32.mrf.mxu0
        %v685 = vadd.f32 0.0, %v684
        %686 = vdwg.mxu0
        %687 = vmatpush.bf16.msra.mxu0 %v625
        %688 = vmatpush.bf16.msra.mxu0 %v621
        %689 = vmatpush.bf16.msra.mxu0 %v617
        %690 = vmatpush.bf16.msra.mxu0 %v613
        %691 = vmatpush.bf16.msra.mxu0 %v609
        %692 = vmatpush.bf16.msra.mxu0 %v605
        %693 = vmatpush.bf16.msra.mxu0 %v601
        %694 = vmatpush.bf16.msra.mxu0 %v597
        %695 = vmatmul.bf16.gmra.mxu0 %v497
        %v696 = vpop.f32.mrf.mxu0
        %v697 = vadd.f32 0.0, %v696
        %v698 = vpop.f32.mrf.mxu0
        %v699 = vadd.f32 0.0, %v698
        %700 = vdwg.mxu0
        %701 = vmatpush.bf16.msra.mxu0 %v626
        %702 = vmatpush.bf16.msra.mxu0 %v622
        %703 = vmatpush.bf16.msra.mxu0 %v618
        %704 = vmatpush.bf16.msra.mxu0 %v614
        %705 = vmatpush.bf16.msra.mxu0 %v610
        %706 = vmatpush.bf16.msra.mxu0 %v606
        %707 = vmatpush.bf16.msra.mxu0 %v602
        %708 = vmatpush.bf16.msra.mxu0 %v598
        %709 = vmatmul.bf16.gmra.mxu0 %v497
        %v710 = vpop.f32.mrf.mxu0
        %v711 = vadd.f32 0.0, %v710
        %v712 = vpop.f32.mrf.mxu0
        %v713 = vadd.f32 0.0, %v712
        %714 = vdwg.mxu0
        %715 = vst [vmem:[#allocation3] sm:$0xff] %v697
        %716 = vst [vmem:[#allocation3 + $0x8] sm:$0xff] %v711
        %717 = vst [vmem:[#allocation3 + $0x10] sm:$0xff] %v699
        %718 = vst [vmem:[#allocation3 + $0x18] sm:$0xff] %v713
        %719 = vst [vmem:[#allocation2] sm:$0x7] 0.0
        %720 = vst [vmem:[#allocation2 + $0x8] sm:$0x7] 0.0
        %vm725 = vcmask 1042432
        %v726 = vrot.slane %v669, 5
        %v727 = vrot.slane %v683, 5
        %v728 = vrot.slane %v671, 5
        %v729 = vsel %vm725, %v726, %v728
        %v730 = vrot.slane %v685, 5
        %v731 = vsel %vm725, %v727, %v730
        %738 = vst [vmem:[#allocation2] sm:$0xf8] %v726
        %739 = vst [vmem:[#allocation2 + $0x8] sm:$0xf8] %v727
        %740 = vst [vmem:[#allocation2 + $0x10] sm:$0xff] %v729
        %741 = vst [vmem:[#allocation2 + $0x18] sm:$0xff] %v731
        %742 = vst [vmem:[#allocation2 + $0x20] sm:$0x7] %v728
        %743 = vst [vmem:[#allocation2 + $0x28] sm:$0x7] %v730
        %v744 = vld [vmem:[%s3] sm:$0x3]
        %v745 = vld [vmem:[#allocation2] sm:$0xff]
        %v746 = vld [vmem:[#allocation2 + $0x8] sm:$0xff]
        %v747 = vld [vmem:[#allocation2 + $0x10] sm:$0xff]
        %v748 = vld [vmem:[#allocation2 + $0x18] sm:$0xff]
        %v749 = vld [vmem:[%s2] ss:$4 sm:$0x3]
        %v751 = vperm.slane %v749, 0
        %v752 = vperm.slane %v749, 1
        %v755 = vmul.f32 %v745, %v751
        %v756 = vmul.f32 %v746, %v752
        %v757 = vmul.f32 %v747, %v751
        %v758 = vmul.f32 %v748, %v752
        %v760 = vperm.slane %v744, 0
        %v761 = vperm.slane %v744, 1
        %v764 = vadd.f32 %v760, %v755
        %v765 = vadd.f32 %v761, %v756
        %v766 = vadd.f32 %v760, %v757
        %v767 = vadd.f32 %v761, %v758
        %v768 = vld [vmem:[#allocation2] sm:$0xfe]
        %v769 = vld [vmem:[#allocation2 + $0x8] sm:$0xfe]
        %v770 = vld [vmem:[#allocation2 + $0x20] sm:$0x1]
        %v771 = vld [vmem:[#allocation2 + $0x28] sm:$0x1]
        %s772 = scalar_lea.vmem %s2, 1
        %v773 = vld [vmem:[%s772] ss:$4 sm:$0x3]
        %v775 = vperm.slane %v773, 0
        %v776 = vperm.slane %v773, 1
        %v779 = vmul.f32 %v768, %v775
        %v780 = vmul.f32 %v769, %v776
        %v781 = vmul.f32 %v747, %v775
        %v782 = vmul.f32 %v748, %v776
        %v783 = vmul.f32 %v770, %v775
        %v784 = vmul.f32 %v771, %v776
        %vm791 = vcmask 1046528
        %v792 = vrot.slane %v779, 1
        %v793 = vrot.slane %v781, 1
        %v794 = vsel %vm791, %v792, %v793
        %v795 = vrot.slane %v780, 1
        %v796 = vrot.slane %v782, 1
        %v797 = vsel %vm791, %v795, %v796
        %v798 = vrot.slane %v783, 1
        %v799 = vsel %vm791, %v793, %v798
        %v800 = vrot.slane %v784, 1
        %v801 = vsel %vm791, %v796, %v800
        %v806 = vadd.f32 %v764, %v794
        %v807 = vadd.f32 %v765, %v797
        %v808 = vadd.f32 %v766, %v799
        %v809 = vadd.f32 %v767, %v801
        %v810 = vld [vmem:[#allocation2] sm:$0xfc]
        %v811 = vld [vmem:[#allocation2 + $0x8] sm:$0xfc]
        %v812 = vld [vmem:[#allocation2 + $0x20] sm:$0x3]
        %v813 = vld [vmem:[#allocation2 + $0x28] sm:$0x3]
        %s814 = scalar_lea.vmem %s2, 2
        %v815 = vld [vmem:[%s814] ss:$4 sm:$0x3]
        %v817 = vperm.slane %v815, 0
        %v818 = vperm.slane %v815, 1
        %v821 = vmul.f32 %v810, %v817
        %v822 = vmul.f32 %v811, %v818
        %v823 = vmul.f32 %v747, %v817
        %v824 = vmul.f32 %v748, %v818
        %v825 = vmul.f32 %v812, %v817
        %v826 = vmul.f32 %v813, %v818
        %vm833 = vcmask 1045504
        %v834 = vrot.slane %v821, 2
        %v835 = vrot.slane %v823, 2
        %v836 = vsel %vm833, %v834, %v835
        %v837 = vrot.slane %v822, 2
        %v838 = vrot.slane %v824, 2
        %v839 = vsel %vm833, %v837, %v838
        %v840 = vrot.slane %v825, 2
        %v841 = vsel %vm833, %v835, %v840
        %v842 = vrot.slane %v826, 2
        %v843 = vsel %vm833, %v838, %v842
        %v848 = vadd.f32 %v806, %v836
        %v849 = vadd.f32 %v807, %v839
        %v850 = vadd.f32 %v808, %v841
        %v851 = vadd.f32 %v809, %v843
        %v852 = vld [vmem:[#allocation2] sm:$0xf8]
        %v853 = vld [vmem:[#allocation2 + $0x8] sm:$0xf8]
        %v854 = vld [vmem:[#allocation2 + $0x20] sm:$0x7]
        %v855 = vld [vmem:[#allocation2 + $0x28] sm:$0x7]
        %s856 = scalar_lea.vmem %s2, 3
        %v857 = vld [vmem:[%s856] ss:$4 sm:$0x3]
        %v859 = vperm.slane %v857, 0
        %v860 = vperm.slane %v857, 1
        %v863 = vmul.f32 %v852, %v859
        %v864 = vmul.f32 %v853, %v860
        %v865 = vmul.f32 %v747, %v859
        %v866 = vmul.f32 %v748, %v860
        %v867 = vmul.f32 %v854, %v859
        %v868 = vmul.f32 %v855, %v860
        %vm875 = vcmask 1044480
        %v876 = vrot.slane %v863, 3
        %v877 = vrot.slane %v865, 3
        %v878 = vsel %vm875, %v876, %v877
        %v879 = vrot.slane %v864, 3
        %v880 = vrot.slane %v866, 3
        %v881 = vsel %vm875, %v879, %v880
        %v882 = vrot.slane %v867, 3
        %v883 = vsel %vm875, %v877, %v882
        %v884 = vrot.slane %v868, 3
        %v885 = vsel %vm875, %v880, %v884
        %v890 = vadd.f32 %v848, %v878
        %v891 = vadd.f32 %v849, %v881
        %v892 = vadd.f32 %v850, %v883
        %v893 = vadd.f32 %v851, %v885
        %v894 = vxor.u32 %v890, 2147483648
        %v895 = vxor.u32 %v891, 2147483648
        %v896 = vxor.u32 %v892, 2147483648
        %v897 = vxor.u32 %v893, 2147483648
        %v898 = vmul.f32 %v894, 1.442695
        %v899 = vpow.pop %v898
        %v900 = vmul.f32 %v895, 1.442695
        %v901 = vpow.pop %v900
        %v902 = vmul.f32 %v896, 1.442695
        %v903 = vpow.pop %v902
        %v904 = vmul.f32 %v897, 1.442695
        %v905 = vpow.pop %v904
        %v906 = vadd.f32 %v899, 1.0
        %v907 = vadd.f32 %v901, 1.0
        %v908 = vadd.f32 %v903, 1.0
        %v909 = vadd.f32 %v905, 1.0
        %v910 = vrcp.pop %v906
        %v911 = vmul.f32 %v906, %v910
        %v912 = vsub.f32 1.0, %v911
        %v913 = vmul.f32 %v910, %v912
        %v914 = vadd.f32 %v910, %v913
        %vm915 = vweird.f32 %v906
        %vm916 = vweird.f32 %v910
        %vm917 = vmor %vm915, %vm916
        %v918 = vsel %vm917, %v910, %v914
        %v919 = vand.u32 2147483647, %v906
        %vm920 = vcmp.eq.f32.partialorder %v919, 8.507059e+37
        %v921 = vand.u32 %v906, 2147483648
        %v922 = vor.u32 1.1754944e-38, %v921
        %v923 = vsel %vm920, %v922, %v918
        %v924 = vmul.f32 1.0, %v923
        %v925 = vrcp.pop %v907
        %v926 = vmul.f32 %v907, %v925
        %v927 = vsub.f32 1.0, %v926
        %v928 = vmul.f32 %v925, %v927
        %v929 = vadd.f32 %v925, %v928
        %vm930 = vweird.f32 %v907
        %vm931 = vweird.f32 %v925
        %vm932 = vmor %vm930, %vm931
        %v933 = vsel %vm932, %v925, %v929
        %v934 = vand.u32 2147483647, %v907
        %vm935 = vcmp.eq.f32.partialorder %v934, 8.507059e+37
        %v936 = vand.u32 %v907, 2147483648
        %v937 = vor.u32 1.1754944e-38, %v936
        %v938 = vsel %vm935, %v937, %v933
        %v939 = vmul.f32 1.0, %v938
        %v940 = vrcp.pop %v908
        %v941 = vmul.f32 %v908, %v940
        %v942 = vsub.f32 1.0, %v941
        %v943 = vmul.f32 %v940, %v942
        %v944 = vadd.f32 %v940, %v943
        %vm945 = vweird.f32 %v908
        %vm946 = vweird.f32 %v940
        %vm947 = vmor %vm945, %vm946
        %v948 = vsel %vm947, %v940, %v944
        %v949 = vand.u32 2147483647, %v908
        %vm950 = vcmp.eq.f32.partialorder %v949, 8.507059e+37
        %v951 = vand.u32 %v908, 2147483648
        %v952 = vor.u32 1.1754944e-38, %v951
        %v953 = vsel %vm950, %v952, %v948
        %v954 = vmul.f32 1.0, %v953
        %v955 = vrcp.pop %v909
        %v956 = vmul.f32 %v909, %v955
        %v957 = vsub.f32 1.0, %v956
        %v958 = vmul.f32 %v955, %v957
        %v959 = vadd.f32 %v955, %v958
        %vm960 = vweird.f32 %v909
        %vm961 = vweird.f32 %v955
        %vm962 = vmor %vm960, %vm961
        %v963 = vsel %vm962, %v955, %v959
        %v964 = vand.u32 2147483647, %v909
        %vm965 = vcmp.eq.f32.partialorder %v964, 8.507059e+37
        %v966 = vand.u32 %v909, 2147483648
        %v967 = vor.u32 1.1754944e-38, %v966
        %v968 = vsel %vm965, %v967, %v963
        %v969 = vmul.f32 1.0, %v968
        %v970 = vmul.f32 %v890, %v924
        %v971 = vmul.f32 %v891, %v939
        %v972 = vmul.f32 %v892, %v954
        %v973 = vmul.f32 %v893, %v969
        %974 = vst [vmem:[#allocation4] sm:$0xff] %v970
        %975 = vst [vmem:[#allocation4 + $0x8] sm:$0xff] %v971
        %976 = vst [vmem:[#allocation4 + $0x10] sm:$0xff] %v972
        %977 = vst [vmem:[#allocation4 + $0x18] sm:$0xff] %v973
        %v978 = vpack.c.bf16 %v972, %v970
        %v979 = vpack.c.bf16 %v973, %v971
        %v980 = vld [vmem:[%s4] sm:$0xf]
        %v981 = vld [vmem:[%s4 + $0x4] sm:$0xf]
        %v982 = vld [vmem:[%s4 + $0x8] sm:$0xf]
        %v983 = vld [vmem:[%s4 + $0xc] sm:$0xf]
        %v984 = vld [vmem:[%s4 + $0x10] sm:$0xf]
        %v985 = vld [vmem:[%s4 + $0x14] sm:$0xf]
        %v986 = vld [vmem:[%s4 + $0x18] sm:$0xf]
        %v987 = vld [vmem:[%s4 + $0x1c] sm:$0xf]
        %v988 = vld [vmem:[%s4 + $0x20] sm:$0xf]
        %v989 = vld [vmem:[%s4 + $0x24] sm:$0xf]
        %v990 = vld [vmem:[%s4 + $0x28] sm:$0xf]
        %v991 = vld [vmem:[%s4 + $0x2c] sm:$0xf]
        %v992 = vld [vmem:[%s4 + $0x30] sm:$0xf]
        %v993 = vld [vmem:[%s4 + $0x34] sm:$0xf]
        %v994 = vld [vmem:[%s4 + $0x38] sm:$0xf]
        %v995 = vld [vmem:[%s4 + $0x3c] sm:$0xf]
        %v996 = vld [vmem:[%s4 + $0x40] sm:$0xf]
        %v997 = vld [vmem:[%s4 + $0x44] sm:$0xf]
        %v998 = vld [vmem:[%s4 + $0x48] sm:$0xf]
        %v999 = vld [vmem:[%s4 + $0x4c] sm:$0xf]
        %v1000 = vld [vmem:[%s4 + $0x50] sm:$0xf]
        %v1001 = vld [vmem:[%s4 + $0x54] sm:$0xf]
        %v1002 = vld [vmem:[%s4 + $0x58] sm:$0xf]
        %v1003 = vld [vmem:[%s4 + $0x5c] sm:$0xf]
        %v1004 = vld [vmem:[%s4 + $0x60] sm:$0xf]
        %v1005 = vld [vmem:[%s4 + $0x64] sm:$0xf]
        %v1006 = vld [vmem:[%s4 + $0x68] sm:$0xf]
        %v1007 = vld [vmem:[%s4 + $0x6c] sm:$0xf]
        %v1008 = vld [vmem:[%s4 + $0x70] sm:$0xf]
        %v1009 = vld [vmem:[%s4 + $0x74] sm:$0xf]
        %v1010 = vld [vmem:[%s4 + $0x78] sm:$0xf]
        %v1011 = vld [vmem:[%s4 + $0x7c] sm:$0xf]
        %v1044 = vunpack.c.l.b16 %v980
        %v1045 = vunpack.c.l.b16 %v981
        %v1046 = vunpack.c.l.b16 %v982
        %v1047 = vunpack.c.l.b16 %v983
        %v1048 = vunpack.c.l.b16 %v984
        %v1049 = vunpack.c.l.b16 %v985
        %v1050 = vunpack.c.l.b16 %v986
        %v1051 = vunpack.c.l.b16 %v987
        %v1052 = vunpack.c.l.b16 %v988
        %v1053 = vunpack.c.l.b16 %v989
        %v1054 = vunpack.c.l.b16 %v990
        %v1055 = vunpack.c.l.b16 %v991
        %v1056 = vunpack.c.l.b16 %v992
        %v1057 = vunpack.c.l.b16 %v993
        %v1058 = vunpack.c.l.b16 %v994
        %v1059 = vunpack.c.l.b16 %v995
        %v1060 = vunpack.c.l.b16 %v996
        %v1061 = vunpack.c.l.b16 %v997
        %v1062 = vunpack.c.l.b16 %v998
        %v1063 = vunpack.c.l.b16 %v999
        %v1064 = vunpack.c.l.b16 %v1000
        %v1065 = vunpack.c.l.b16 %v1001
        %v1066 = vunpack.c.l.b16 %v1002
        %v1067 = vunpack.c.l.b16 %v1003
        %v1068 = vunpack.c.l.b16 %v1004
        %v1069 = vunpack.c.l.b16 %v1005
        %v1070 = vunpack.c.l.b16 %v1006
        %v1071 = vunpack.c.l.b16 %v1007
        %v1072 = vunpack.c.l.b16 %v1008
        %v1073 = vunpack.c.l.b16 %v1009
        %v1074 = vunpack.c.l.b16 %v1010
        %v1075 = vunpack.c.l.b16 %v1011
        %v1076 = vpack.c.b16 %v1045, %v1044
        %v1077 = vpack.c.b16 %v1047, %v1046
        %v1078 = vpack.c.b16 %v1049, %v1048
        %v1079 = vpack.c.b16 %v1051, %v1050
        %v1080 = vpack.c.b16 %v1053, %v1052
        %v1081 = vpack.c.b16 %v1055, %v1054
        %v1082 = vpack.c.b16 %v1057, %v1056
        %v1083 = vpack.c.b16 %v1059, %v1058
        %v1084 = vpack.c.b16 %v1061, %v1060
        %v1085 = vpack.c.b16 %v1063, %v1062
        %v1086 = vpack.c.b16 %v1065, %v1064
        %v1087 = vpack.c.b16 %v1067, %v1066
        %v1088 = vpack.c.b16 %v1069, %v1068
        %v1089 = vpack.c.b16 %v1071, %v1070
        %v1090 = vpack.c.b16 %v1073, %v1072
        %v1091 = vpack.c.b16 %v1075, %v1074
        %1108 = vmatpush.bf16.msra.mxu0 %v1083
        %1109 = vmatpush.bf16.msra.mxu0 %v1082
        %1110 = vmatpush.bf16.msra.mxu0 %v1081
        %1111 = vmatpush.bf16.msra.mxu0 %v1080
        %1112 = vmatpush.bf16.msra.mxu0 %v1079
        %1113 = vmatpush.bf16.msra.mxu0 %v1078
        %1114 = vmatpush.bf16.msra.mxu0 %v1077
        %1115 = vmatpush.bf16.msra.mxu0 %v1076
        %1116 = vmatmul.bf16.gmra.mxu0 %v978
        %v1117 = vpop.f32.mrf.mxu0
        %v1118 = vadd.f32 0.0, %v1117
        %v1119 = vpop.f32.mrf.mxu0
        %v1120 = vadd.f32 0.0, %v1119
        %1121 = vdwg.mxu0
        %1122 = vmatpush.bf16.msra.mxu0 %v1091
        %1123 = vmatpush.bf16.msra.mxu0 %v1090
        %1124 = vmatpush.bf16.msra.mxu0 %v1089
        %1125 = vmatpush.bf16.msra.mxu0 %v1088
        %1126 = vmatpush.bf16.msra.mxu0 %v1087
        %1127 = vmatpush.bf16.msra.mxu0 %v1086
        %1128 = vmatpush.bf16.msra.mxu0 %v1085
        %1129 = vmatpush.bf16.msra.mxu0 %v1084
        %1130 = vmatmul.bf16.gmra.mxu0 %v979
        %v1131 = vpop.f32.mrf.mxu0
        %v1132 = vadd.f32 %v1118, %v1131
        %v1133 = vpop.f32.mrf.mxu0
        %v1134 = vadd.f32 %v1120, %v1133
        %1135 = vdwg.mxu0
        %1138 = vrot.lane.b32.xlu0 %v1132, 120
        %v1139 = vpop.permute.xlu0 %1138
        %1140 = vrot.lane.b32.xlu0 %v1134, 120
        %v1141 = vpop.permute.xlu0 %1140
        %vm1144 = vcmask 64512
        %1145 = vst.msk [vmem:[#allocation6] sm:$0xff] %vm1144, %v1139
        %1146 = vst.msk [vmem:[#allocation6 + $0x8] sm:$0xff] %vm1144, %v1141
        %1147 = vrot.lane.b32.xlu0 %v1132, 112
        %v1148 = vpop.permute.xlu0 %1147
        %1149 = vrot.lane.b32.xlu0 %v1134, 112
        %v1150 = vpop.permute.xlu0 %1149
        %1153 = vst.msk [vmem:[#allocation7] sm:$0xff] %vm1144, %v1148
        %1154 = vst.msk [vmem:[#allocation7 + $0x8] sm:$0xff] %vm1144, %v1150
        %v1155 = vpack.c.bf16 %v1134, %v1132
        %v1156 = vld [vmem:[%s5] sm:$0xff]
        %v1157 = vld [vmem:[%s6] sm:$0x3]
        %v1159 = vperm.slane %v1157, 0
        %v1160 = vperm.slane %v1157, 1
        %v1164 = vunpack.c.l.b16 %v1156
        %v1165 = vunpack.c.h.b16 %v1156
        %v1166 = vpack.c.b16 %v1164, %v1164
        %v1167 = vpack.c.b16 %v1165, %v1165
        %v1169 = vsel %vm1144, %v1155, 0
        %vm1171 = vcmask 1043456
        %v1173 = vsel %vm1171, %v1166, 0
        %v1176 = vsel %vm1171, %v1167, 0
        %1178 = vmatpush.bf16.msra.mxu0 0
        %1179 = vmatpush.bf16.msra.mxu0 0
        %1180 = vmatpush.bf16.msra.mxu0 0
        %1181 = vmatpush.bf16.msra.mxu0 0
        %1182 = vmatpush.bf16.msra.mxu0 0
        %1183 = vmatpush.bf16.msra.mxu0 0
        %1184 = vmatpush.bf16.msra.mxu0 0
        %1185 = vmatpush.bf16.msra.mxu0 %v1173
        %1186 = vmatmul.bf16.gmra.mxu0 %v1169
        %v1187 = vpop.f32.mrf.mxu0
        %v1188 = vadd.f32 %v1159, %v1187
        %v1189 = vpop.f32.mrf.mxu0
        %v1190 = vadd.f32 %v1159, %v1189
        %1191 = vdwg.mxu0
        %1192 = vmatpush.bf16.msra.mxu0 0
        %1193 = vmatpush.bf16.msra.mxu0 0
        %1194 = vmatpush.bf16.msra.mxu0 0
        %1195 = vmatpush.bf16.msra.mxu0 0
        %1196 = vmatpush.bf16.msra.mxu0 0
        %1197 = vmatpush.bf16.msra.mxu0 0
        %1198 = vmatpush.bf16.msra.mxu0 0
        %1199 = vmatpush.bf16.msra.mxu0 %v1176
        %1200 = vmatmul.bf16.gmra.mxu0 %v1169
        %v1201 = vpop.f32.mrf.mxu0
        %v1202 = vadd.f32 %v1160, %v1201
        %v1203 = vpop.f32.mrf.mxu0
        %v1204 = vadd.f32 %v1160, %v1203
        %1205 = vdwg.mxu0
        %v1206 = vmax.f32 %v1188, 0.0
        %v1207 = vmax.f32 %v1202, 0.0
        %v1208 = vmax.f32 %v1190, 0.0
        %v1209 = vmax.f32 %v1204, 0.0
        %v1210 = vand.u32 2147483647, %v1188
        %v1211 = vand.u32 2147483647, %v1202
        %v1212 = vand.u32 2147483647, %v1190
        %v1213 = vand.u32 2147483647, %v1204
        %v1214 = vsub.f32 0.0, %v1210
        %v1215 = vsub.f32 0.0, %v1211
        %v1216 = vsub.f32 0.0, %v1212
        %v1217 = vsub.f32 0.0, %v1213
        %v1218 = vmul.f32 %v1214, 1.442695
        %v1219 = vpow.pop %v1218
        %v1220 = vmul.f32 %v1215, 1.442695
        %v1221 = vpow.pop %v1220
        %v1222 = vmul.f32 %v1216, 1.442695
        %v1223 = vpow.pop %v1222
        %v1224 = vmul.f32 %v1217, 1.442695
        %v1225 = vpow.pop %v1224
        %v1226 = vadd.f32 %v1219, 1.0
        %v1227 = vadd.f32 %v1221, 1.0
        %v1228 = vadd.f32 %v1223, 1.0
        %v1229 = vadd.f32 %v1225, 1.0
        %v1230 = vlog2.pop %v1226
        %v1231 = vmul.f32 %v1230, 0.6931472
        %v1232 = vlog2.pop %v1227
        %v1233 = vmul.f32 %v1232, 0.6931472
        %v1234 = vlog2.pop %v1228
        %v1235 = vmul.f32 %v1234, 0.6931472
        %v1236 = vlog2.pop %v1229
        %v1237 = vmul.f32 %v1236, 0.6931472
        %v1238 = vadd.f32 %v1206, %v1231
        %v1239 = vadd.f32 %v1207, %v1233
        %v1240 = vadd.f32 %v1208, %v1235
        %v1241 = vadd.f32 %v1209, %v1237
        %1242 = vst [vmem:[#allocation5] sm:$0xff] %v1238
        %1243 = vst [vmem:[#allocation5 + $0x8] sm:$0xff] %v1239
        %1244 = vst [vmem:[#allocation5 + $0x10] sm:$0xff] %v1240
        %1245 = vst [vmem:[#allocation5 + $0x18] sm:$0xff] %v1241
        %v1246 = vld [vmem:[%s7] sm:$0xff]
        %v1247 = vld [vmem:[%s7 + $0x8] sm:$0xff]
        %v1248 = vld [vmem:[%s8] sm:$0x3]
        loop: start=0, step=1, limit=2
        $region81: #{encoder_afcm_block.7} parent=67 // loop_pre_header
          _
        $region82: #{encoder_afcm_block.7} parent=67 // loop_header
          %s1250 = sphi 0, %s1254
          %p1251 = scmp.ge.s32.totalorder %s1250, 2
          %v1255 = vphi 0.0, %v1729
          %v1256 = vphi 0.0, %v1730
        $region83: #{encoder_afcm_block.7} parent=67 // loop_header_branch
          %1253 = sbr.rel (%p1251) target = $region87
        $region84: #{encoder_afcm_block.7} parent=67 // loop_body
          %s1257 = smul.u32 %s1250, 8
          %s1258 = sshra.s32 %s1257, 3
          %s1259 = sand.u32 %s1257, 7
          %s1260 = smul.u32 %s1258, 2
          %s1261 = smul.addr %s1260, 8
          %s1262 = scalar_lea.vmem [#allocation5], %s1261
          %v1263 = vld [vmem:[%s1262] sm:$0xff]
          %v1264 = vld [vmem:[%s1262 + $0x8] sm:$0xff]
          %s1265 = smul.addr %s1260, 8
          %s1266 = scalar_lea.vmem [#allocation4], %s1265
          %v1267 = vld [vmem:[%s1266] sm:$0xff]
          %v1268 = vld [vmem:[%s1266 + $0x8] sm:$0xff]
          %s1269 = smul.addr %s1260, 8
          %s1270 = scalar_lea.vmem [#allocation3], %s1269
          %v1271 = vld [vmem:[%s1270] sm:$0xff]
          %v1272 = vld [vmem:[%s1270 + $0x8] sm:$0xff]
          %s1273 = scalar_lea.vmem [#allocation6], %s1257
          %v1274 = vld [vmem:[%s1273] sm:$0xff]
          %1275 = vxpose.xlu0.b32.start [1/16] %v1274, 128
          %1276 = vxpose.xlu0.b32.cont [2/16] 0.0, 128
          %1277 = vxpose.xlu0.b32.cont [3/16] 0.0, 128
          %1278 = vxpose.xlu0.b32.cont [4/16] 0.0, 128
          %1279 = vxpose.xlu0.b32.cont [5/16] 0.0, 128
          %1280 = vxpose.xlu0.b32.cont [6/16] 0.0, 128
          %1281 = vxpose.xlu0.b32.cont [7/16] 0.0, 128
          %1282 = vxpose.xlu0.b32.cont [8/16] 0.0, 128
          %1283 = vxpose.xlu0.b32.cont [9/16] 0.0, 128
          %1284 = vxpose.xlu0.b32.cont [10/16] 0.0, 128
          %1285 = vxpose.xlu0.b32.cont [11/16] 0.0, 128
          %1286 = vxpose.xlu0.b32.cont [12/16] 0.0, 128
          %1287 = vxpose.xlu0.b32.cont [13/16] 0.0, 128
          %1288 = vxpose.xlu0.b32.cont [14/16] 0.0, 128
          %1289 = vxpose.xlu0.b32.cont [15/16] 0.0, 128
          %1290 = vxpose.xlu0.b32.end [16/16] 0.0, 128
          %v1291 = vpop.trf.xlu0
          %v1292 = vpop.trf.xlu0
          %v1293 = vpop.trf.xlu0
          %v1294 = vpop.trf.xlu0
          %v1295 = vpop.trf.xlu0
          %v1296 = vpop.trf.xlu0
          %v1297 = vpop.trf.xlu0
          %v1298 = vpop.trf.xlu0
          %v1299 = vpop.trf.xlu0
          %v1300 = vpop.trf.xlu0
          %v1301 = vpop.trf.xlu0
          %v1302 = vpop.trf.xlu0
          %v1303 = vpop.trf.xlu0
          %v1304 = vpop.trf.xlu0
          %v1305 = vpop.trf.xlu0
          %v1306 = vpop.trf.xlu0
          %s1307 = scalar_lea.vmem [#allocation7], %s1257
          %v1308 = vld [vmem:[%s1307] sm:$0xff]
          %1309 = vxpose.xlu0.b32.start [1/16] %v1308, 128
          %1310 = vxpose.xlu0.b32.cont [2/16] 0.0, 128
          %1311 = vxpose.xlu0.b32.cont [3/16] 0.0, 128
          %1312 = vxpose.xlu0.b32.cont [4/16] 0.0, 128
          %1313 = vxpose.xlu0.b32.cont [5/16] 0.0, 128
          %1314 = vxpose.xlu0.b32.cont [6/16] 0.0, 128
          %1315 = vxpose.xlu0.b32.cont [7/16] 0.0, 128
          %1316 = vxpose.xlu0.b32.cont [8/16] 0.0, 128
          %1317 = vxpose.xlu0.b32.cont [9/16] 0.0, 128
          %1318 = vxpose.xlu0.b32.cont [10/16] 0.0, 128
          %1319 = vxpose.xlu0.b32.cont [11/16] 0.0, 128
          %1320 = vxpose.xlu0.b32.cont [12/16] 0.0, 128
          %1321 = vxpose.xlu0.b32.cont [13/16] 0.0, 128
          %1322 = vxpose.xlu0.b32.cont [14/16] 0.0, 128
          %1323 = vxpose.xlu0.b32.cont [15/16] 0.0, 128
          %1324 = vxpose.xlu0.b32.end [16/16] 0.0, 128
          %v1325 = vpop.trf.xlu0
          %v1326 = vpop.trf.xlu0
          %v1327 = vpop.trf.xlu0
          %v1328 = vpop.trf.xlu0
          %v1329 = vpop.trf.xlu0
          %v1330 = vpop.trf.xlu0
          %v1331 = vpop.trf.xlu0
          %v1332 = vpop.trf.xlu0
          %v1333 = vpop.trf.xlu0
          %v1334 = vpop.trf.xlu0
          %v1335 = vpop.trf.xlu0
          %v1336 = vpop.trf.xlu0
          %v1337 = vpop.trf.xlu0
          %v1338 = vpop.trf.xlu0
          %v1339 = vpop.trf.xlu0
          %v1340 = vpop.trf.xlu0
          %v1343 = vrot.slane %v1264, 7
          %vm1344 = vcmask 1040384
          %v1345 = vsel %vm1344, %v1263, %v1343
          %vm1346 = vcmask 1041409
          %v1347 = vsel %vm1346, %v1263, %v1343
          %v1348 = vrot.slane %v1347, 1
          %vm1349 = vcmask 1042434
          %v1350 = vsel %vm1349, %v1263, %v1343
          %v1351 = vrot.slane %v1350, 2
          %vm1352 = vcmask 1043459
          %v1353 = vsel %vm1352, %v1263, %v1343
          %v1354 = vrot.slane %v1353, 3
          %vm1355 = vcmask 1044484
          %v1356 = vsel %vm1355, %v1263, %v1343
          %v1357 = vrot.slane %v1356, 4
          %vm1358 = vcmask 1045509
          %v1359 = vsel %vm1358, %v1263, %v1343
          %v1360 = vrot.slane %v1359, 5
          %vm1361 = vcmask 1046534
          %v1362 = vsel %vm1361, %v1263, %v1343
          %v1363 = vrot.slane %v1362, 6
          %v1364 = vsel %vm791, %v1343, %v1263
          %v1365 = vrot.slane %v1364, 7
          %v1366 = vperm.slane %v1345, 0
          %v1367 = vperm.slane %v1345, 1
          %v1368 = vperm.slane %v1348, 0
          %v1369 = vperm.slane %v1348, 1
          %v1370 = vperm.slane %v1351, 0
          %v1371 = vperm.slane %v1351, 1
          %v1372 = vperm.slane %v1354, 0
          %v1373 = vperm.slane %v1354, 1
          %v1374 = vperm.slane %v1357, 0
          %v1375 = vperm.slane %v1357, 1
          %v1376 = vperm.slane %v1360, 0
          %v1377 = vperm.slane %v1360, 1
          %v1378 = vperm.slane %v1363, 0
          %v1379 = vperm.slane %v1363, 1
          %v1380 = vperm.slane %v1365, 0
          %v1381 = vperm.slane %v1365, 1
          %v1398 = vmul.f32 %v1366, %v1246
          %v1399 = vmul.f32 %v1367, %v1247
          %v1400 = vmul.f32 %v1368, %v1246
          %v1401 = vmul.f32 %v1369, %v1247
          %v1402 = vmul.f32 %v1370, %v1246
          %v1403 = vmul.f32 %v1371, %v1247
          %v1404 = vmul.f32 %v1372, %v1246
          %v1405 = vmul.f32 %v1373, %v1247
          %v1406 = vmul.f32 %v1374, %v1246
          %v1407 = vmul.f32 %v1375, %v1247
          %v1408 = vmul.f32 %v1376, %v1246
          %v1409 = vmul.f32 %v1377, %v1247
          %v1410 = vmul.f32 %v1378, %v1246
          %v1411 = vmul.f32 %v1379, %v1247
          %v1412 = vmul.f32 %v1380, %v1246
          %v1413 = vmul.f32 %v1381, %v1247
          %v1414 = vmul.f32 %v1398, 1.442695
          %v1415 = vpow.pop %v1414
          %v1416 = vmul.f32 %v1399, 1.442695
          %v1417 = vpow.pop %v1416
          %v1418 = vmul.f32 %v1400, 1.442695
          %v1419 = vpow.pop %v1418
          %v1420 = vmul.f32 %v1401, 1.442695
          %v1421 = vpow.pop %v1420
          %v1422 = vmul.f32 %v1402, 1.442695
          %v1423 = vpow.pop %v1422
          %v1424 = vmul.f32 %v1403, 1.442695
          %v1425 = vpow.pop %v1424
          %v1426 = vmul.f32 %v1404, 1.442695
          %v1427 = vpow.pop %v1426
          %v1428 = vmul.f32 %v1405, 1.442695
          %v1429 = vpow.pop %v1428
          %v1430 = vmul.f32 %v1406, 1.442695
          %v1431 = vpow.pop %v1430
          %v1432 = vmul.f32 %v1407, 1.442695
          %v1433 = vpow.pop %v1432
          %v1434 = vmul.f32 %v1408, 1.442695
          %v1435 = vpow.pop %v1434
          %v1436 = vmul.f32 %v1409, 1.442695
          %v1437 = vpow.pop %v1436
          %v1438 = vmul.f32 %v1410, 1.442695
          %v1439 = vpow.pop %v1438
          %v1440 = vmul.f32 %v1411, 1.442695
          %v1441 = vpow.pop %v1440
          %v1442 = vmul.f32 %v1412, 1.442695
          %v1443 = vpow.pop %v1442
          %v1444 = vmul.f32 %v1413, 1.442695
          %v1445 = vpow.pop %v1444
          %v1446 = vmul.f32 %v1263, %v1267
          %v1447 = vmul.f32 %v1264, %v1268
          %v1448 = vmul.f32 %v1415, %v1255
          %v1449 = vmul.f32 %v1417, %v1256
          %1451 = vset.pattern.permute.xlu0 0
          %1452 = vperm.xlu0 %1451, %v1291
          %v1453 = vpop.permute.xlu0 %1452
          %v1455 = vperm.slane %v1446, 0
          %v1456 = vperm.slane %v1447, 0
          %v1457 = vmul.f32 %v1453, %v1455
          %v1458 = vmul.f32 %v1453, %v1456
          %v1459 = vadd.f32 %v1448, %v1457
          %v1460 = vadd.f32 %v1449, %v1458
          %1462 = vset.pattern.permute.xlu0 0
          %1463 = vperm.xlu0 %1462, %v1325
          %v1464 = vpop.permute.xlu0 %1463
          %v1466 = vmul.f32 %v1464, %v1459
          %v1467 = vmul.f32 %v1464, %v1460
          %v1468 = vrot.slane %v1466, 4
          %v1469 = vadd.f32 %v1466, %v1468
          %v1470 = vrot.slane %v1469, 2
          %v1471 = vadd.f32 %v1469, %v1470
          %v1472 = vrot.slane %v1471, 1
          %v1473 = vadd.f32 %v1471, %v1472
          %v1474 = vrot.slane %v1467, 4
          %v1475 = vadd.f32 %v1467, %v1474
          %v1476 = vrot.slane %v1475, 2
          %v1477 = vadd.f32 %v1475, %v1476
          %v1478 = vrot.slane %v1477, 1
          %v1479 = vadd.f32 %v1477, %v1478
          %v1482 = vrot.slane %v1479, 7
          %v1483 = vsel %vm1344, %v1473, %v1482
          %v1485 = vlaneseq
          %vm1486 = vcmp.ge.s32.totalorder %v1485, 0
          %vm1487 = vcmp.lt.s32.totalorder %v1485, 256
          %vm1488 = vmand %vm1486, %vm1487
          %1489 = vst.msk [vmem:[#allocation8] ss:$8 sm:$0x3] %vm1488, %v1483
          %1490 = vst.msk [vmem:[#allocation8] ss:$8 sm:$0x0] %vm1488, %v1483
          %v1491 = vmul.f32 %v1419, %v1459
          %v1492 = vmul.f32 %v1421, %v1460
          %1493 = vset.pattern.permute.xlu0 1
          %1494 = vperm.xlu0 %1493, %v1291
          %v1495 = vpop.permute.xlu0 %1494
          %v1497 = vperm.slane %v1446, 1
          %v1498 = vperm.slane %v1447, 1
          %v1499 = vmul.f32 %v1495, %v1497
          %v1500 = vmul.f32 %v1495, %v1498
          %v1501 = vadd.f32 %v1491, %v1499
          %v1502 = vadd.f32 %v1492, %v1500
          %1503 = vset.pattern.permute.xlu0 1
          %1504 = vperm.xlu0 %1503, %v1325
          %v1505 = vpop.permute.xlu0 %1504
          %v1507 = vmul.f32 %v1505, %v1501
          %v1508 = vmul.f32 %v1505, %v1502
          %v1509 = vrot.slane %v1507, 4
          %v1510 = vadd.f32 %v1507, %v1509
          %v1511 = vrot.slane %v1510, 2
          %v1512 = vadd.f32 %v1510, %v1511
          %v1513 = vrot.slane %v1512, 1
          %v1514 = vadd.f32 %v1512, %v1513
          %v1515 = vrot.slane %v1508, 4
          %v1516 = vadd.f32 %v1508, %v1515
          %v1517 = vrot.slane %v1516, 2
          %v1518 = vadd.f32 %v1516, %v1517
          %v1519 = vrot.slane %v1518, 1
          %v1520 = vadd.f32 %v1518, %v1519
          %v1523 = vrot.slane %v1520, 7
          %v1524 = vsel %vm1344, %v1514, %v1523
          %s1526 = scalar_lea.vmem [#allocation8], 1
          %1527 = vst.msk [vmem:[%s1526] ss:$8 sm:$0x3] %vm1488, %v1524
          %1528 = vst.msk [vmem:[%s1526] ss:$8 sm:$0x0] %vm1488, %v1524
          %v1529 = vmul.f32 %v1423, %v1501
          %v1530 = vmul.f32 %v1425, %v1502
          %1531 = vset.pattern.permute.xlu0 2
          %1532 = vperm.xlu0 %1531, %v1291
          %v1533 = vpop.permute.xlu0 %1532
          %v1535 = vperm.slane %v1446, 2
          %v1536 = vperm.slane %v1447, 2
          %v1537 = vmul.f32 %v1533, %v1535
          %v1538 = vmul.f32 %v1533, %v1536
          %v1539 = vadd.f32 %v1529, %v1537
          %v1540 = vadd.f32 %v1530, %v1538
          %1541 = vset.pattern.permute.xlu0 2
          %1542 = vperm.xlu0 %1541, %v1325
          %v1543 = vpop.permute.xlu0 %1542
          %v1545 = vmul.f32 %v1543, %v1539
          %v1546 = vmul.f32 %v1543, %v1540
          %v1547 = vrot.slane %v1545, 4
          %v1548 = vadd.f32 %v1545, %v1547
          %v1549 = vrot.slane %v1548, 2
          %v1550 = vadd.f32 %v1548, %v1549
          %v1551 = vrot.slane %v1550, 1
          %v1552 = vadd.f32 %v1550, %v1551
          %v1553 = vrot.slane %v1546, 4
          %v1554 = vadd.f32 %v1546, %v1553
          %v1555 = vrot.slane %v1554, 2
          %v1556 = vadd.f32 %v1554, %v1555
          %v1557 = vrot.slane %v1556, 1
          %v1558 = vadd.f32 %v1556, %v1557
          %v1561 = vrot.slane %v1558, 7
          %v1562 = vsel %vm1344, %v1552, %v1561
          %s1564 = scalar_lea.vmem [#allocation8], 2
          %1565 = vst.msk [vmem:[%s1564] ss:$8 sm:$0x3] %vm1488, %v1562
          %1566 = vst.msk [vmem:[%s1564] ss:$8 sm:$0x0] %vm1488, %v1562
          %v1567 = vmul.f32 %v1427, %v1539
          %v1568 = vmul.f32 %v1429, %v1540
          %1569 = vset.pattern.permute.xlu0 3
          %1570 = vperm.xlu0 %1569, %v1291
          %v1571 = vpop.permute.xlu0 %1570
          %v1573 = vperm.slane %v1446, 3
          %v1574 = vperm.slane %v1447, 3
          %v1575 = vmul.f32 %v1571, %v1573
          %v1576 = vmul.f32 %v1571, %v1574
          %v1577 = vadd.f32 %v1567, %v1575
          %v1578 = vadd.f32 %v1568, %v1576
          %1579 = vset.pattern.permute.xlu0 3
          %1580 = vperm.xlu0 %1579, %v1325
          %v1581 = vpop.permute.xlu0 %1580
          %v1583 = vmul.f32 %v1581, %v1577
          %v1584 = vmul.f32 %v1581, %v1578
          %v1585 = vrot.slane %v1583, 4
          %v1586 = vadd.f32 %v1583, %v1585
          %v1587 = vrot.slane %v1586, 2
          %v1588 = vadd.f32 %v1586, %v1587
          %v1589 = vrot.slane %v1588, 1
          %v1590 = vadd.f32 %v1588, %v1589
          %v1591 = vrot.slane %v1584, 4
          %v1592 = vadd.f32 %v1584, %v1591
          %v1593 = vrot.slane %v1592, 2
          %v1594 = vadd.f32 %v1592, %v1593
          %v1595 = vrot.slane %v1594, 1
          %v1596 = vadd.f32 %v1594, %v1595
          %v1599 = vrot.slane %v1596, 7
          %v1600 = vsel %vm1344, %v1590, %v1599
          %s1602 = scalar_lea.vmem [#allocation8], 3
          %1603 = vst.msk [vmem:[%s1602] ss:$8 sm:$0x3] %vm1488, %v1600
          %1604 = vst.msk [vmem:[%s1602] ss:$8 sm:$0x0] %vm1488, %v1600
          %v1605 = vmul.f32 %v1431, %v1577
          %v1606 = vmul.f32 %v1433, %v1578
          %1607 = vset.pattern.permute.xlu0 4
          %1608 = vperm.xlu0 %1607, %v1291
          %v1609 = vpop.permute.xlu0 %1608
          %v1611 = vperm.slane %v1446, 4
          %v1612 = vperm.slane %v1447, 4
          %v1613 = vmul.f32 %v1609, %v1611
          %v1614 = vmul.f32 %v1609, %v1612
          %v1615 = vadd.f32 %v1605, %v1613
          %v1616 = vadd.f32 %v1606, %v1614
          %1617 = vset.pattern.permute.xlu0 4
          %1618 = vperm.xlu0 %1617, %v1325
          %v1619 = vpop.permute.xlu0 %1618
          %v1621 = vmul.f32 %v1619, %v1615
          %v1622 = vmul.f32 %v1619, %v1616
          %v1623 = vrot.slane %v1621, 4
          %v1624 = vadd.f32 %v1621, %v1623
          %v1625 = vrot.slane %v1624, 2
          %v1626 = vadd.f32 %v1624, %v1625
          %v1627 = vrot.slane %v1626, 1
          %v1628 = vadd.f32 %v1626, %v1627
          %v1629 = vrot.slane %v1622, 4
          %v1630 = vadd.f32 %v1622, %v1629
          %v1631 = vrot.slane %v1630, 2
          %v1632 = vadd.f32 %v1630, %v1631
          %v1633 = vrot.slane %v1632, 1
          %v1634 = vadd.f32 %v1632, %v1633
          %v1637 = vrot.slane %v1634, 7
          %v1638 = vsel %vm1344, %v1628, %v1637
          %s1640 = scalar_lea.vmem [#allocation8], 4
          %1641 = vst.msk [vmem:[%s1640] ss:$8 sm:$0x3] %vm1488, %v1638
          %1642 = vst.msk [vmem:[%s1640] ss:$8 sm:$0x0] %vm1488, %v1638
          %v1643 = vmul.f32 %v1435, %v1615
          %v1644 = vmul.f32 %v1437, %v1616
          %1645 = vset.pattern.permute.xlu0 5
          %1646 = vperm.xlu0 %1645, %v1291
          %v1647 = vpop.permute.xlu0 %1646
          %v1649 = vperm.slane %v1446, 5
          %v1650 = vperm.slane %v1447, 5
          %v1651 = vmul.f32 %v1647, %v1649
          %v1652 = vmul.f32 %v1647, %v1650
          %v1653 = vadd.f32 %v1643, %v1651
          %v1654 = vadd.f32 %v1644, %v1652
          %1655 = vset.pattern.permute.xlu0 5
          %1656 = vperm.xlu0 %1655, %v1325
          %v1657 = vpop.permute.xlu0 %1656
          %v1659 = vmul.f32 %v1657, %v1653
          %v1660 = vmul.f32 %v1657, %v1654
          %v1661 = vrot.slane %v1659, 4
          %v1662 = vadd.f32 %v1659, %v1661
          %v1663 = vrot.slane %v1662, 2
          %v1664 = vadd.f32 %v1662, %v1663
          %v1665 = vrot.slane %v1664, 1
          %v1666 = vadd.f32 %v1664, %v1665
          %v1667 = vrot.slane %v1660, 4
          %v1668 = vadd.f32 %v1660, %v1667
          %v1669 = vrot.slane %v1668, 2
          %v1670 = vadd.f32 %v1668, %v1669
          %v1671 = vrot.slane %v1670, 1
          %v1672 = vadd.f32 %v1670, %v1671
          %v1675 = vrot.slane %v1672, 7
          %v1676 = vsel %vm1344, %v1666, %v1675
          %s1678 = scalar_lea.vmem [#allocation8], 5
          %1679 = vst.msk [vmem:[%s1678] ss:$8 sm:$0x3] %vm1488, %v1676
          %1680 = vst.msk [vmem:[%s1678] ss:$8 sm:$0x0] %vm1488, %v1676
          %v1681 = vmul.f32 %v1439, %v1653
          %v1682 = vmul.f32 %v1441, %v1654
          %1683 = vset.pattern.permute.xlu0 6
          %1684 = vperm.xlu0 %1683, %v1291
          %v1685 = vpop.permute.xlu0 %1684
          %v1687 = vperm.slane %v1446, 6
          %v1688 = vperm.slane %v1447, 6
          %v1689 = vmul.f32 %v1685, %v1687
          %v1690 = vmul.f32 %v1685, %v1688
          %v1691 = vadd.f32 %v1681, %v1689
          %v1692 = vadd.f32 %v1682, %v1690
          %1693 = vset.pattern.permute.xlu0 6
          %1694 = vperm.xlu0 %1693, %v1325
          %v1695 = vpop.permute.xlu0 %1694
          %v1697 = vmul.f32 %v1695, %v1691
          %v1698 = vmul.f32 %v1695, %v1692
          %v1699 = vrot.slane %v1697, 4
          %v1700 = vadd.f32 %v1697, %v1699
          %v1701 = vrot.slane %v1700, 2
          %v1702 = vadd.f32 %v1700, %v1701
          %v1703 = vrot.slane %v1702, 1
          %v1704 = vadd.f32 %v1702, %v1703
          %v1705 = vrot.slane %v1698, 4
          %v1706 = vadd.f32 %v1698, %v1705
          %v1707 = vrot.slane %v1706, 2
          %v1708 = vadd.f32 %v1706, %v1707
          %v1709 = vrot.slane %v1708, 1
          %v1710 = vadd.f32 %v1708, %v1709
          %v1713 = vrot.slane %v1710, 7
          %v1714 = vsel %vm1344, %v1704, %v1713
          %s1716 = scalar_lea.vmem [#allocation8], 6
          %1717 = vst.msk [vmem:[%s1716] ss:$8 sm:$0x3] %vm1488, %v1714
          %1718 = vst.msk [vmem:[%s1716] ss:$8 sm:$0x0] %vm1488, %v1714
          %v1719 = vmul.f32 %v1443, %v1691
          %v1720 = vmul.f32 %v1445, %v1692
          %1721 = vset.pattern.permute.xlu0 7
          %1722 = vperm.xlu0 %1721, %v1291
          %v1723 = vpop.permute.xlu0 %1722
          %v1725 = vperm.slane %v1446, 7
          %v1726 = vperm.slane %v1447, 7
          %v1727 = vmul.f32 %v1723, %v1725
          %v1728 = vmul.f32 %v1723, %v1726
          %v1729 = vadd.f32 %v1719, %v1727
          %v1730 = vadd.f32 %v1720, %v1728
          %1731 = vset.pattern.permute.xlu0 7
          %1732 = vperm.xlu0 %1731, %v1325
          %v1733 = vpop.permute.xlu0 %1732
          %v1735 = vmul.f32 %v1733, %v1729
          %v1736 = vmul.f32 %v1733, %v1730
          %v1737 = vrot.slane %v1735, 4
          %v1738 = vadd.f32 %v1735, %v1737
          %v1739 = vrot.slane %v1738, 2
          %v1740 = vadd.f32 %v1738, %v1739
          %v1741 = vrot.slane %v1740, 1
          %v1742 = vadd.f32 %v1740, %v1741
          %v1743 = vrot.slane %v1736, 4
          %v1744 = vadd.f32 %v1736, %v1743
          %v1745 = vrot.slane %v1744, 2
          %v1746 = vadd.f32 %v1744, %v1745
          %v1747 = vrot.slane %v1746, 1
          %v1748 = vadd.f32 %v1746, %v1747
          %v1751 = vrot.slane %v1748, 7
          %v1752 = vsel %vm1344, %v1742, %v1751
          %s1754 = scalar_lea.vmem [#allocation8], 7
          %1755 = vst.msk [vmem:[%s1754] ss:$8 sm:$0x3] %vm1488, %v1752
          %1756 = vst.msk [vmem:[%s1754] ss:$8 sm:$0x0] %vm1488, %v1752
          %v1757 = vld [vmem:[#allocation8] sm:$0xff]
          %v1758 = vld [vmem:[#allocation8 + $0x8] sm:$0xff]
          %v1760 = vperm.slane %v1248, 0
          %v1761 = vperm.slane %v1248, 1
          %v1764 = vmul.f32 %v1760, %v1267
          %v1765 = vmul.f32 %v1761, %v1268
          %v1766 = vadd.f32 %v1757, %v1764
          %v1767 = vadd.f32 %v1758, %v1765
          %v1768 = vxor.u32 %v1271, 2147483648
          %v1769 = vxor.u32 %v1272, 2147483648
          %v1770 = vmul.f32 %v1768, 1.442695
          %v1771 = vpow.pop %v1770
          %v1772 = vmul.f32 %v1769, 1.442695
          %v1773 = vpow.pop %v1772
          %v1774 = vadd.f32 %v1771, 1.0
          %v1775 = vadd.f32 %v1773, 1.0
          %v1776 = vrcp.pop %v1774
          %v1777 = vmul.f32 %v1774, %v1776
          %v1778 = vsub.f32 1.0, %v1777
          %v1779 = vmul.f32 %v1776, %v1778
          %v1780 = vadd.f32 %v1776, %v1779
          %vm1781 = vweird.f32 %v1774
          %vm1782 = vweird.f32 %v1776
          %vm1783 = vmor %vm1781, %vm1782
          %v1784 = vsel %vm1783, %v1776, %v1780
          %v1785 = vand.u32 2147483647, %v1774
          %vm1786 = vcmp.eq.f32.partialorder %v1785, 8.507059e+37
          %v1787 = vand.u32 %v1774, 2147483648
          %v1788 = vor.u32 1.1754944e-38, %v1787
          %v1789 = vsel %vm1786, %v1788, %v1784
          %v1790 = vmul.f32 1.0, %v1789
          %v1791 = vrcp.pop %v1775
          %v1792 = vmul.f32 %v1775, %v1791
          %v1793 = vsub.f32 1.0, %v1792
          %v1794 = vmul.f32 %v1791, %v1793
          %v1795 = vadd.f32 %v1791, %v1794
          %vm1796 = vweird.f32 %v1775
          %vm1797 = vweird.f32 %v1791
          %vm1798 = vmor %vm1796, %vm1797
          %v1799 = vsel %vm1798, %v1791, %v1795
          %v1800 = vand.u32 2147483647, %v1775
          %vm1801 = vcmp.eq.f32.partialorder %v1800, 8.507059e+37
          %v1802 = vand.u32 %v1775, 2147483648
          %v1803 = vor.u32 1.1754944e-38, %v1802
          %v1804 = vsel %vm1801, %v1803, %v1799
          %v1805 = vmul.f32 1.0, %v1804
          %v1806 = vmul.f32 %v1271, %v1790
          %v1807 = vmul.f32 %v1272, %v1805
          %v1808 = vmul.f32 %v1766, %v1806
          %v1809 = vmul.f32 %v1767, %v1807
          %v1810 = vpack.c.bf16 %v1809, %v1808
          %s1811 = smul.addr %s1260, 4
          %s1812 = scalar_lea.vmem [#allocation9], %s1811
          %1813 = vst [vmem:[%s1812] sm:$0xff] %v1810
        $region85: #{encoder_afcm_block.7} parent=67 // loop_footer
          %s1254 = sadd.s32 1, %s1250
        $region86: #{encoder_afcm_block.7} parent=67 // loop_footer_branch
          %1249 = sbr.rel target = $region82
        $region87: #{encoder_afcm_block.7} parent=67 // loop_exit
          _
        %v1814 = vld [vmem:[#allocation9] sm:$0xff]
        %v1815 = vld [vmem:[#allocation9 + $0x8] sm:$0xff]
        %v1816 = vld [vmem:[%s9] sm:$0xf]
        %v1817 = vld [vmem:[%s9 + $0x4] sm:$0xf]
        %v1818 = vld [vmem:[%s9 + $0x8] sm:$0xf]
        %v1819 = vld [vmem:[%s9 + $0xc] sm:$0xf]
        %v1820 = vld [vmem:[%s9 + $0x10] sm:$0xf]
        %v1821 = vld [vmem:[%s9 + $0x14] sm:$0xf]
        %v1822 = vld [vmem:[%s9 + $0x18] sm:$0xf]
        %v1823 = vld [vmem:[%s9 + $0x1c] sm:$0xf]
        %v1824 = vld [vmem:[%s9 + $0x20] sm:$0xf]
        %v1825 = vld [vmem:[%s9 + $0x24] sm:$0xf]
        %v1826 = vld [vmem:[%s9 + $0x28] sm:$0xf]
        %v1827 = vld [vmem:[%s9 + $0x2c] sm:$0xf]
        %v1828 = vld [vmem:[%s9 + $0x30] sm:$0xf]
        %v1829 = vld [vmem:[%s9 + $0x34] sm:$0xf]
        %v1830 = vld [vmem:[%s9 + $0x38] sm:$0xf]
        %v1831 = vld [vmem:[%s9 + $0x3c] sm:$0xf]
        %v1832 = vld [vmem:[%s9 + $0x40] sm:$0xf]
        %v1833 = vld [vmem:[%s9 + $0x44] sm:$0xf]
        %v1834 = vld [vmem:[%s9 + $0x48] sm:$0xf]
        %v1835 = vld [vmem:[%s9 + $0x4c] sm:$0xf]
        %v1836 = vld [vmem:[%s9 + $0x50] sm:$0xf]
        %v1837 = vld [vmem:[%s9 + $0x54] sm:$0xf]
        %v1838 = vld [vmem:[%s9 + $0x58] sm:$0xf]
        %v1839 = vld [vmem:[%s9 + $0x5c] sm:$0xf]
        %v1840 = vld [vmem:[%s9 + $0x60] sm:$0xf]
        %v1841 = vld [vmem:[%s9 + $0x64] sm:$0xf]
        %v1842 = vld [vmem:[%s9 + $0x68] sm:$0xf]
        %v1843 = vld [vmem:[%s9 + $0x6c] sm:$0xf]
        %v1844 = vld [vmem:[%s9 + $0x70] sm:$0xf]
        %v1845 = vld [vmem:[%s9 + $0x74] sm:$0xf]
        %v1846 = vld [vmem:[%s9 + $0x78] sm:$0xf]
        %v1847 = vld [vmem:[%s9 + $0x7c] sm:$0xf]
        %v1850 = vunpack.c.l.b16 %v1814
        %v1851 = vunpack.c.h.b16 %v1814
        %v1852 = vunpack.c.l.b16 %v1815
        %v1853 = vunpack.c.h.b16 %v1815
        %v1854 = vpack.c.b16 %v1852, %v1850
        %v1855 = vpack.c.b16 %v1853, %v1851
        %v1890 = vunpack.c.l.b16 %v1816
        %v1891 = vunpack.c.l.b16 %v1817
        %v1892 = vunpack.c.l.b16 %v1818
        %v1893 = vunpack.c.l.b16 %v1819
        %v1894 = vunpack.c.l.b16 %v1820
        %v1895 = vunpack.c.l.b16 %v1821
        %v1896 = vunpack.c.l.b16 %v1822
        %v1897 = vunpack.c.l.b16 %v1823
        %v1898 = vunpack.c.l.b16 %v1824
        %v1899 = vunpack.c.l.b16 %v1825
        %v1900 = vunpack.c.l.b16 %v1826
        %v1901 = vunpack.c.l.b16 %v1827
        %v1902 = vunpack.c.l.b16 %v1828
        %v1903 = vunpack.c.l.b16 %v1829
        %v1904 = vunpack.c.l.b16 %v1830
        %v1905 = vunpack.c.l.b16 %v1831
        %v1906 = vunpack.c.l.b16 %v1832
        %v1907 = vunpack.c.l.b16 %v1833
        %v1908 = vunpack.c.l.b16 %v1834
        %v1909 = vunpack.c.l.b16 %v1835
        %v1910 = vunpack.c.l.b16 %v1836
        %v1911 = vunpack.c.l.b16 %v1837
        %v1912 = vunpack.c.l.b16 %v1838
        %v1913 = vunpack.c.l.b16 %v1839
        %v1914 = vunpack.c.l.b16 %v1840
        %v1915 = vunpack.c.l.b16 %v1841
        %v1916 = vunpack.c.l.b16 %v1842
        %v1917 = vunpack.c.l.b16 %v1843
        %v1918 = vunpack.c.l.b16 %v1844
        %v1919 = vunpack.c.l.b16 %v1845
        %v1920 = vunpack.c.l.b16 %v1846
        %v1921 = vunpack.c.l.b16 %v1847
        %v1922 = vpack.c.b16 %v1891, %v1890
        %v1923 = vpack.c.b16 %v1893, %v1892
        %v1924 = vpack.c.b16 %v1895, %v1894
        %v1925 = vpack.c.b16 %v1897, %v1896
        %v1926 = vpack.c.b16 %v1899, %v1898
        %v1927 = vpack.c.b16 %v1901, %v1900
        %v1928 = vpack.c.b16 %v1903, %v1902
        %v1929 = vpack.c.b16 %v1905, %v1904
        %v1930 = vpack.c.b16 %v1907, %v1906
        %v1931 = vpack.c.b16 %v1909, %v1908
        %v1932 = vpack.c.b16 %v1911, %v1910
        %v1933 = vpack.c.b16 %v1913, %v1912
        %v1934 = vpack.c.b16 %v1915, %v1914
        %v1935 = vpack.c.b16 %v1917, %v1916
        %v1936 = vpack.c.b16 %v1919, %v1918
        %v1937 = vpack.c.b16 %v1921, %v1920
        %1954 = vmatpush.bf16.msra.mxu0 %v1929
        %1955 = vmatpush.bf16.msra.mxu0 %v1928
        %1956 = vmatpush.bf16.msra.mxu0 %v1927
        %1957 = vmatpush.bf16.msra.mxu0 %v1926
        %1958 = vmatpush.bf16.msra.mxu0 %v1925
        %1959 = vmatpush.bf16.msra.mxu0 %v1924
        %1960 = vmatpush.bf16.msra.mxu0 %v1923
        %1961 = vmatpush.bf16.msra.mxu0 %v1922
        %1962 = vmatmul.bf16.gmra.mxu0 %v1854
        %v1963 = vpop.f32.mrf.mxu0
        %v1964 = vadd.f32 0.0, %v1963
        %v1965 = vpop.f32.mrf.mxu0
        %v1966 = vadd.f32 0.0, %v1965
        %1967 = vdwg.mxu0
        %1968 = vmatpush.bf16.msra.mxu0 %v1937
        %1969 = vmatpush.bf16.msra.mxu0 %v1936
        %1970 = vmatpush.bf16.msra.mxu0 %v1935
        %1971 = vmatpush.bf16.msra.mxu0 %v1934
        %1972 = vmatpush.bf16.msra.mxu0 %v1933
        %1973 = vmatpush.bf16.msra.mxu0 %v1932
        %1974 = vmatpush.bf16.msra.mxu0 %v1931
        %1975 = vmatpush.bf16.msra.mxu0 %v1930
        %1976 = vmatmul.bf16.gmra.mxu0 %v1855
        %v1977 = vpop.f32.mrf.mxu0
        %v1978 = vadd.f32 %v1964, %v1977
        %v1979 = vpop.f32.mrf.mxu0
        %v1980 = vadd.f32 %v1966, %v1979
        %1981 = vdwg.mxu0
        %v1982 = vld [vmem:[%s457] sm:$0xf]
        %v1983 = vld [vmem:[%s457 + $0x4] sm:$0xf]
        %v1984 = vunpack.c.l.bf16 %v1982
        %v1985 = vunpack.c.l.bf16 %v1983
        %v1986 = vadd.f32 %v1984, %v1978
        %v1987 = vadd.f32 %v1985, %v1980
        %v1988 = vld [vmem:[#allocation13] sm:$0x1]
        %v1990 = vperm.slane %v1988, 0
        %v1992 = vmul.f32 %v1986, %v1990
        %v1993 = vmul.f32 %v1987, %v1990
        %v1994 = vld [vmem:[#allocation15] sm:$0x1]
        %v1996 = vperm.slane %v1994, 0
        %v1998 = vadd.f32 %v1992, %v1996
        %v1999 = vadd.f32 %v1993, %v1996
        %2000 = vst [vmem:[%s452] sm:$0xff] %v1998
        %2001 = vst [vmem:[%s452 + $0x8] sm:$0xff] %v1999
        %s2002 = sand.u32 %s293, 1
        %s2003 = scalar_lea.sflag [#allocation12], %s2002
        %s2004 = sand.u32 %s293, 1
        %s2005 = smul.addr %s2004, 16
        %s2006 = scalar_lea.vmem [#allocation16], %s2005
        // Predicated region
        $region88: #{encoder_afcm_block.7} parent=67 // pred_check
          %p2007 = pneg %p303
        $region89: #{encoder_afcm_block.7} parent=67 // pred_check_branch
          %2009 = sbr.rel (%p2007) target = $region91
        $region90: #{encoder_afcm_block.7} parent=67 // pred_region
          %2011 = vsyncadd %s2003, 0
          %s2012 = smul.addr %s28, 2
          %s2013 = smul.addr %s2012, 8
          %s2014 = scalar_lea.hbm %s12, %s2013
          %s2015 = sshll.u32 %s2006, 4
          %s2016 = int_to_ptr.vmem [resolvable:$true] %s2015
          %s2017 = sshll.u32 %s2014, 4
          %s2018 = int_to_ptr.hbm [resolvable:$true] %s2017
          %2023 = dma.vmem_to_hbm [thread:$0]  %s2016, 256, %s2018, %s2003, 128, 128, 8
        $region91: #{encoder_afcm_block.7} parent=67 // pred_fallthru
          _
      $region68: #{encoder_afcm_block.7} parent=5 // pred_fallthru
        _
      %p2024 = scmp.le.s32.totalorder 2, %s23
      // Predicated region
      $region92: #{encoder_afcm_block.7} parent=5 // pred_check
        %p2025 = pneg %p2024
      $region93: #{encoder_afcm_block.7} parent=5 // pred_check_branch
        %2027 = sbr.rel (%p2025) target = $region95
      $region94: #{encoder_afcm_block.7} parent=5 // pred_region
        %s2028 = ssub.s32 %s23, 2
        // Predicated region
        $region96: #{encoder_afcm_block.7} parent=94 // pred_check
          %p2029 = pneg %p309
        $region97: #{encoder_afcm_block.7} parent=94 // pred_check_branch
          %2031 = sbr.rel (%p2029) target = $region99
        $region98: #{encoder_afcm_block.7} parent=94 // pred_region
          %s2032 = sand.u32 %s294, 1
          %s2033 = scalar_lea.sflag [#allocation12], %s2032
          %s2034 = sand.u32 %s294, 1
          %s2035 = smul.addr %s2034, 16
          %s2036 = scalar_lea.vmem [#allocation16], %s2035
          %2038 = dma.done %s2033, 256
        $region99: #{encoder_afcm_block.7} parent=94 // pred_fallthru
          _
      $region95: #{encoder_afcm_block.7} parent=5 // pred_fallthru
        _
    $region6: #{encoder_afcm_block.7} parent=1 // loop_footer
      %s27 = sadd.s32 1, %s23
    $region7: #{encoder_afcm_block.7} parent=1 // loop_footer_branch
      %22 = sbr.rel target = $region3
    $region8: #{encoder_afcm_block.7} parent=1 // loop_exit
      _
    %2039 = vsyncpa [#allocation11], 1
    %s2040 = scalar_lea.sflag [#allocation11], 1
    %2041 = vsyncpa %s2040, 1
    %2042 = vsyncpa [#allocation14], 1
    %2043 = vsyncpa [#allocation12], 1
    %s2044 = scalar_lea.sflag [#allocation12], 1
    %2045 = vsyncpa %s2044, 1

</llo_original>
